<compile_context>
chip_gen: v5e
topology: v5e:2x2
jax: 0.10.0
libtpu: 0.0.40
codegen_flags: <defaults>
</compile_context>

<pallas_src>
import math
import functools

import jax
import jax.numpy as jnp
from jax.experimental import pallas as pl
from jax.experimental.pallas import tpu as pltpu

_LN_EPS = 1e-5  # PyTorch LayerNorm default


# ----------------------------- hardware-aware knobs --------------------------

def _round_up(x, m):
    return (x + m - 1) // m * m


def _vmem_limit():
    try:
        return int(pltpu.get_tpu_info().vmem_capacity_bytes * 0.6)
    except Exception:
        return 32 * 1024 * 1024


_VMEM_LIMIT = _vmem_limit()


def _default_kv_tile():
    # v6e/v7x MXUs are 256-wide -> Tk=256; keep 128 on v5e/v5p/v4 and older.
    try:
        kind = jax.devices()[0].device_kind.lower()
    except Exception:
        kind = ""
    if any(t in kind for t in ("v2", "v3", "v4", "v5")):
        return 128
    return 256


_KV_TILE = _default_kv_tile()


def _probe_kernel(x_ref, o_ref):
    o_ref[...] = x_ref[...] * 2.0


def _probe_single_buffer():
    """Check whether pl.BlockSpec(pipeline_mode=pl.Buffered(1)) compiles, so that
    grid-constant operands (resident weights) get a single VMEM buffer instead of
    being double-buffered."""
    try:
        cspec = pl.BlockSpec((8, 128), lambda i: (0, 0), pipeline_mode=pl.Buffered(1))
        f = pl.pallas_call(
            _probe_kernel,
            out_shape=jax.ShapeDtypeStruct((16, 128), jnp.float32),
            grid=(2,),
            in_specs=[cspec],
            out_specs=pl.BlockSpec((8, 128), lambda i: (i, 0)))
        jax.block_until_ready(f(jnp.ones((8, 128), jnp.float32)))
        return True
    except Exception:
        return False


_SINGLE_BUFFER_OK = _probe_single_buffer()


def _const_spec(block_shape, index_map):
    """BlockSpec for an operand whose block index never changes (weights/biases)."""
    if _SINGLE_BUFFER_OK:
        return pl.BlockSpec(block_shape, index_map, pipeline_mode=pl.Buffered(1))
    return pl.BlockSpec(block_shape, index_map)


def _cparams(*sem):
    return pltpu.CompilerParams(dimension_semantics=sem, vmem_limit_bytes=_VMEM_LIMIT)


# ----------------------------- tiling helpers --------------------------------

def _choose_tm(M, target=256):
    """Row tile: prefer a tile that divides M (avoids pad/slice activation copies)."""
    if M <= target:
        return M, M
    for t in (target, 512, 256, 128, 64, 32, 16, 8):
        if t <= target and M % t == 0:
            return t, M
    return target, _round_up(M, target)


def _choose_q_tile(S, target=256):
    if S <= target:
        return S, S
    for t in (target, 128, 64, 32, 16, 8):
        if t <= target and S % t == 0:
            return t, S
    return target, _round_up(S, target)


def _choose_kv_tile(S, target):
    # The kv tile is also the minor dim of the key-bias block, so if it is not the
    # full (padded) key length it must be a multiple of 128.
    if S <= target:
        return S, S
    if S % target == 0:
        return target, S
    if 128 <= target and S % 128 == 0:
        return 128, S
    return target, _round_up(S, target)


def _pad_rows(x2d, Mp):
    M = x2d.shape[0]
    return jnp.pad(x2d, ((0, Mp - M), (0, 0))) if Mp != M else x2d


# ----------------------------- Pallas kernels --------------------------------

def _ln_linear_kernel(x_ref, g_ref, b_ref, w_ref, bias_ref, *o_refs):
    # fused LayerNorm (fp32) + matmul (bf16 operands, fp32 acc) + bias,
    # optionally split column-wise into several outputs (e.g. Q, K, V).
    x = x_ref[...]
    mean = jnp.mean(x, axis=-1, keepdims=True)
    var = jnp.mean((x - mean) ** 2, axis=-1, keepdims=True)
    xn = (x - mean) * jax.lax.rsqrt(var + _LN_EPS) * g_ref[...] + b_ref[...]
    y = jnp.dot(xn.astype(jnp.bfloat16), w_ref[...],
                preferred_element_type=jnp.float32) + bias_ref[...]
    n = len(o_refs)
    c = y.shape[1] // n
    for idx, o in enumerate(o_refs):
        o[...] = y[:, idx * c:(idx + 1) * c].astype(o.dtype)


def _linear_kernel(x_ref, w_ref, bias_ref, *o_refs):
    y = jnp.dot(x_ref[...].astype(jnp.bfloat16), w_ref[...],
                preferred_element_type=jnp.float32) + bias_ref[...]
    n = len(o_refs)
    c = y.shape[1] // n
    for idx, o in enumerate(o_refs):
        o[...] = y[:, idx * c:(idx + 1) * c].astype(o.dtype)


def _linear_residual_kernel(x_ref, res_ref, w_ref, bias_ref, o_ref):
    # out = residual + x @ W + b   (residual add in fp32, fused)
    y = jnp.dot(x_ref[...].astype(jnp.bfloat16), w_ref[...],
                preferred_element_type=jnp.float32) + bias_ref[...]
    o_ref[...] = (res_ref[...] + y).astype(o_ref.dtype)


def _ln_ffn_kernel(x_ref, g_ref, b_ref, w1_ref, b1_ref, w2_ref, b2_ref, o_ref):
    # out = x + W2 @ relu(W1 @ LN(x) + b1) + b2   (whole sublayer fused)
    x = x_ref[...]
    mean = jnp.mean(x, axis=-1, keepdims=True)
    var = jnp.mean((x - mean) ** 2, axis=-1, keepdims=True)
    xn = (x - mean) * jax.lax.rsqrt(var + _LN_EPS) * g_ref[...] + b_ref[...]
    h = jnp.dot(xn.astype(jnp.bfloat16), w1_ref[...],
                preferred_element_type=jnp.float32) + b1_ref[...]
    h = jnp.maximum(h, 0.0)
    y = jnp.dot(h.astype(jnp.bfloat16), w2_ref[...],
                preferred_element_type=jnp.float32) + b2_ref[...]
    o_ref[...] = (x + y).astype(o_ref.dtype)


def _flash_attn_kernel(kb_ref, q_ref, k_ref, v_ref, o_ref, m_sc, l_sc, acc_sc,
                       *, n_heads, dh, tq, tk, causal):
    # One (batch, q-tile) pair, streaming over KV tiles with online softmax.
    # Heads are processed with a static in-kernel loop over lane slices of the
    # (tile, D) q/k/v blocks, so there are no head split/merge transposes and the
    # HBM-facing layout stays lane-dense.  The 1/sqrt(Dh) scale is pre-folded into
    # the Q projection weights.  Note: on v6e/v7x this loop is EUP(exp)-bound, on
    # v5e it is MXU-bound.
    kv = pl.program_id(2)

    @pl.when(kv == 0)
    def _():
        m_sc[...] = jnp.full_like(m_sc, -jnp.inf)
        l_sc[...] = jnp.zeros_like(l_sc)
        acc_sc[...] = jnp.zeros_like(acc_sc)

    q = q_ref[0]            # (Tq, D) bf16
    k = k_ref[0]            # (Tk, D) bf16
    v = v_ref[0]            # (Tk, D) bf16
    bias = kb_ref[0]        # (1, Tk) fp32 additive key-padding bias (0 / -1e9)

    if causal:
        row = jax.lax.broadcasted_iota(jnp.int32, (tq, tk), 0) + pl.program_id(1) * tq
        col = jax.lax.broadcasted_iota(jnp.int32, (tq, tk), 1) + kv * tk
        bias = bias + jnp.where(col > row, -1e9, 0.0).astype(jnp.float32)

    for h in range(n_heads):
        sl = slice(h * dh, (h + 1) * dh)
        s = jax.lax.dot_general(q[:, sl], k[:, sl], (((1,), (1,)), ((), ())),
                                preferred_element_type=jnp.float32)
        s = s + bias
        m_prev = m_sc[h]                               # (Tq, 1)
        m_new = jnp.maximum(m_prev, jnp.max(s, axis=-1, keepdims=True))
        alpha = jnp.exp(m_prev - m_new)
        p = jnp.exp(s - m_new)
        l_sc[h] = alpha * l_sc[h] + jnp.sum(p, axis=-1, keepdims=True)
        acc_sc[h] = alpha * acc_sc[h] + jnp.dot(p.astype(jnp.bfloat16), v[:, sl],
                                                preferred_element_type=jnp.float32)
        m_sc[h] = m_new

    @pl.when(kv == pl.num_programs(2) - 1)
    def _():
        for h in range(n_heads):
            sl = slice(h * dh, (h + 1) * dh)
            o_ref[0, :, sl] = (acc_sc[h] *
                               pl.reciprocal(l_sc[h], approx=True)).astype(o_ref.dtype)


# ----------------------------- kernel wrappers --------------------------------

def ln_linear(x2d, gamma, beta, w_bf16, bias, out_dtype=jnp.float32, n_splits=1, tm=256):
    M, D = x2d.shape
    N = w_bf16.shape[1]
    Nc = N // n_splits
    TM, Mp = _choose_tm(M, tm)
    xp = _pad_rows(x2d, Mp)
    out_shape = tuple(jax.ShapeDtypeStruct((Mp, Nc), out_dtype) for _ in range(n_splits))
    out_specs = tuple(pl.BlockSpec((TM, Nc), lambda i: (i, 0)) for _ in range(n_splits))
    outs = pl.pallas_call(
        _ln_linear_kernel,
        out_shape=out_shape if n_splits > 1 else out_shape[0],
        grid=(Mp // TM,),
        in_specs=[pl.BlockSpec((TM, D), lambda i: (i, 0)),
                  _const_spec((1, D), lambda i: (0, 0)),
                  _const_spec((1, D), lambda i: (0, 0)),
                  _const_spec((D, N), lambda i: (0, 0)),     # weight resident
                  _const_spec((1, N), lambda i: (0, 0))],
        out_specs=out_specs if n_splits > 1 else out_specs[0],
        compiler_params=_cparams("parallel"),
    )(xp, gamma.reshape(1, D), beta.reshape(1, D), w_bf16, bias.reshape(1, N))
    if n_splits == 1:
        outs = (outs,)
    outs = tuple(o[:M] if Mp != M else o for o in outs)
    return outs if n_splits > 1 else outs[0]


def linear(x2d, w_bf16, bias, out_dtype=jnp.float32, n_splits=1, tm=256):
    M, Din = x2d.shape
    N = w_bf16.shape[1]
    Nc = N // n_splits
    TM, Mp = _choose_tm(M, tm)
    xp = _pad_rows(x2d, Mp)
    out_shape = tuple(jax.ShapeDtypeStruct((Mp, Nc), out_dtype) for _ in range(n_splits))
    out_specs = tuple(pl.BlockSpec((TM, Nc), lambda i: (i, 0)) for _ in range(n_splits))
    outs = pl.pallas_call(
        _linear_kernel,
        out_shape=out_shape if n_splits > 1 else out_shape[0],
        grid=(Mp // TM,),
        in_specs=[pl.BlockSpec((TM, Din), lambda i: (i, 0)),
                  _const_spec((Din, N), lambda i: (0, 0)),
                  _const_spec((1, N), lambda i: (0, 0))],
        out_specs=out_specs if n_splits > 1 else out_specs[0],
        compiler_params=_cparams("parallel"),
    )(xp, w_bf16, bias.reshape(1, N))
    if n_splits == 1:
        outs = (outs,)
    outs = tuple(o[:M] if Mp != M else o for o in outs)
    return outs if n_splits > 1 else outs[0]


def linear_residual(x2d_bf16, res2d_f32, w_bf16, bias, tm=256):
    M, Din = x2d_bf16.shape
    N = w_bf16.shape[1]
    TM, Mp = _choose_tm(M, tm)
    xp = _pad_rows(x2d_bf16, Mp)
    rp = _pad_rows(res2d_f32, Mp)
    out = pl.pallas_call(
        _linear_residual_kernel,
        out_shape=jax.ShapeDtypeStruct((Mp, N), jnp.float32),
        grid=(Mp // TM,),
        in_specs=[pl.BlockSpec((TM, Din), lambda i: (i, 0)),
                  pl.BlockSpec((TM, N), lambda i: (i, 0)),
                  _const_spec((Din, N), lambda i: (0, 0)),
                  _const_spec((1, N), lambda i: (0, 0))],
        out_specs=pl.BlockSpec((TM, N), lambda i: (i, 0)),
        compiler_params=_cparams("parallel"),
    )(xp, rp, w_bf16, bias.reshape(1, N))
    return out[:M] if Mp != M else out


def ln_ffn(x2d, gamma, beta, ffw, tm=256):
    M, D = x2d.shape
    d_ff = ffw["w1"].shape[1]
    # Shrink the row tile if the resident bf16 FFN weights plus activation tiles
    # approach the VMEM budget (matters on v7x's 64 MiB).
    bufs = 1 if _SINGLE_BUFFER_OK else 2
    w_bytes = 2 * D * d_ff * 2 * bufs
    target = tm
    while target > 16 and w_bytes + target * (d_ff + 4 * D) * 4 * 2 > _VMEM_LIMIT:
        target //= 2
    # TODO(synk): for very large d_ff the hidden dim should get its own "arbitrary"
    # grid axis with a (TM, D) fp32 accumulator instead of relying on TM shrinking.
    TM, Mp = _choose_tm(M, target)
    xp = _pad_rows(x2d, Mp)
    out = pl.pallas_call(
        _ln_ffn_kernel,
        out_shape=jax.ShapeDtypeStruct((Mp, D), jnp.float32),
        grid=(Mp // TM,),
        in_specs=[pl.BlockSpec((TM, D), lambda i: (i, 0)),
                  _const_spec((1, D), lambda i: (0, 0)),
                  _const_spec((1, D), lambda i: (0, 0)),
                  _const_spec((D, d_ff), lambda i: (0, 0)),   # w1 resident
                  _const_spec((1, d_ff), lambda i: (0, 0)),
                  _const_spec((d_ff, D), lambda i: (0, 0)),   # w2 resident
                  _const_spec((1, D), lambda i: (0, 0))],
        out_specs=pl.BlockSpec((TM, D), lambda i: (i, 0)),
        compiler_params=_cparams("parallel"),
    )(xp, gamma.reshape(1, D), beta.reshape(1, D),
      ffw["w1"], ffw["b1"].reshape(1, d_ff), ffw["w2"], ffw["b2"].reshape(1, D))
    return out[:M] if Mp != M else out


def vocab_projection(x2d, w_bf16, bias, tm=512, tn=512):
    """Final projection: N (vocab) axis outer, M axis inner so the weight tile stays
    resident across the row sweep; lane-dense (multiple-of-128) output tiles."""
    # TODO(synk): weights could be stored in fp8 on v7x (native MXU fp8) to halve
    # weight DMA / VMEM; kept bf16 here for v5e/v6e compatibility.
    M, D = x2d.shape
    V = w_bf16.shape[1]
    TM, Mp = _choose_tm(M, tm)
    if V <= tn:
        TN, Vp = V, V
    else:
        TN = tn
        Vp = _round_up(V, TN)
    xp = _pad_rows(x2d, Mp)
    wp = jnp.pad(w_bf16, ((0, 0), (0, Vp - V))) if Vp != V else w_bf16
    bp = jnp.pad(bias, (0, Vp - V)) if Vp != V else bias
    out = pl.pallas_call(
        _linear_kernel,
        out_shape=jax.ShapeDtypeStruct((Mp, Vp), jnp.float32),
        grid=(Vp // TN, Mp // TM),     # N outer, M inner -> weight resident across M
        in_specs=[pl.BlockSpec((TM, D), lambda j, i: (i, 0)),
                  pl.BlockSpec((D, TN), lambda j, i: (0, j)),
                  pl.BlockSpec((1, TN), lambda j, i: (0, j))],
        out_specs=pl.BlockSpec((TM, TN), lambda j, i: (i, j)),
        compiler_params=_cparams("parallel", "parallel"),
    )(xp, wp, bp.reshape(1, Vp))
    return out[:M, :V] if (Mp != M or Vp != V) else out


def attention_core(q, k, v, key_bias, n_heads, causal=False):
    """q: (B, Sq, D) bf16, k/v: (B, Sk, D) bf16, key_bias: (B, 1, Sk) fp32 additive
    per-key bias (0 = attend, -1e9 = masked).  Causal structure is generated
    in-kernel.  Returns the attention context (B, Sq, D) in bf16."""
    B, Sq, D = q.shape
    Sk = k.shape[1]
    Dh = D // n_heads

    Tk, Skp = _choose_kv_tile(Sk, _KV_TILE)
    Tq, Sqp = _choose_q_tile(Sq, 256)
    if Skp != Sk:
        pad = Skp - Sk
        k = jnp.pad(k, ((0, 0), (0, pad), (0, 0)))
        v = jnp.pad(v, ((0, 0), (0, pad), (0, 0)))
        key_bias = jnp.pad(key_bias, ((0, 0), (0, 0), (0, pad)), constant_values=-1e9)
    if Sqp != Sq:
        q = jnp.pad(q, ((0, 0), (0, Sqp - Sq), (0, 0)))

    out = pl.pallas_call(
        functools.partial(_flash_attn_kernel, n_heads=n_heads, dh=Dh,
                          tq=Tq, tk=Tk, causal=causal),
        out_shape=jax.ShapeDtypeStruct((B, Sqp, D), jnp.bfloat16),
        grid=(B, Sqp // Tq, Skp // Tk),
        in_specs=[pl.BlockSpec((1, 1, Tk), lambda b, qi, kv: (b, 0, kv)),   # key bias
                  pl.BlockSpec((1, Tq, D), lambda b, qi, kv: (b, qi, 0)),   # q
                  pl.BlockSpec((1, Tk, D), lambda b, qi, kv: (b, kv, 0)),   # k
                  pl.BlockSpec((1, Tk, D), lambda b, qi, kv: (b, kv, 0))],  # v
        out_specs=pl.BlockSpec((1, Tq, D), lambda b, qi, kv: (b, qi, 0)),
        scratch_shapes=[pltpu.VMEM((n_heads, Tq, 1), jnp.float32),    # running max
                        pltpu.VMEM((n_heads, Tq, 1), jnp.float32),    # running sum
                        pltpu.VMEM((n_heads, Tq, Dh), jnp.float32)],  # accumulator
        compiler_params=_cparams("parallel", "parallel", "arbitrary"),
    )(key_bias, q, k, v)
    return out[:, :Sq] if Sqp != Sq else out


# ----------------------------- model (glue in JAX) ----------------------------

def _key_bias_from_mask(mask, B, Sq, Sk):
    """Reduce a broadcastable 0/1 attention mask to a per-key additive bias (B,1,Sk).
    Assumes the mask factorizes as (optional causal) AND key-padding, which holds for
    standard transformer masks; the key component is read from the last query row.
    TODO(synk): fully general (B, Sq, Sk) masks would need a DMA'd mask path."""
    m = jnp.broadcast_to(mask, (B, 1, Sq, Sk))[:, 0, Sq - 1, :]
    return ((m.astype(jnp.float32) - 1.0) * 1e9).reshape(B, 1, Sk)


def encoder_block(p, x, enc_key_bias, n_heads):
    B, S, D = x.shape
    M = B * S
    x2 = x.reshape(M, D)
    mha = p["mha"]

    # fused LayerNorm + QKV projection (single (D, 3D) matmul, 3 bf16 outputs)
    q, k, v = ln_linear(x2, p["ln1_g"], p["ln1_b"], mha["wqkv"], mha["bqkv"],
                        out_dtype=jnp.bfloat16, n_splits=3)
    ctx = attention_core(q.reshape(B, S, D), k.reshape(B, S, D), v.reshape(B, S, D),
                         enc_key_bias, n_heads, causal=False)
    x2 = linear_residual(ctx.reshape(M, D), x2, mha["wo"], mha["bo"])

    # fused LayerNorm + FFN + residual
    x2 = ln_ffn(x2, p["ln2_g"], p["ln2_b"], p["ffw"])
    return x2.reshape(B, S, D)


def decoder_block(p, x, dec_key_bias, enc_out, enc_key_bias, n_heads):
    B, S, D = x.shape
    M = B * S
    S_src = enc_out.shape[1]
    x2 = x.reshape(M, D)

    # --- masked (causal) self-attention ---
    smha = p["self_mha"]
    q, k, v = ln_linear(x2, p["ln1_g"], p["ln1_b"], smha["wqkv"], smha["bqkv"],
                        out_dtype=jnp.bfloat16, n_splits=3)
    ctx = attention_core(q.reshape(B, S, D), k.reshape(B, S, D), v.reshape(B, S, D),
                         dec_key_bias, n_heads, causal=True)
    x2 = linear_residual(ctx.reshape(M, D), x2, smha["wo"], smha["bo"])

    # --- cross-attention: Q from LN(x), K/V from (un-normed) encoder output ---
    cmha = p["cross_mha"]
    qc = ln_linear(x2, p["ln2_g"], p["ln2_b"], cmha["wq"], cmha["bq"],
                   out_dtype=jnp.bfloat16)
    kc, vc = linear(enc_out.reshape(B * S_src, D), cmha["wkv"], cmha["bkv"],
                    out_dtype=jnp.bfloat16, n_splits=2)
    ctx = attention_core(qc.reshape(B, S, D), kc.reshape(B, S_src, D),
                         vc.reshape(B, S_src, D), enc_key_bias, n_heads, causal=False)
    x2 = linear_residual(ctx.reshape(M, D), x2, cmha["wo"], cmha["bo"])

    # --- feed-forward ---
    x2 = ln_ffn(x2, p["ln3_g"], p["ln3_b"], p["ffw"])
    return x2.reshape(B, S, D)


def transformer_forward(params, enc_input, dec_input, enc_mask, dec_mask, *, n_heads):
    D = params["src_emb"].shape[1]
    B, S_src = enc_input.shape
    S_tgt = dec_input.shape[1]
    pe = params["pe"]

    # TODO(synk): embedding gather + positional-encoding add kept in plain JAX glue.
    x = params["src_emb"][enc_input] * math.sqrt(D) + pe[:S_src][None]
    enc_key_bias = _key_bias_from_mask(enc_mask, B, S_src, S_src)
    for p in params["enc_blocks"]:
        x = encoder_block(p, x, enc_key_bias, n_heads)
    enc_out = x

    y = params["tgt_emb"][dec_input] * math.sqrt(D) + pe[:S_tgt][None]
    dec_key_bias = _key_bias_from_mask(dec_mask, B, S_tgt, S_tgt)        # causal in-kernel
    cross_key_bias = _key_bias_from_mask(enc_mask, B, S_tgt, S_src)
    for p in params["dec_blocks"]:
        y = decoder_block(p, y, dec_key_bias, enc_out, cross_key_bias, n_heads)

    logits = vocab_projection(y.reshape(B * S_tgt, D), params["proj_w"], params["proj_b"])
    return logits.reshape(B, S_tgt, -1)


# ----------------------------- parameter init ---------------------------------

def _xavier(key, shape):
    fan_in, fan_out = shape
    limit = math.sqrt(6.0 / (fan_in + fan_out))
    return jax.random.uniform(key, shape, jnp.float32, -limit, limit)


def _mha_params(key, D, n_heads):
    ks = jax.random.split(key, 4)
    wq, wk, wv = _xavier(ks[0], (D, D)), _xavier(ks[1], (D, D)), _xavier(ks[2], (D, D))
    wo = _xavier(ks[3], (D, D))
    # Fold the 1/sqrt(Dh) attention scale into the Q projection (weights + bias; the
    # biases here are zero so only the weights change).
    scale = 1.0 / math.sqrt(D // n_heads)
    wq_s = wq * scale
    return {
        "wqkv": jnp.concatenate([wq_s, wk, wv], axis=1).astype(jnp.bfloat16),
        "bqkv": jnp.zeros((3 * D,), jnp.float32),
        "wq": wq_s.astype(jnp.bfloat16), "bq": jnp.zeros((D,), jnp.float32),
        "wkv": jnp.concatenate([wk, wv], axis=1).astype(jnp.bfloat16),
        "bkv": jnp.zeros((2 * D,), jnp.float32),
        "wo": wo.astype(jnp.bfloat16), "bo": jnp.zeros((D,), jnp.float32),
    }


def _ffw_params(key, D, d_ff):
    k1, k2 = jax.random.split(key)
    return {"w1": _xavier(k1, (D, d_ff)).astype(jnp.bfloat16),
            "b1": jnp.zeros((d_ff,), jnp.float32),
            "w2": _xavier(k2, (d_ff, D)).astype(jnp.bfloat16),
            "b2": jnp.zeros((D,), jnp.float32)}


def _enc_block_params(key, D, d_ff, n_heads):
    k1, k2 = jax.random.split(key)
    return {"mha": _mha_params(k1, D, n_heads), "ffw": _ffw_params(k2, D, d_ff),
            "ln1_g": jnp.ones((D,), jnp.float32), "ln1_b": jnp.zeros((D,), jnp.float32),
            "ln2_g": jnp.ones((D,), jnp.float32), "ln2_b": jnp.zeros((D,), jnp.float32)}


def _dec_block_params(key, D, d_ff, n_heads):
    k1, k2, k3 = jax.random.split(key, 3)
    return {"self_mha": _mha_params(k1, D, n_heads),
            "cross_mha": _mha_params(k2, D, n_heads),
            "ffw": _ffw_params(k3, D, d_ff),
            "ln1_g": jnp.ones((D,), jnp.float32), "ln1_b": jnp.zeros((D,), jnp.float32),
            "ln2_g": jnp.ones((D,), jnp.float32), "ln2_b": jnp.zeros((D,), jnp.float32),
            "ln3_g": jnp.ones((D,), jnp.float32), "ln3_b": jnp.zeros((D,), jnp.float32)}


def _sinusoidal_pe(seq_len, D):
    pos = jnp.arange(seq_len, dtype=jnp.float32)[:, None]
    i = jnp.arange(0, D, 2, dtype=jnp.float32)
    div = jnp.exp(-math.log(10000.0) * i / D)
    pe = jnp.zeros((seq_len, D), jnp.float32)
    pe = pe.at[:, 0::2].set(jnp.sin(pos * div))
    pe = pe.at[:, 1::2].set(jnp.cos(pos * div))
    return pe


def make_params(key, src_vocab, tgt_vocab, seq_len, D, d_ff, n_blocks, n_heads):
    keys = jax.random.split(key, 3 + 2 * n_blocks)
    return {
        "src_emb": jax.random.normal(keys[0], (src_vocab, D), jnp.float32) * 0.02,
        "tgt_emb": jax.random.normal(keys[1], (tgt_vocab, D), jnp.float32) * 0.02,
        "pe": _sinusoidal_pe(seq_len, D),
        "proj_w": (_xavier(keys[2], (D, tgt_vocab)) * 0.1).astype(jnp.bfloat16),
        "proj_b": jnp.zeros((tgt_vocab,), jnp.float32),
        "enc_blocks": [_enc_block_params(keys[3 + i], D, d_ff, n_heads)
                       for i in range(n_blocks)],
        "dec_blocks": [_dec_block_params(keys[3 + n_blocks + i], D, d_ff, n_heads)
                       for i in range(n_blocks)],
    }


# ---------------------------------- main ---------------------------------------

if __name__ == "__main__":
    # small config
    src_vocab, tgt_vocab = 40, 48
    B, S, D, n_heads, d_ff, n_blocks = 2, 8, 32, 4, 64, 2

    key = jax.random.PRNGKey(0)
    k_par, k_enc, k_dec = jax.random.split(key, 3)
    params = make_params(k_par, src_vocab, tgt_vocab, S, D, d_ff, n_blocks, n_heads)

    enc_input = jax.random.randint(k_enc, (B, S), 0, src_vocab, dtype=jnp.int32)
    dec_input = jax.random.randint(k_dec, (B, S), 0, tgt_vocab, dtype=jnp.int32)
    # enc_mask: (B, 1, 1, S) padding mask (all valid); dec_mask: (B, 1, S, S) causal
    enc_mask = jnp.ones((B, 1, 1, S), jnp.int32)
    dec_mask = jnp.tril(jnp.ones((S, S), jnp.int32))[None, None].repeat(B, axis=0)

    fwd = jax.jit(functools.partial(transformer_forward, n_heads=n_heads))
    logits = fwd(params, enc_input, dec_input, enc_mask, dec_mask)
    jax.block_until_ready(logits)

    assert logits.shape == (B, S, tgt_vocab), logits.shape
    assert bool(jnp.all(jnp.isfinite(logits)))
    print("KERNEL_OK")
</pallas_src>

<mosaic_0001>
module attributes {stable_mosaic.version = 11 : i64} {
  func.func @_probe_kernel(%arg0: i32, %arg1: memref<8x128xf32, #tpu.memory_space<vmem>>, %arg2: memref<8x128xf32, #tpu.memory_space<vmem>>) attributes {dimension_semantics = [#tpu.dimension_semantics<arbitrary>], iteration_bounds = array<i64: 2>, scalar_prefetch = 0 : i64, scratch_operands = 0 : i64, tpu.core_type = #tpu.core_type<tc>, window_params = [{pipeline_mode = #tpu.pipeline_mode<synchronous>, transform_indices = @transform_0, window_bounds = array<i64: 8, 128>}, {transform_indices = @transform_1, window_bounds = array<i64: 8, 128>}]} {
    %c0 = arith.constant 0 : index
    %c0_0 = arith.constant 0 : index
    %0 = vector.load %arg1[%c0, %c0_0] : memref<8x128xf32, #tpu.memory_space<vmem>>, vector<8x128xf32>
    %cst = arith.constant 2.000000e+00 : f32
    %1 = vector.broadcast %cst : f32 to vector<8x128xf32>
    %2 = arith.mulf %0, %1 : vector<8x128xf32>
    %c0_1 = arith.constant 0 : index
    %c0_2 = arith.constant 0 : index
    %3 = vector.load %arg2[%c0_1, %c0_2] : memref<8x128xf32, #tpu.memory_space<vmem>>, vector<8x128xf32>
    tpu.vector_store %arg2[%c0_1, %c0_2], %2 {strides = array<i32>} : memref<8x128xf32, #tpu.memory_space<vmem>>, vector<8x128xf32>,
    return
  }
  func.func @transform_0(%arg0: i32) -> (i32, i32) {
    %c0_i32 = arith.constant 0 : i32
    %c0_i32_0 = arith.constant 0 : i32
    %c0_i32_1 = arith.constant 0 : i32
    return %c0_i32, %c0_i32_0 : i32, i32
  }
  func.func @transform_1(%arg0: i32) -> (i32, i32) {
    %c0_i32 = arith.constant 0 : i32
    %c0_i32_0 = arith.constant 0 : i32
    return %arg0, %c0_i32 : i32, i32
  }
}

module attributes {stable_mosaic.version = 11 : i64} {
  func.func @_linear_residual_kernel(%arg0: i32, %arg1: memref<16x32xbf16, #tpu.memory_space<vmem>>, %arg2: memref<16x32xf32, #tpu.memory_space<vmem>>, %arg3: memref<32x32xbf16, #tpu.memory_space<vmem>>, %arg4: memref<1x32xf32, #tpu.memory_space<vmem>>, %arg5: memref<16x32xf32, #tpu.memory_space<vmem>>) attributes {dimension_semantics = [#tpu.dimension_semantics<parallel>], iteration_bounds = array<i64: 1>, scalar_prefetch = 0 : i64, scratch_operands = 0 : i64, tpu.core_type = #tpu.core_type<tc>, window_params = [{transform_indices = @transform_0, window_bounds = array<i64: 16, 32>}, {transform_indices = @transform_1, window_bounds = array<i64: 16, 32>}, {pipeline_mode = #tpu.pipeline_mode<synchronous>, transform_indices = @transform_2, window_bounds = array<i64: 32, 32>}, {pipeline_mode = #tpu.pipeline_mode<synchronous>, transform_indices = @transform_3, window_bounds = array<i64: 1, 32>}, {transform_indices = @transform_4, window_bounds = array<i64: 16, 32>}]} {
    %c0 = arith.constant 0 : index
    %c0_0 = arith.constant 0 : index
    %0 = vector.load %arg1[%c0, %c0_0] : memref<16x32xbf16, #tpu.memory_space<vmem>>, vector<16x32xbf16>
    %c0_1 = arith.constant 0 : index
    %c0_2 = arith.constant 0 : index
    %1 = vector.load %arg3[%c0_1, %c0_2] : memref<32x32xbf16, #tpu.memory_space<vmem>>, vector<32x32xbf16>
    %cst = arith.constant dense<0.000000e+00> : vector<16x32xf32>
    %2 = tpu.matmul %0, %1, %cst {dimension_numbers = #tpu.dot_dimension_numbers<[1], [0], [0], [1], [0, 0, 1, 1], [], []>} : vector<16x32xbf16>, vector<32x32xbf16>, vector<16x32xf32> -> vector<16x32xf32>
    %c0_3 = arith.constant 0 : index
    %c0_4 = arith.constant 0 : index
    %3 = vector.load %arg4[%c0_3, %c0_4] : memref<1x32xf32, #tpu.memory_space<vmem>>, vector<1x32xf32>
    %4 = vector.broadcast %3 : vector<1x32xf32> to vector<16x32xf32>
    %5 = arith.addf %2, %4 : vector<16x32xf32>
    %c0_5 = arith.constant 0 : index
    %c0_6 = arith.constant 0 : index
    %6 = vector.load %arg2[%c0_5, %c0_6] : memref<16x32xf32, #tpu.memory_space<vmem>>, vector<16x32xf32>
    %7 = arith.addf %6, %5 : vector<16x32xf32>
    %c0_7 = arith.constant 0 : index
    %c0_8 = arith.constant 0 : index
    %8 = vector.load %arg5[%c0_7, %c0_8] : memref<16x32xf32, #tpu.memory_space<vmem>>, vector<16x32xf32>
    tpu.vector_store %arg5[%c0_7, %c0_8], %7 {strides = array<i32>} : memref<16x32xf32, #tpu.memory_space<vmem>>, vector<16x32xf32>,
    return
  }
  func.func @transform_0(%arg0: i32) -> (i32, i32) {
    %c0_i32 = arith.constant 0 : i32
    %c0_i32_0 = arith.constant 0 : i32
    return %arg0, %c0_i32 : i32, i32
  }
  func.func @transform_1(%arg0: i32) -> (i32, i32) {
    %c0_i32 = arith.constant 0 : i32
    %c0_i32_0 = arith.constant 0 : i32
    return %arg0, %c0_i32 : i32, i32
  }
  func.func @transform_2(%arg0: i32) -> (i32, i32) {
    %c0_i32 = arith.constant 0 : i32
    %c0_i32_0 = arith.constant 0 : i32
    %c0_i32_1 = arith.constant 0 : i32
    return %c0_i32, %c0_i32_0 : i32, i32
  }
  func.func @transform_3(%arg0: i32) -> (i32, i32) {
    %c0_i32 = arith.constant 0 : i32
    %c0_i32_0 = arith.constant 0 : i32
    %c0_i32_1 = arith.constant 0 : i32
    return %c0_i32, %c0_i32_0 : i32, i32
  }
  func.func @transform_4(%arg0: i32) -> (i32, i32) {
    %c0_i32 = arith.constant 0 : i32
    %c0_i32_0 = arith.constant 0 : i32
    return %arg0, %c0_i32 : i32, i32
  }
}

module attributes {stable_mosaic.version = 11 : i64} {
  func.func @_ln_linear_kernel(%arg0: i32, %arg1: memref<16x32xf32, #tpu.memory_space<vmem>>, %arg2: memref<1x32xf32, #tpu.memory_space<vmem>>, %arg3: memref<1x32xf32, #tpu.memory_space<vmem>>, %arg4: memref<32x96xbf16, #tpu.memory_space<vmem>>, %arg5: memref<1x96xf32, #tpu.memory_space<vmem>>, %arg6: memref<16x32xbf16, #tpu.memory_space<vmem>>, %arg7: memref<16x32xbf16, #tpu.memory_space<vmem>>, %arg8: memref<16x32xbf16, #tpu.memory_space<vmem>>) attributes {dimension_semantics = [#tpu.dimension_semantics<parallel>], iteration_bounds = array<i64: 1>, scalar_prefetch = 0 : i64, scratch_operands = 0 : i64, tpu.core_type = #tpu.core_type<tc>, window_params = [{transform_indices = @transform_0, window_bounds = array<i64: 16, 32>}, {pipeline_mode = #tpu.pipeline_mode<synchronous>, transform_indices = @transform_1, window_bounds = array<i64: 1, 32>}, {pipeline_mode = #tpu.pipeline_mode<synchronous>, transform_indices = @transform_2, window_bounds = array<i64: 1, 32>}, {pipeline_mode = #tpu.pipeline_mode<synchronous>, transform_indices = @transform_3, window_bounds = array<i64: 32, 96>}, {pipeline_mode = #tpu.pipeline_mode<synchronous>, transform_indices = @transform_4, window_bounds = array<i64: 1, 96>}, {transform_indices = @transform_5, window_bounds = array<i64: 16, 32>}, {transform_indices = @transform_6, window_bounds = array<i64: 16, 32>}, {transform_indices = @transform_7, window_bounds = array<i64: 16, 32>}]} {
    %c0 = arith.constant 0 : index
    %c0_0 = arith.constant 0 : index
    %0 = vector.load %arg1[%c0, %c0_0] : memref<16x32xf32, #tpu.memory_space<vmem>>, vector<16x32xf32>
    %cst = arith.constant dense<0.000000e+00> : vector<16xf32>
    %1 = vector.multi_reduction <add>, %0, %cst [1] : vector<16x32xf32> to vector<16xf32>
    %2 = vector.shape_cast %1 : vector<16xf32> to vector<16x1xf32>
    %cst_1 = arith.constant 3.200000e+01 : f32
    %3 = vector.broadcast %cst_1 : f32 to vector<16x1xf32>
    %4 = arith.divf %2, %3 : vector<16x1xf32>
    %5 = vector.broadcast %4 : vector<16x1xf32> to vector<16x32xf32>
    %6 = arith.subf %0, %5 : vector<16x32xf32>
    %7 = arith.mulf %6, %6 : vector<16x32xf32>
    %cst_2 = arith.constant dense<0.000000e+00> : vector<16xf32>
    %8 = vector.multi_reduction <add>, %7, %cst_2 [1] : vector<16x32xf32> to vector<16xf32>
    %9 = vector.shape_cast %8 : vector<16xf32> to vector<16x1xf32>
    %cst_3 = arith.constant 3.200000e+01 : f32
    %10 = vector.broadcast %cst_3 : f32 to vector<16x1xf32>
    %11 = arith.divf %9, %10 : vector<16x1xf32>
    %12 = vector.broadcast %4 : vector<16x1xf32> to vector<16x32xf32>
    %13 = arith.subf %0, %12 : vector<16x32xf32>
    %cst_4 = arith.constant 9.99999974E-6 : f32
    %14 = vector.broadcast %cst_4 : f32 to vector<16x1xf32>
    %15 = arith.addf %11, %14 : vector<16x1xf32>
    %16 = math.rsqrt %15 : vector<16x1xf32>
    %17 = vector.broadcast %16 : vector<16x1xf32> to vector<16x32xf32>
    %18 = arith.mulf %13, %17 : vector<16x32xf32>
    %c0_5 = arith.constant 0 : index
    %c0_6 = arith.constant 0 : index
    %19 = vector.load %arg2[%c0_5, %c0_6] : memref<1x32xf32, #tpu.memory_space<vmem>>, vector<1x32xf32>
    %20 = vector.broadcast %19 : vector<1x32xf32> to vector<16x32xf32>
    %21 = arith.mulf %18, %20 : vector<16x32xf32>
    %c0_7 = arith.constant 0 : index
    %c0_8 = arith.constant 0 : index
    %22 = vector.load %arg3[%c0_7, %c0_8] : memref<1x32xf32, #tpu.memory_space<vmem>>, vector<1x32xf32>
    %23 = vector.broadcast %22 : vector<1x32xf32> to vector<16x32xf32>
    %24 = arith.addf %21, %23 : vector<16x32xf32>
    %25 = arith.truncf %24 : vector<16x32xf32> to vector<16x32xbf16>
    %c0_9 = arith.constant 0 : index
    %c0_10 = arith.constant 0 : index
    %26 = vector.load %arg4[%c0_9, %c0_10] : memref<32x96xbf16, #tpu.memory_space<vmem>>, vector<32x96xbf16>
    %cst_11 = arith.constant dense<0.000000e+00> : vector<16x96xf32>
    %27 = tpu.matmul %25, %26, %cst_11 {dimension_numbers = #tpu.dot_dimension_numbers<[1], [0], [0], [1], [0, 0, 1, 1], [], []>} : vector<16x32xbf16>, vector<32x96xbf16>, vector<16x96xf32> -> vector<16x96xf32>
    %c0_12 = arith.constant 0 : index
    %c0_13 = arith.constant 0 : index
    %28 = vector.load %arg5[%c0_12, %c0_13] : memref<1x96xf32, #tpu.memory_space<vmem>>, vector<1x96xf32>
    %29 = vector.broadcast %28 : vector<1x96xf32> to vector<16x96xf32>
    %30 = arith.addf %27, %29 : vector<16x96xf32>
    %31 = vector.extract_strided_slice %30 {offsets = [0, 0], sizes = [16, 32], strides = [1, 1]} : vector<16x96xf32> to vector<16x32xf32>
    %32 = arith.truncf %31 : vector<16x32xf32> to vector<16x32xbf16>
    %c0_14 = arith.constant 0 : index
    %c0_15 = arith.constant 0 : index
    %33 = vector.load %arg6[%c0_14, %c0_15] : memref<16x32xbf16, #tpu.memory_space<vmem>>, vector<16x32xbf16>
    tpu.vector_store %arg6[%c0_14, %c0_15], %32 {strides = array<i32>} : memref<16x32xbf16, #tpu.memory_space<vmem>>, vector<16x32xbf16>,
    %34 = vector.extract_strided_slice %30 {offsets = [0, 32], sizes = [16, 32], strides = [1, 1]} : vector<16x96xf32> to vector<16x32xf32>
    %35 = arith.truncf %34 : vector<16x32xf32> to vector<16x32xbf16>
    %c0_16 = arith.constant 0 : index
    %c0_17 = arith.constant 0 : index
    %36 = vector.load %arg7[%c0_16, %c0_17] : memref<16x32xbf16, #tpu.memory_space<vmem>>, vector<16x32xbf16>
    tpu.vector_store %arg7[%c0_16, %c0_17], %35 {strides = array<i32>} : memref<16x32xbf16, #tpu.memory_space<vmem>>, vector<16x32xbf16>,
    %37 = vector.extract_strided_slice %30 {offsets = [0, 64], sizes = [16, 32], strides = [1, 1]} : vector<16x96xf32> to vector<16x32xf32>
    %38 = arith.truncf %37 : vector<16x32xf32> to vector<16x32xbf16>
    %c0_18 = arith.constant 0 : index
    %c0_19 = arith.constant 0 : index
    %39 = vector.load %arg8[%c0_18, %c0_19] : memref<16x32xbf16, #tpu.memory_space<vmem>>, vector<16x32xbf16>
    tpu.vector_store %arg8[%c0_18, %c0_19], %38 {strides = array<i32>} : memref<16x32xbf16, #tpu.memory_space<vmem>>, vector<16x32xbf16>,
    return
  }
  func.func @transform_0(%arg0: i32) -> (i32, i32) {
    %c0_i32 = arith.constant 0 : i32
    %c0_i32_0 = arith.constant 0 : i32
    return %arg0, %c0_i32 : i32, i32
  }
  func.func @transform_1(%arg0: i32) -> (i32, i32) {
    %c0_i32 = arith.constant 0 : i32
    %c0_i32_0 = arith.constant 0 : i32
    %c0_i32_1 = arith.constant 0 : i32
    return %c0_i32, %c0_i32_0 : i32, i32
  }
  func.func @transform_2(%arg0: i32) -> (i32, i32) {
    %c0_i32 = arith.constant 0 : i32
    %c0_i32_0 = arith.constant 0 : i32
    %c0_i32_1 = arith.constant 0 : i32
    return %c0_i32, %c0_i32_0 : i32, i32
  }
  func.func @transform_3(%arg0: i32) -> (i32, i32) {
    %c0_i32 = arith.constant 0 : i32
    %c0_i32_0 = arith.constant 0 : i32
    %c0_i32_1 = arith.constant 0 : i32
    return %c0_i32, %c0_i32_0 : i32, i32
  }
  func.func @transform_4(%arg0: i32) -> (i32, i32) {
    %c0_i32 = arith.constant 0 : i32
    %c0_i32_0 = arith.constant 0 : i32
    %c0_i32_1 = arith.constant 0 : i32
    return %c0_i32, %c0_i32_0 : i32, i32
  }
  func.func @transform_5(%arg0: i32) -> (i32, i32) {
    %c0_i32 = arith.constant 0 : i32
    %c0_i32_0 = arith.constant 0 : i32
    return %arg0, %c0_i32 : i32, i32
  }
  func.func @transform_6(%arg0: i32) -> (i32, i32) {
    %c0_i32 = arith.constant 0 : i32
    %c0_i32_0 = arith.constant 0 : i32
    return %arg0, %c0_i32 : i32, i32
  }
  func.func @transform_7(%arg0: i32) -> (i32, i32) {
    %c0_i32 = arith.constant 0 : i32
    %c0_i32_0 = arith.constant 0 : i32
    return %arg0, %c0_i32 : i32, i32
  }
}

module attributes {stable_mosaic.version = 11 : i64} {
  func.func @_flash_attn_kernel(%arg0: i32, %arg1: i32, %arg2: i32, %arg3: memref<1x1x8xf32, #tpu.memory_space<vmem>>, %arg4: memref<1x8x32xbf16, #tpu.memory_space<vmem>>, %arg5: memref<1x8x32xbf16, #tpu.memory_space<vmem>>, %arg6: memref<1x8x32xbf16, #tpu.memory_space<vmem>>, %arg7: memref<1x8x32xbf16, #tpu.memory_space<vmem>>, %arg8: memref<4x8x1xf32, #tpu.memory_space<vmem>>, %arg9: memref<4x8x1xf32, #tpu.memory_space<vmem>>, %arg10: memref<4x8x8xf32, #tpu.memory_space<vmem>>) attributes {dimension_semantics = [#tpu.dimension_semantics<parallel>, #tpu.dimension_semantics<parallel>, #tpu.dimension_semantics<arbitrary>], iteration_bounds = array<i64: 2, 1, 1>, scalar_prefetch = 0 : i64, scratch_operands = 3 : i64, tpu.core_type = #tpu.core_type<tc>, window_params = [{transform_indices = @transform_0, window_bounds = array<i64: 1, 1, 8>}, {transform_indices = @transform_1, window_bounds = array<i64: 1, 8, 32>}, {transform_indices = @transform_2, window_bounds = array<i64: 1, 8, 32>}, {transform_indices = @transform_3, window_bounds = array<i64: 1, 8, 32>}, {transform_indices = @transform_4, window_bounds = array<i64: 1, 8, 32>}]} {
    %c0_i32 = arith.constant 0 : i32
    %0 = arith.cmpi eq, %arg2, %c0_i32 : i32
    %1 = arith.extui %0 : i1 to i32
    %c0_i32_0 = arith.constant 0 : i32
    %2 = arith.cmpi ne, %1, %c0_i32_0 : i32
    scf.if %2 {
      %cst_98 = arith.constant 0xFF800000 : f32
      %166 = vector.broadcast %cst_98 : f32 to vector<4x8x1xf32>
      %c0_99 = arith.constant 0 : index
      %c0_100 = arith.constant 0 : index
      %c0_101 = arith.constant 0 : index
      %167 = vector.load %arg8[%c0_99, %c0_100, %c0_101] : memref<4x8x1xf32, #tpu.memory_space<vmem>>, vector<4x8x1xf32>
      tpu.vector_store %arg8[%c0_99, %c0_100, %c0_101], %166 {strides = array<i32>} : memref<4x8x1xf32, #tpu.memory_space<vmem>>, vector<4x8x1xf32>,
      %cst_102 = arith.constant 0.000000e+00 : f32
      %168 = vector.broadcast %cst_102 : f32 to vector<4x8x1xf32>
      %c0_103 = arith.constant 0 : index
      %c0_104 = arith.constant 0 : index
      %c0_105 = arith.constant 0 : index
      %169 = vector.load %arg9[%c0_103, %c0_104, %c0_105] : memref<4x8x1xf32, #tpu.memory_space<vmem>>, vector<4x8x1xf32>
      tpu.vector_store %arg9[%c0_103, %c0_104, %c0_105], %168 {strides = array<i32>} : memref<4x8x1xf32, #tpu.memory_space<vmem>>, vector<4x8x1xf32>,
      %cst_106 = arith.constant 0.000000e+00 : f32
      %170 = vector.broadcast %cst_106 : f32 to vector<4x8x8xf32>
      %c0_107 = arith.constant 0 : index
      %c0_108 = arith.constant 0 : index
      %c0_109 = arith.constant 0 : index
      %171 = vector.load %arg10[%c0_107, %c0_108, %c0_109] : memref<4x8x8xf32, #tpu.memory_space<vmem>>, vector<4x8x8xf32>
      tpu.vector_store %arg10[%c0_107, %c0_108, %c0_109], %170 {strides = array<i32>} : memref<4x8x8xf32, #tpu.memory_space<vmem>>, vector<4x8x8xf32>,
    } else {
    }
    %c0 = arith.constant 0 : index
    %c0_1 = arith.constant 0 : index
    %c0_2 = arith.constant 0 : index
    %3 = vector.load %arg4[%c0, %c0_1, %c0_2] : memref<1x8x32xbf16, #tpu.memory_space<vmem>>, vector<1x8x32xbf16>
    %4 = vector.shape_cast %3 : vector<1x8x32xbf16> to vector<8x32xbf16>
    %c0_3 = arith.constant 0 : index
    %c0_4 = arith.constant 0 : index
    %c0_5 = arith.constant 0 : index
    %5 = vector.load %arg5[%c0_3, %c0_4, %c0_5] : memref<1x8x32xbf16, #tpu.memory_space<vmem>>, vector<1x8x32xbf16>
    %6 = vector.shape_cast %5 : vector<1x8x32xbf16> to vector<8x32xbf16>
    %c0_6 = arith.constant 0 : index
    %c0_7 = arith.constant 0 : index
    %c0_8 = arith.constant 0 : index
    %7 = vector.load %arg6[%c0_6, %c0_7, %c0_8] : memref<1x8x32xbf16, #tpu.memory_space<vmem>>, vector<1x8x32xbf16>
    %8 = vector.shape_cast %7 : vector<1x8x32xbf16> to vector<8x32xbf16>
    %c0_9 = arith.constant 0 : index
    %c0_10 = arith.constant 0 : index
    %c0_11 = arith.constant 0 : index
    %9 = vector.load %arg3[%c0_9, %c0_10, %c0_11] : memref<1x1x8xf32, #tpu.memory_space<vmem>>, vector<1x1x8xf32>
    %10 = vector.shape_cast %9 : vector<1x1x8xf32> to vector<1x8xf32>
    %11 = vector.extract_strided_slice %4 {offsets = [0, 0], sizes = [8, 8], strides = [1, 1]} : vector<8x32xbf16> to vector<8x8xbf16>
    %12 = vector.extract_strided_slice %6 {offsets = [0, 0], sizes = [8, 8], strides = [1, 1]} : vector<8x32xbf16> to vector<8x8xbf16>
    %cst = arith.constant dense<0.000000e+00> : vector<8x8xf32>
    %13 = tpu.matmul %11, %12, %cst {dimension_numbers = #tpu.dot_dimension_numbers<[1], [1], [0], [0], [0, 0, 1, 0], [], []>} : vector<8x8xbf16>, vector<8x8xbf16>, vector<8x8xf32> -> vector<8x8xf32>
    %14 = vector.broadcast %10 : vector<1x8xf32> to vector<8x8xf32>
    %15 = arith.addf %13, %14 : vector<8x8xf32>
    %c0_12 = arith.constant 0 : index
    %c0_13 = arith.constant 0 : index
    %c0_14 = arith.constant 0 : index
    %16 = vector.load %arg8[%c0_12, %c0_13, %c0_14] : memref<4x8x1xf32, #tpu.memory_space<vmem>>, vector<1x8x1xf32>
    %17 = vector.shape_cast %16 : vector<1x8x1xf32> to vector<8x1xf32>
    %cst_15 = arith.constant dense<0xFF800000> : vector<8xf32>
    %18 = vector.multi_reduction <maximumf>, %15, %cst_15 [1] : vector<8x8xf32> to vector<8xf32>
    %19 = vector.shape_cast %18 : vector<8xf32> to vector<8x1xf32>
    %20 = arith.maximumf %17, %19 : vector<8x1xf32>
    %21 = arith.subf %17, %20 : vector<8x1xf32>
    %22 = math.exp %21 : vector<8x1xf32>
    %23 = vector.broadcast %20 : vector<8x1xf32> to vector<8x8xf32>
    %24 = arith.subf %15, %23 : vector<8x8xf32>
    %25 = math.exp %24 : vector<8x8xf32>
    %c0_16 = arith.constant 0 : index
    %c0_17 = arith.constant 0 : index
    %c0_18 = arith.constant 0 : index
    %26 = vector.load %arg9[%c0_16, %c0_17, %c0_18] : memref<4x8x1xf32, #tpu.memory_space<vmem>>, vector<1x8x1xf32>
    %27 = vector.shape_cast %26 : vector<1x8x1xf32> to vector<8x1xf32>
    %28 = arith.mulf %22, %27 : vector<8x1xf32>
    %cst_19 = arith.constant dense<0.000000e+00> : vector<8xf32>
    %29 = vector.multi_reduction <add>, %25, %cst_19 [1] : vector<8x8xf32> to vector<8xf32>
    %30 = vector.shape_cast %29 : vector<8xf32> to vector<8x1xf32>
    %31 = arith.addf %28, %30 : vector<8x1xf32>
    %c0_20 = arith.constant 0 : index
    %c0_21 = arith.constant 0 : index
    %c0_22 = arith.constant 0 : index
    %32 = vector.load %arg9[%c0_20, %c0_21, %c0_22] : memref<4x8x1xf32, #tpu.memory_space<vmem>>, vector<1x8x1xf32>
    %33 = vector.shape_cast %32 : vector<1x8x1xf32> to vector<8x1xf32>
    %34 = vector.shape_cast %31 : vector<8x1xf32> to vector<1x8x1xf32>
    tpu.vector_store %arg9[%c0_20, %c0_21, %c0_22], %34 {strides = array<i32>} : memref<4x8x1xf32, #tpu.memory_space<vmem>>, vector<1x8x1xf32>,
    %c0_23 = arith.constant 0 : index
    %c0_24 = arith.constant 0 : index
    %c0_25 = arith.constant 0 : index
    %35 = vector.load %arg10[%c0_23, %c0_24, %c0_25] : memref<4x8x8xf32, #tpu.memory_space<vmem>>, vector<1x8x8xf32>
    %36 = vector.shape_cast %35 : vector<1x8x8xf32> to vector<8x8xf32>
    %37 = vector.broadcast %22 : vector<8x1xf32> to vector<8x8xf32>
    %38 = arith.mulf %37, %36 : vector<8x8xf32>
    %39 = arith.truncf %25 : vector<8x8xf32> to vector<8x8xbf16>
    %40 = vector.extract_strided_slice %8 {offsets = [0, 0], sizes = [8, 8], strides = [1, 1]} : vector<8x32xbf16> to vector<8x8xbf16>
    %cst_26 = arith.constant dense<0.000000e+00> : vector<8x8xf32>
    %41 = tpu.matmul %39, %40, %cst_26 {dimension_numbers = #tpu.dot_dimension_numbers<[1], [0], [0], [1], [0, 0, 1, 1], [], []>} : vector<8x8xbf16>, vector<8x8xbf16>, vector<8x8xf32> -> vector<8x8xf32>
    %42 = arith.addf %38, %41 : vector<8x8xf32>
    %c0_27 = arith.constant 0 : index
    %c0_28 = arith.constant 0 : index
    %c0_29 = arith.constant 0 : index
    %43 = vector.load %arg10[%c0_27, %c0_28, %c0_29] : memref<4x8x8xf32, #tpu.memory_space<vmem>>, vector<1x8x8xf32>
    %44 = vector.shape_cast %43 : vector<1x8x8xf32> to vector<8x8xf32>
    %45 = vector.shape_cast %42 : vector<8x8xf32> to vector<1x8x8xf32>
    tpu.vector_store %arg10[%c0_27, %c0_28, %c0_29], %45 {strides = array<i32>} : memref<4x8x8xf32, #tpu.memory_space<vmem>>, vector<1x8x8xf32>,
    %c0_30 = arith.constant 0 : index
    %c0_31 = arith.constant 0 : index
    %c0_32 = arith.constant 0 : index
    %46 = vector.load %arg8[%c0_30, %c0_31, %c0_32] : memref<4x8x1xf32, #tpu.memory_space<vmem>>, vector<1x8x1xf32>
    %47 = vector.shape_cast %46 : vector<1x8x1xf32> to vector<8x1xf32>
    %48 = vector.shape_cast %20 : vector<8x1xf32> to vector<1x8x1xf32>
    tpu.vector_store %arg8[%c0_30, %c0_31, %c0_32], %48 {strides = array<i32>} : memref<4x8x1xf32, #tpu.memory_space<vmem>>, vector<1x8x1xf32>,
    %49 = vector.extract_strided_slice %4 {offsets = [0, 8], sizes = [8, 8], strides = [1, 1]} : vector<8x32xbf16> to vector<8x8xbf16>
    %50 = vector.extract_strided_slice %6 {offsets = [0, 8], sizes = [8, 8], strides = [1, 1]} : vector<8x32xbf16> to vector<8x8xbf16>
    %cst_33 = arith.constant dense<0.000000e+00> : vector<8x8xf32>
    %51 = tpu.matmul %49, %50, %cst_33 {dimension_numbers = #tpu.dot_dimension_numbers<[1], [1], [0], [0], [0, 0, 1, 0], [], []>} : vector<8x8xbf16>, vector<8x8xbf16>, vector<8x8xf32> -> vector<8x8xf32>
    %52 = vector.broadcast %10 : vector<1x8xf32> to vector<8x8xf32>
    %53 = arith.addf %51, %52 : vector<8x8xf32>
    %c1 = arith.constant 1 : index
    %c0_34 = arith.constant 0 : index
    %c0_35 = arith.constant 0 : index
    %54 = vector.load %arg8[%c1, %c0_34, %c0_35] : memref<4x8x1xf32, #tpu.memory_space<vmem>>, vector<1x8x1xf32>
    %55 = vector.shape_cast %54 : vector<1x8x1xf32> to vector<8x1xf32>
    %cst_36 = arith.constant dense<0xFF800000> : vector<8xf32>
    %56 = vector.multi_reduction <maximumf>, %53, %cst_36 [1] : vector<8x8xf32> to vector<8xf32>
    %57 = vector.shape_cast %56 : vector<8xf32> to vector<8x1xf32>
    %58 = arith.maximumf %55, %57 : vector<8x1xf32>
    %59 = arith.subf %55, %58 : vector<8x1xf32>
    %60 = math.exp %59 : vector<8x1xf32>
    %61 = vector.broadcast %58 : vector<8x1xf32> to vector<8x8xf32>
    %62 = arith.subf %53, %61 : vector<8x8xf32>
    %63 = math.exp %62 : vector<8x8xf32>
    %c1_37 = arith.constant 1 : index
    %c0_38 = arith.constant 0 : index
    %c0_39 = arith.constant 0 : index
    %64 = vector.load %arg9[%c1_37, %c0_38, %c0_39] : memref<4x8x1xf32, #tpu.memory_space<vmem>>, vector<1x8x1xf32>
    %65 = vector.shape_cast %64 : vector<1x8x1xf32> to vector<8x1xf32>
    %66 = arith.mulf %60, %65 : vector<8x1xf32>
    %cst_40 = arith.constant dense<0.000000e+00> : vector<8xf32>
    %67 = vector.multi_reduction <add>, %63, %cst_40 [1] : vector<8x8xf32> to vector<8xf32>
    %68 = vector.shape_cast %67 : vector<8xf32> to vector<8x1xf32>
    %69 = arith.addf %66, %68 : vector<8x1xf32>
    %c1_41 = arith.constant 1 : index
    %c0_42 = arith.constant 0 : index
    %c0_43 = arith.constant 0 : index
    %70 = vector.load %arg9[%c1_41, %c0_42, %c0_43] : memref<4x8x1xf32, #tpu.memory_space<vmem>>, vector<1x8x1xf32>
    %71 = vector.shape_cast %70 : vector<1x8x1xf32> to vector<8x1xf32>
    %72 = vector.shape_cast %69 : vector<8x1xf32> to vector<1x8x1xf32>
    tpu.vector_store %arg9[%c1_41, %c0_42, %c0_43], %72 {strides = array<i32>} : memref<4x8x1xf32, #tpu.memory_space<vmem>>, vector<1x8x1xf32>,
    %c1_44 = arith.constant 1 : index
    %c0_45 = arith.constant 0 : index
    %c0_46 = arith.constant 0 : index
    %73 = vector.load %arg10[%c1_44, %c0_45, %c0_46] : memref<4x8x8xf32, #tpu.memory_space<vmem>>, vector<1x8x8xf32>
    %74 = vector.shape_cast %73 : vector<1x8x8xf32> to vector<8x8xf32>
    %75 = vector.broadcast %60 : vector<8x1xf32> to vector<8x8xf32>
    %76 = arith.mulf %75, %74 : vector<8x8xf32>
    %77 = arith.truncf %63 : vector<8x8xf32> to vector<8x8xbf16>
    %78 = vector.extract_strided_slice %8 {offsets = [0, 8], sizes = [8, 8], strides = [1, 1]} : vector<8x32xbf16> to vector<8x8xbf16>
    %cst_47 = arith.constant dense<0.000000e+00> : vector<8x8xf32>
    %79 = tpu.matmul %77, %78, %cst_47 {dimension_numbers = #tpu.dot_dimension_numbers<[1], [0], [0], [1], [0, 0, 1, 1], [], []>} : vector<8x8xbf16>, vector<8x8xbf16>, vector<8x8xf32> -> vector<8x8xf32>
    %80 = arith.addf %76, %79 : vector<8x8xf32>
    %c1_48 = arith.constant 1 : index
    %c0_49 = arith.constant 0 : index
    %c0_50 = arith.constant 0 : index
    %81 = vector.load %arg10[%c1_48, %c0_49, %c0_50] : memref<4x8x8xf32, #tpu.memory_space<vmem>>, vector<1x8x8xf32>
    %82 = vector.shape_cast %81 : vector<1x8x8xf32> to vector<8x8xf32>
    %83 = vector.shape_cast %80 : vector<8x8xf32> to vector<1x8x8xf32>
    tpu.vector_store %arg10[%c1_48, %c0_49, %c0_50], %83 {strides = array<i32>} : memref<4x8x8xf32, #tpu.memory_space<vmem>>, vector<1x8x8xf32>,
    %c1_51 = arith.constant 1 : index
    %c0_52 = arith.constant 0 : index
    %c0_53 = arith.constant 0 : index
    %84 = vector.load %arg8[%c1_51, %c0_52, %c0_53] : memref<4x8x1xf32, #tpu.memory_space<vmem>>, vector<1x8x1xf32>
    %85 = vector.shape_cast %84 : vector<1x8x1xf32> to vector<8x1xf32>
    %86 = vector.shape_cast %58 : vector<8x1xf32> to vector<1x8x1xf32>
    tpu.vector_store %arg8[%c1_51, %c0_52, %c0_53], %86 {strides = array<i32>} : memref<4x8x1xf32, #tpu.memory_space<vmem>>, vector<1x8x1xf32>,
    %87 = vector.extract_strided_slice %4 {offsets = [0, 16], sizes = [8, 8], strides = [1, 1]} : vector<8x32xbf16> to vector<8x8xbf16>
    %88 = vector.extract_strided_slice %6 {offsets = [0, 16], sizes = [8, 8], strides = [1, 1]} : vector<8x32xbf16> to vector<8x8xbf16>
    %cst_54 = arith.constant dense<0.000000e+00> : vector<8x8xf32>
    %89 = tpu.matmul %87, %88, %cst_54 {dimension_numbers = #tpu.dot_dimension_numbers<[1], [1], [0], [0], [0, 0, 1, 0], [], []>} : vector<8x8xbf16>, vector<8x8xbf16>, vector<8x8xf32> -> vector<8x8xf32>
    %90 = vector.broadcast %10 : vector<1x8xf32> to vector<8x8xf32>
    %91 = arith.addf %89, %90 : vector<8x8xf32>
    %c2 = arith.constant 2 : index
    %c0_55 = arith.constant 0 : index
    %c0_56 = arith.constant 0 : index
    %92 = vector.load %arg8[%c2, %c0_55, %c0_56] : memref<4x8x1xf32, #tpu.memory_space<vmem>>, vector<1x8x1xf32>
    %93 = vector.shape_cast %92 : vector<1x8x1xf32> to vector<8x1xf32>
    %cst_57 = arith.constant dense<0xFF800000> : vector<8xf32>
    %94 = vector.multi_reduction <maximumf>, %91, %cst_57 [1] : vector<8x8xf32> to vector<8xf32>
    %95 = vector.shape_cast %94 : vector<8xf32> to vector<8x1xf32>
    %96 = arith.maximumf %93, %95 : vector<8x1xf32>
    %97 = arith.subf %93, %96 : vector<8x1xf32>
    %98 = math.exp %97 : vector<8x1xf32>
    %99 = vector.broadcast %96 : vector<8x1xf32> to vector<8x8xf32>
    %100 = arith.subf %91, %99 : vector<8x8xf32>
    %101 = math.exp %100 : vector<8x8xf32>
    %c2_58 = arith.constant 2 : index
    %c0_59 = arith.constant 0 : index
    %c0_60 = arith.constant 0 : index
    %102 = vector.load %arg9[%c2_58, %c0_59, %c0_60] : memref<4x8x1xf32, #tpu.memory_space<vmem>>, vector<1x8x1xf32>
    %103 = vector.shape_cast %102 : vector<1x8x1xf32> to vector<8x1xf32>
    %104 = arith.mulf %98, %103 : vector<8x1xf32>
    %cst_61 = arith.constant dense<0.000000e+00> : vector<8xf32>
    %105 = vector.multi_reduction <add>, %101, %cst_61 [1] : vector<8x8xf32> to vector<8xf32>
    %106 = vector.shape_cast %105 : vector<8xf32> to vector<8x1xf32>
    %107 = arith.addf %104, %106 : vector<8x1xf32>
    %c2_62 = arith.constant 2 : index
    %c0_63 = arith.constant 0 : index
    %c0_64 = arith.constant 0 : index
    %108 = vector.load %arg9[%c2_62, %c0_63, %c0_64] : memref<4x8x1xf32, #tpu.memory_space<vmem>>, vector<1x8x1xf32>
    %109 = vector.shape_cast %108 : vector<1x8x1xf32> to vector<8x1xf32>
    %110 = vector.shape_cast %107 : vector<8x1xf32> to vector<1x8x1xf32>
    tpu.vector_store %arg9[%c2_62, %c0_63, %c0_64], %110 {strides = array<i32>} : memref<4x8x1xf32, #tpu.memory_space<vmem>>, vector<1x8x1xf32>,
    %c2_65 = arith.constant 2 : index
    %c0_66 = arith.constant 0 : index
    %c0_67 = arith.constant 0 : index
    %111 = vector.load %arg10[%c2_65, %c0_66, %c0_67] : memref<4x8x8xf32, #tpu.memory_space<vmem>>, vector<1x8x8xf32>
    %112 = vector.shape_cast %111 : vector<1x8x8xf32> to vector<8x8xf32>
    %113 = vector.broadcast %98 : vector<8x1xf32> to vector<8x8xf32>
    %114 = arith.mulf %113, %112 : vector<8x8xf32>
    %115 = arith.truncf %101 : vector<8x8xf32> to vector<8x8xbf16>
    %116 = vector.extract_strided_slice %8 {offsets = [0, 16], sizes = [8, 8], strides = [1, 1]} : vector<8x32xbf16> to vector<8x8xbf16>
    %cst_68 = arith.constant dense<0.000000e+00> : vector<8x8xf32>
    %117 = tpu.matmul %115, %116, %cst_68 {dimension_numbers = #tpu.dot_dimension_numbers<[1], [0], [0], [1], [0, 0, 1, 1], [], []>} : vector<8x8xbf16>, vector<8x8xbf16>, vector<8x8xf32> -> vector<8x8xf32>
    %118 = arith.addf %114, %117 : vector<8x8xf32>
    %c2_69 = arith.constant 2 : index
    %c0_70 = arith.constant 0 : index
    %c0_71 = arith.constant 0 : index
    %119 = vector.load %arg10[%c2_69, %c0_70, %c0_71] : memref<4x8x8xf32, #tpu.memory_space<vmem>>, vector<1x8x8xf32>
    %120 = vector.shape_cast %119 : vector<1x8x8xf32> to vector<8x8xf32>
    %121 = vector.shape_cast %118 : vector<8x8xf32> to vector<1x8x8xf32>
    tpu.vector_store %arg10[%c2_69, %c0_70, %c0_71], %121 {strides = array<i32>} : memref<4x8x8xf32, #tpu.memory_space<vmem>>, vector<1x8x8xf32>,
    %c2_72 = arith.constant 2 : index
    %c0_73 = arith.constant 0 : index
    %c0_74 = arith.constant 0 : index
    %122 = vector.load %arg8[%c2_72, %c0_73, %c0_74] : memref<4x8x1xf32, #tpu.memory_space<vmem>>, vector<1x8x1xf32>
    %123 = vector.shape_cast %122 : vector<1x8x1xf32> to vector<8x1xf32>
    %124 = vector.shape_cast %96 : vector<8x1xf32> to vector<1x8x1xf32>
    tpu.vector_store %arg8[%c2_72, %c0_73, %c0_74], %124 {strides = array<i32>} : memref<4x8x1xf32, #tpu.memory_space<vmem>>, vector<1x8x1xf32>,
    %125 = vector.extract_strided_slice %4 {offsets = [0, 24], sizes = [8, 8], strides = [1, 1]} : vector<8x32xbf16> to vector<8x8xbf16>
    %126 = vector.extract_strided_slice %6 {offsets = [0, 24], sizes = [8, 8], strides = [1, 1]} : vector<8x32xbf16> to vector<8x8xbf16>
    %cst_75 = arith.constant dense<0.000000e+00> : vector<8x8xf32>
    %127 = tpu.matmul %125, %126, %cst_75 {dimension_numbers = #tpu.dot_dimension_numbers<[1], [1], [0], [0], [0, 0, 1, 0], [], []>} : vector<8x8xbf16>, vector<8x8xbf16>, vector<8x8xf32> -> vector<8x8xf32>
    %128 = vector.broadcast %10 : vector<1x8xf32> to vector<8x8xf32>
    %129 = arith.addf %127, %128 : vector<8x8xf32>
    %c3 = arith.constant 3 : index
    %c0_76 = arith.constant 0 : index
    %c0_77 = arith.constant 0 : index
    %130 = vector.load %arg8[%c3, %c0_76, %c0_77] : memref<4x8x1xf32, #tpu.memory_space<vmem>>, vector<1x8x1xf32>
    %131 = vector.shape_cast %130 : vector<1x8x1xf32> to vector<8x1xf32>
    %cst_78 = arith.constant dense<0xFF800000> : vector<8xf32>
    %132 = vector.multi_reduction <maximumf>, %129, %cst_78 [1] : vector<8x8xf32> to vector<8xf32>
    %133 = vector.shape_cast %132 : vector<8xf32> to vector<8x1xf32>
    %134 = arith.maximumf %131, %133 : vector<8x1xf32>
    %135 = arith.subf %131, %134 : vector<8x1xf32>
    %136 = math.exp %135 : vector<8x1xf32>
    %137 = vector.broadcast %134 : vector<8x1xf32> to vector<8x8xf32>
    %138 = arith.subf %129, %137 : vector<8x8xf32>
    %139 = math.exp %138 : vector<8x8xf32>
    %c3_79 = arith.constant 3 : index
    %c0_80 = arith.constant 0 : index
    %c0_81 = arith.constant 0 : index
    %140 = vector.load %arg9[%c3_79, %c0_80, %c0_81] : memref<4x8x1xf32, #tpu.memory_space<vmem>>, vector<1x8x1xf32>
    %141 = vector.shape_cast %140 : vector<1x8x1xf32> to vector<8x1xf32>
    %142 = arith.mulf %136, %141 : vector<8x1xf32>
    %cst_82 = arith.constant dense<0.000000e+00> : vector<8xf32>
    %143 = vector.multi_reduction <add>, %139, %cst_82 [1] : vector<8x8xf32> to vector<8xf32>
    %144 = vector.shape_cast %143 : vector<8xf32> to vector<8x1xf32>
    %145 = arith.addf %142, %144 : vector<8x1xf32>
    %c3_83 = arith.constant 3 : index
    %c0_84 = arith.constant 0 : index
    %c0_85 = arith.constant 0 : index
    %146 = vector.load %arg9[%c3_83, %c0_84, %c0_85] : memref<4x8x1xf32, #tpu.memory_space<vmem>>, vector<1x8x1xf32>
    %147 = vector.shape_cast %146 : vector<1x8x1xf32> to vector<8x1xf32>
    %148 = vector.shape_cast %145 : vector<8x1xf32> to vector<1x8x1xf32>
    tpu.vector_store %arg9[%c3_83, %c0_84, %c0_85], %148 {strides = array<i32>} : memref<4x8x1xf32, #tpu.memory_space<vmem>>, vector<1x8x1xf32>,
    %c3_86 = arith.constant 3 : index
    %c0_87 = arith.constant 0 : index
    %c0_88 = arith.constant 0 : index
    %149 = vector.load %arg10[%c3_86, %c0_87, %c0_88] : memref<4x8x8xf32, #tpu.memory_space<vmem>>, vector<1x8x8xf32>
    %150 = vector.shape_cast %149 : vector<1x8x8xf32> to vector<8x8xf32>
    %151 = vector.broadcast %136 : vector<8x1xf32> to vector<8x8xf32>
    %152 = arith.mulf %151, %150 : vector<8x8xf32>
    %153 = arith.truncf %139 : vector<8x8xf32> to vector<8x8xbf16>
    %154 = vector.extract_strided_slice %8 {offsets = [0, 24], sizes = [8, 8], strides = [1, 1]} : vector<8x32xbf16> to vector<8x8xbf16>
    %cst_89 = arith.constant dense<0.000000e+00> : vector<8x8xf32>
    %155 = tpu.matmul %153, %154, %cst_89 {dimension_numbers = #tpu.dot_dimension_numbers<[1], [0], [0], [1], [0, 0, 1, 1], [], []>} : vector<8x8xbf16>, vector<8x8xbf16>, vector<8x8xf32> -> vector<8x8xf32>
    %156 = arith.addf %152, %155 : vector<8x8xf32>
    %c3_90 = arith.constant 3 : index
    %c0_91 = arith.constant 0 : index
    %c0_92 = arith.constant 0 : index
    %157 = vector.load %arg10[%c3_90, %c0_91, %c0_92] : memref<4x8x8xf32, #tpu.memory_space<vmem>>, vector<1x8x8xf32>
    %158 = vector.shape_cast %157 : vector<1x8x8xf32> to vector<8x8xf32>
    %159 = vector.shape_cast %156 : vector<8x8xf32> to vector<1x8x8xf32>
    tpu.vector_store %arg10[%c3_90, %c0_91, %c0_92], %159 {strides = array<i32>} : memref<4x8x8xf32, #tpu.memory_space<vmem>>, vector<1x8x8xf32>,
    %c3_93 = arith.constant 3 : index
    %c0_94 = arith.constant 0 : index
    %c0_95 = arith.constant 0 : index
    %160 = vector.load %arg8[%c3_93, %c0_94, %c0_95] : memref<4x8x1xf32, #tpu.memory_space<vmem>>, vector<1x8x1xf32>
    %161 = vector.shape_cast %160 : vector<1x8x1xf32> to vector<8x1xf32>
    %162 = vector.shape_cast %134 : vector<8x1xf32> to vector<1x8x1xf32>
    tpu.vector_store %arg8[%c3_93, %c0_94, %c0_95], %162 {strides = array<i32>} : memref<4x8x1xf32, #tpu.memory_space<vmem>>, vector<1x8x1xf32>,
    %c0_i32_96 = arith.constant 0 : i32
    %163 = arith.cmpi eq, %arg2, %c0_i32_96 : i32
    %164 = arith.extui %163 : i1 to i32
    %c0_i32_97 = arith.constant 0 : i32
    %165 = arith.cmpi ne, %164, %c0_i32_97 : i32
    scf.if %165 {
      %c0_98 = arith.constant 0 : index
      %c0_99 = arith.constant 0 : index
      %c0_100 = arith.constant 0 : index
      %166 = vector.load %arg10[%c0_98, %c0_99, %c0_100] : memref<4x8x8xf32, #tpu.memory_space<vmem>>, vector<1x8x8xf32>
      %167 = vector.shape_cast %166 : vector<1x8x8xf32> to vector<8x8xf32>
      %c0_101 = arith.constant 0 : index
      %c0_102 = arith.constant 0 : index
      %c0_103 = arith.constant 0 : index
      %168 = vector.load %arg9[%c0_101, %c0_102, %c0_103] : memref<4x8x1xf32, #tpu.memory_space<vmem>>, vector<1x8x1xf32>
      %169 = vector.shape_cast %168 : vector<1x8x1xf32> to vector<8x1xf32>
      %170 = tpu.reciprocal %169 {approx = true} : vector<8x1xf32> -> vector<8x1xf32>
      %171 = vector.broadcast %170 : vector<8x1xf32> to vector<8x8xf32>
      %172 = arith.mulf %167, %171 : vector<8x8xf32>
      %173 = arith.truncf %172 : vector<8x8xf32> to vector<8x8xbf16>
      %c0_104 = arith.constant 0 : index
      %c0_105 = arith.constant 0 : index
      %c0_106 = arith.constant 0 : index
      %174 = vector.load %arg7[%c0_104, %c0_105, %c0_106] : memref<1x8x32xbf16, #tpu.memory_space<vmem>>, vector<1x8x8xbf16>
      %175 = vector.shape_cast %174 : vector<1x8x8xbf16> to vector<8x8xbf16>
      %176 = vector.shape_cast %173 : vector<8x8xbf16> to vector<1x8x8xbf16>
      tpu.vector_store %arg7[%c0_104, %c0_105, %c0_106], %176 {strides = array<i32>} : memref<1x8x32xbf16, #tpu.memory_space<vmem>>, vector<1x8x8xbf16>,
      %c1_107 = arith.constant 1 : index
      %c0_108 = arith.constant 0 : index
      %c0_109 = arith.constant 0 : index
      %177 = vector.load %arg10[%c1_107, %c0_108, %c0_109] : memref<4x8x8xf32, #tpu.memory_space<vmem>>, vector<1x8x8xf32>
      %178 = vector.shape_cast %177 : vector<1x8x8xf32> to vector<8x8xf32>
      %c1_110 = arith.constant 1 : index
      %c0_111 = arith.constant 0 : index
      %c0_112 = arith.constant 0 : index
      %179 = vector.load %arg9[%c1_110, %c0_111, %c0_112] : memref<4x8x1xf32, #tpu.memory_space<vmem>>, vector<1x8x1xf32>
      %180 = vector.shape_cast %179 : vector<1x8x1xf32> to vector<8x1xf32>
      %181 = tpu.reciprocal %180 {approx = true} : vector<8x1xf32> -> vector<8x1xf32>
      %182 = vector.broadcast %181 : vector<8x1xf32> to vector<8x8xf32>
      %183 = arith.mulf %178, %182 : vector<8x8xf32>
      %184 = arith.truncf %183 : vector<8x8xf32> to vector<8x8xbf16>
      %c0_113 = arith.constant 0 : index
      %c0_114 = arith.constant 0 : index
      %c8 = arith.constant 8 : index
      %185 = vector.load %arg7[%c0_113, %c0_114, %c8] : memref<1x8x32xbf16, #tpu.memory_space<vmem>>, vector<1x8x8xbf16>
      %186 = vector.shape_cast %185 : vector<1x8x8xbf16> to vector<8x8xbf16>
      %187 = vector.shape_cast %184 : vector<8x8xbf16> to vector<1x8x8xbf16>
      tpu.vector_store %arg7[%c0_113, %c0_114, %c8], %187 {strides = array<i32>} : memref<1x8x32xbf16, #tpu.memory_space<vmem>>, vector<1x8x8xbf16>,
      %c2_115 = arith.constant 2 : index
      %c0_116 = arith.constant 0 : index
      %c0_117 = arith.constant 0 : index
      %188 = vector.load %arg10[%c2_115, %c0_116, %c0_117] : memref<4x8x8xf32, #tpu.memory_space<vmem>>, vector<1x8x8xf32>
      %189 = vector.shape_cast %188 : vector<1x8x8xf32> to vector<8x8xf32>
      %c2_118 = arith.constant 2 : index
      %c0_119 = arith.constant 0 : index
      %c0_120 = arith.constant 0 : index
      %190 = vector.load %arg9[%c2_118, %c0_119, %c0_120] : memref<4x8x1xf32, #tpu.memory_space<vmem>>, vector<1x8x1xf32>
      %191 = vector.shape_cast %190 : vector<1x8x1xf32> to vector<8x1xf32>
      %192 = tpu.reciprocal %191 {approx = true} : vector<8x1xf32> -> vector<8x1xf32>
      %193 = vector.broadcast %192 : vector<8x1xf32> to vector<8x8xf32>
      %194 = arith.mulf %189, %193 : vector<8x8xf32>
      %195 = arith.truncf %194 : vector<8x8xf32> to vector<8x8xbf16>
      %c0_121 = arith.constant 0 : index
      %c0_122 = arith.constant 0 : index
      %c16 = arith.constant 16 : index
      %196 = vector.load %arg7[%c0_121, %c0_122, %c16] : memref<1x8x32xbf16, #tpu.memory_space<vmem>>, vector<1x8x8xbf16>
      %197 = vector.shape_cast %196 : vector<1x8x8xbf16> to vector<8x8xbf16>
      %198 = vector.shape_cast %195 : vector<8x8xbf16> to vector<1x8x8xbf16>
      tpu.vector_store %arg7[%c0_121, %c0_122, %c16], %198 {strides = array<i32>} : memref<1x8x32xbf16, #tpu.memory_space<vmem>>, vector<1x8x8xbf16>,
      %c3_123 = arith.constant 3 : index
      %c0_124 = arith.constant 0 : index
      %c0_125 = arith.constant 0 : index
      %199 = vector.load %arg10[%c3_123, %c0_124, %c0_125] : memref<4x8x8xf32, #tpu.memory_space<vmem>>, vector<1x8x8xf32>
      %200 = vector.shape_cast %199 : vector<1x8x8xf32> to vector<8x8xf32>
      %c3_126 = arith.constant 3 : index
      %c0_127 = arith.constant 0 : index
      %c0_128 = arith.constant 0 : index
      %201 = vector.load %arg9[%c3_126, %c0_127, %c0_128] : memref<4x8x1xf32, #tpu.memory_space<vmem>>, vector<1x8x1xf32>
      %202 = vector.shape_cast %201 : vector<1x8x1xf32> to vector<8x1xf32>
      %203 = tpu.reciprocal %202 {approx = true} : vector<8x1xf32> -> vector<8x1xf32>
      %204 = vector.broadcast %203 : vector<8x1xf32> to vector<8x8xf32>
      %205 = arith.mulf %200, %204 : vector<8x8xf32>
      %206 = arith.truncf %205 : vector<8x8xf32> to vector<8x8xbf16>
      %c0_129 = arith.constant 0 : index
      %c0_130 = arith.constant 0 : index
      %c24 = arith.constant 24 : index
      %207 = vector.load %arg7[%c0_129, %c0_130, %c24] : memref<1x8x32xbf16, #tpu.memory_space<vmem>>, vector<1x8x8xbf16>
      %208 = vector.shape_cast %207 : vector<1x8x8xbf16> to vector<8x8xbf16>
      %209 = vector.shape_cast %206 : vector<8x8xbf16> to vector<1x8x8xbf16>
      tpu.vector_store %arg7[%c0_129, %c0_130, %c24], %209 {strides = array<i32>} : memref<1x8x32xbf16, #tpu.memory_space<vmem>>, vector<1x8x8xbf16>,
    } else {
    }
    return
  }
  func.func @transform_0(%arg0: i32, %arg1: i32, %arg2: i32) -> (i32, i32, i32) {
    %c0_i32 = arith.constant 0 : i32
    %c0_i32_0 = arith.constant 0 : i32
    return %arg0, %c0_i32, %arg2 : i32, i32, i32
  }
  func.func @transform_1(%arg0: i32, %arg1: i32, %arg2: i32) -> (i32, i32, i32) {
    %c0_i32 = arith.constant 0 : i32
    %c0_i32_0 = arith.constant 0 : i32
    return %arg0, %arg1, %c0_i32 : i32, i32, i32
  }
  func.func @transform_2(%arg0: i32, %arg1: i32, %arg2: i32) -> (i32, i32, i32) {
    %c0_i32 = arith.constant 0 : i32
    %c0_i32_0 = arith.constant 0 : i32
    return %arg0, %arg2, %c0_i32 : i32, i32, i32
  }
  func.func @transform_3(%arg0: i32, %arg1: i32, %arg2: i32) -> (i32, i32, i32) {
    %c0_i32 = arith.constant 0 : i32
    %c0_i32_0 = arith.constant 0 : i32
    return %arg0, %arg2, %c0_i32 : i32, i32, i32
  }
  func.func @transform_4(%arg0: i32, %arg1: i32, %arg2: i32) -> (i32, i32, i32) {
    %c0_i32 = arith.constant 0 : i32
    %c0_i32_0 = arith.constant 0 : i32
    return %arg0, %arg1, %c0_i32 : i32, i32, i32
  }
}

module attributes {stable_mosaic.version = 11 : i64} {
  func.func @_ln_ffn_kernel(%arg0: i32, %arg1: memref<16x32xf32, #tpu.memory_space<vmem>>, %arg2: memref<1x32xf32, #tpu.memory_space<vmem>>, %arg3: memref<1x32xf32, #tpu.memory_space<vmem>>, %arg4: memref<32x64xbf16, #tpu.memory_space<vmem>>, %arg5: memref<1x64xf32, #tpu.memory_space<vmem>>, %arg6: memref<64x32xbf16, #tpu.memory_space<vmem>>, %arg7: memref<1x32xf32, #tpu.memory_space<vmem>>, %arg8: memref<16x32xf32, #tpu.memory_space<vmem>>) attributes {dimension_semantics = [#tpu.dimension_semantics<parallel>], iteration_bounds = array<i64: 1>, scalar_prefetch = 0 : i64, scratch_operands = 0 : i64, tpu.core_type = #tpu.core_type<tc>, window_params = [{transform_indices = @transform_0, window_bounds = array<i64: 16, 32>}, {pipeline_mode = #tpu.pipeline_mode<synchronous>, transform_indices = @transform_1, window_bounds = array<i64: 1, 32>}, {pipeline_mode = #tpu.pipeline_mode<synchronous>, transform_indices = @transform_2, window_bounds = array<i64: 1, 32>}, {pipeline_mode = #tpu.pipeline_mode<synchronous>, transform_indices = @transform_3, window_bounds = array<i64: 32, 64>}, {pipeline_mode = #tpu.pipeline_mode<synchronous>, transform_indices = @transform_4, window_bounds = array<i64: 1, 64>}, {pipeline_mode = #tpu.pipeline_mode<synchronous>, transform_indices = @transform_5, window_bounds = array<i64: 64, 32>}, {pipeline_mode = #tpu.pipeline_mode<synchronous>, transform_indices = @transform_6, window_bounds = array<i64: 1, 32>}, {transform_indices = @transform_7, window_bounds = array<i64: 16, 32>}]} {
    %c0 = arith.constant 0 : index
    %c0_0 = arith.constant 0 : index
    %0 = vector.load %arg1[%c0, %c0_0] : memref<16x32xf32, #tpu.memory_space<vmem>>, vector<16x32xf32>
    %cst = arith.constant dense<0.000000e+00> : vector<16xf32>
    %1 = vector.multi_reduction <add>, %0, %cst [1] : vector<16x32xf32> to vector<16xf32>
    %2 = vector.shape_cast %1 : vector<16xf32> to vector<16x1xf32>
    %cst_1 = arith.constant 3.200000e+01 : f32
    %3 = vector.broadcast %cst_1 : f32 to vector<16x1xf32>
    %4 = arith.divf %2, %3 : vector<16x1xf32>
    %5 = vector.broadcast %4 : vector<16x1xf32> to vector<16x32xf32>
    %6 = arith.subf %0, %5 : vector<16x32xf32>
    %7 = arith.mulf %6, %6 : vector<16x32xf32>
    %cst_2 = arith.constant dense<0.000000e+00> : vector<16xf32>
    %8 = vector.multi_reduction <add>, %7, %cst_2 [1] : vector<16x32xf32> to vector<16xf32>
    %9 = vector.shape_cast %8 : vector<16xf32> to vector<16x1xf32>
    %cst_3 = arith.constant 3.200000e+01 : f32
    %10 = vector.broadcast %cst_3 : f32 to vector<16x1xf32>
    %11 = arith.divf %9, %10 : vector<16x1xf32>
    %12 = vector.broadcast %4 : vector<16x1xf32> to vector<16x32xf32>
    %13 = arith.subf %0, %12 : vector<16x32xf32>
    %cst_4 = arith.constant 9.99999974E-6 : f32
    %14 = vector.broadcast %cst_4 : f32 to vector<16x1xf32>
    %15 = arith.addf %11, %14 : vector<16x1xf32>
    %16 = math.rsqrt %15 : vector<16x1xf32>
    %17 = vector.broadcast %16 : vector<16x1xf32> to vector<16x32xf32>
    %18 = arith.mulf %13, %17 : vector<16x32xf32>
    %c0_5 = arith.constant 0 : index
    %c0_6 = arith.constant 0 : index
    %19 = vector.load %arg2[%c0_5, %c0_6] : memref<1x32xf32, #tpu.memory_space<vmem>>, vector<1x32xf32>
    %20 = vector.broadcast %19 : vector<1x32xf32> to vector<16x32xf32>
    %21 = arith.mulf %18, %20 : vector<16x32xf32>
    %c0_7 = arith.constant 0 : index
    %c0_8 = arith.constant 0 : index
    %22 = vector.load %arg3[%c0_7, %c0_8] : memref<1x32xf32, #tpu.memory_space<vmem>>, vector<1x32xf32>
    %23 = vector.broadcast %22 : vector<1x32xf32> to vector<16x32xf32>
    %24 = arith.addf %21, %23 : vector<16x32xf32>
    %25 = arith.truncf %24 : vector<16x32xf32> to vector<16x32xbf16>
    %c0_9 = arith.constant 0 : index
    %c0_10 = arith.constant 0 : index
    %26 = vector.load %arg4[%c0_9, %c0_10] : memref<32x64xbf16, #tpu.memory_space<vmem>>, vector<32x64xbf16>
    %cst_11 = arith.constant dense<0.000000e+00> : vector<16x64xf32>
    %27 = tpu.matmul %25, %26, %cst_11 {dimension_numbers = #tpu.dot_dimension_numbers<[1], [0], [0], [1], [0, 0, 1, 1], [], []>} : vector<16x32xbf16>, vector<32x64xbf16>, vector<16x64xf32> -> vector<16x64xf32>
    %c0_12 = arith.constant 0 : index
    %c0_13 = arith.constant 0 : index
    %28 = vector.load %arg5[%c0_12, %c0_13] : memref<1x64xf32, #tpu.memory_space<vmem>>, vector<1x64xf32>
    %29 = vector.broadcast %28 : vector<1x64xf32> to vector<16x64xf32>
    %30 = arith.addf %27, %29 : vector<16x64xf32>
    %cst_14 = arith.constant 0.000000e+00 : f32
    %31 = vector.broadcast %cst_14 : f32 to vector<16x64xf32>
    %32 = arith.maximumf %30, %31 : vector<16x64xf32>
    %33 = arith.truncf %32 : vector<16x64xf32> to vector<16x64xbf16>
    %c0_15 = arith.constant 0 : index
    %c0_16 = arith.constant 0 : index
    %34 = vector.load %arg6[%c0_15, %c0_16] : memref<64x32xbf16, #tpu.memory_space<vmem>>, vector<64x32xbf16>
    %cst_17 = arith.constant dense<0.000000e+00> : vector<16x32xf32>
    %35 = tpu.matmul %33, %34, %cst_17 {dimension_numbers = #tpu.dot_dimension_numbers<[1], [0], [0], [1], [0, 0, 1, 1], [], []>} : vector<16x64xbf16>, vector<64x32xbf16>, vector<16x32xf32> -> vector<16x32xf32>
    %c0_18 = arith.constant 0 : index
    %c0_19 = arith.constant 0 : index
    %36 = vector.load %arg7[%c0_18, %c0_19] : memref<1x32xf32, #tpu.memory_space<vmem>>, vector<1x32xf32>
    %37 = vector.broadcast %36 : vector<1x32xf32> to vector<16x32xf32>
    %38 = arith.addf %35, %37 : vector<16x32xf32>
    %39 = arith.addf %0, %38 : vector<16x32xf32>
    %c0_20 = arith.constant 0 : index
    %c0_21 = arith.constant 0 : index
    %40 = vector.load %arg8[%c0_20, %c0_21] : memref<16x32xf32, #tpu.memory_space<vmem>>, vector<16x32xf32>
    tpu.vector_store %arg8[%c0_20, %c0_21], %39 {strides = array<i32>} : memref<16x32xf32, #tpu.memory_space<vmem>>, vector<16x32xf32>,
    return
  }
  func.func @transform_0(%arg0: i32) -> (i32, i32) {
    %c0_i32 = arith.constant 0 : i32
    %c0_i32_0 = arith.constant 0 : i32
    return %arg0, %c0_i32 : i32, i32
  }
  func.func @transform_1(%arg0: i32) -> (i32, i32) {
    %c0_i32 = arith.constant 0 : i32
    %c0_i32_0 = arith.constant 0 : i32
    %c0_i32_1 = arith.constant 0 : i32
    return %c0_i32, %c0_i32_0 : i32, i32
  }
  func.func @transform_2(%arg0: i32) -> (i32, i32) {
    %c0_i32 = arith.constant 0 : i32
    %c0_i32_0 = arith.constant 0 : i32
    %c0_i32_1 = arith.constant 0 : i32
    return %c0_i32, %c0_i32_0 : i32, i32
  }
  func.func @transform_3(%arg0: i32) -> (i32, i32) {
    %c0_i32 = arith.constant 0 : i32
    %c0_i32_0 = arith.constant 0 : i32
    %c0_i32_1 = arith.constant 0 : i32
    return %c0_i32, %c0_i32_0 : i32, i32
  }
  func.func @transform_4(%arg0: i32) -> (i32, i32) {
    %c0_i32 = arith.constant 0 : i32
    %c0_i32_0 = arith.constant 0 : i32
    %c0_i32_1 = arith.constant 0 : i32
    return %c0_i32, %c0_i32_0 : i32, i32
  }
  func.func @transform_5(%arg0: i32) -> (i32, i32) {
    %c0_i32 = arith.constant 0 : i32
    %c0_i32_0 = arith.constant 0 : i32
    %c0_i32_1 = arith.constant 0 : i32
    return %c0_i32, %c0_i32_0 : i32, i32
  }
  func.func @transform_6(%arg0: i32) -> (i32, i32) {
    %c0_i32 = arith.constant 0 : i32
    %c0_i32_0 = arith.constant 0 : i32
    %c0_i32_1 = arith.constant 0 : i32
    return %c0_i32, %c0_i32_0 : i32, i32
  }
  func.func @transform_7(%arg0: i32) -> (i32, i32) {
    %c0_i32 = arith.constant 0 : i32
    %c0_i32_0 = arith.constant 0 : i32
    return %arg0, %c0_i32 : i32, i32
  }
}

module attributes {stable_mosaic.version = 11 : i64} {
  func.func @_linear_kernel(%arg0: i32, %arg1: memref<16x32xf32, #tpu.memory_space<vmem>>, %arg2: memref<32x64xbf16, #tpu.memory_space<vmem>>, %arg3: memref<1x64xf32, #tpu.memory_space<vmem>>, %arg4: memref<16x32xbf16, #tpu.memory_space<vmem>>, %arg5: memref<16x32xbf16, #tpu.memory_space<vmem>>) attributes {dimension_semantics = [#tpu.dimension_semantics<parallel>], iteration_bounds = array<i64: 1>, scalar_prefetch = 0 : i64, scratch_operands = 0 : i64, tpu.core_type = #tpu.core_type<tc>, window_params = [{transform_indices = @transform_0, window_bounds = array<i64: 16, 32>}, {pipeline_mode = #tpu.pipeline_mode<synchronous>, transform_indices = @transform_1, window_bounds = array<i64: 32, 64>}, {pipeline_mode = #tpu.pipeline_mode<synchronous>, transform_indices = @transform_2, window_bounds = array<i64: 1, 64>}, {transform_indices = @transform_3, window_bounds = array<i64: 16, 32>}, {transform_indices = @transform_4, window_bounds = array<i64: 16, 32>}]} {
    %c0 = arith.constant 0 : index
    %c0_0 = arith.constant 0 : index
    %0 = vector.load %arg1[%c0, %c0_0] : memref<16x32xf32, #tpu.memory_space<vmem>>, vector<16x32xf32>
    %1 = arith.truncf %0 : vector<16x32xf32> to vector<16x32xbf16>
    %c0_1 = arith.constant 0 : index
    %c0_2 = arith.constant 0 : index
    %2 = vector.load %arg2[%c0_1, %c0_2] : memref<32x64xbf16, #tpu.memory_space<vmem>>, vector<32x64xbf16>
    %cst = arith.constant dense<0.000000e+00> : vector<16x64xf32>
    %3 = tpu.matmul %1, %2, %cst {dimension_numbers = #tpu.dot_dimension_numbers<[1], [0], [0], [1], [0, 0, 1, 1], [], []>} : vector<16x32xbf16>, vector<32x64xbf16>, vector<16x64xf32> -> vector<16x64xf32>
    %c0_3 = arith.constant 0 : index
    %c0_4 = arith.constant 0 : index
    %4 = vector.load %arg3[%c0_3, %c0_4] : memref<1x64xf32, #tpu.memory_space<vmem>>, vector<1x64xf32>
    %5 = vector.broadcast %4 : vector<1x64xf32> to vector<16x64xf32>
    %6 = arith.addf %3, %5 : vector<16x64xf32>
    %7 = vector.extract_strided_slice %6 {offsets = [0, 0], sizes = [16, 32], strides = [1, 1]} : vector<16x64xf32> to vector<16x32xf32>
    %8 = arith.truncf %7 : vector<16x32xf32> to vector<16x32xbf16>
    %c0_5 = arith.constant 0 : index
    %c0_6 = arith.constant 0 : index
    %9 = vector.load %arg4[%c0_5, %c0_6] : memref<16x32xbf16, #tpu.memory_space<vmem>>, vector<16x32xbf16>
    tpu.vector_store %arg4[%c0_5, %c0_6], %8 {strides = array<i32>} : memref<16x32xbf16, #tpu.memory_space<vmem>>, vector<16x32xbf16>,
    %10 = vector.extract_strided_slice %6 {offsets = [0, 32], sizes = [16, 32], strides = [1, 1]} : vector<16x64xf32> to vector<16x32xf32>
    %11 = arith.truncf %10 : vector<16x32xf32> to vector<16x32xbf16>
    %c0_7 = arith.constant 0 : index
    %c0_8 = arith.constant 0 : index
    %12 = vector.load %arg5[%c0_7, %c0_8] : memref<16x32xbf16, #tpu.memory_space<vmem>>, vector<16x32xbf16>
    tpu.vector_store %arg5[%c0_7, %c0_8], %11 {strides = array<i32>} : memref<16x32xbf16, #tpu.memory_space<vmem>>, vector<16x32xbf16>,
    return
  }
  func.func @transform_0(%arg0: i32) -> (i32, i32) {
    %c0_i32 = arith.constant 0 : i32
    %c0_i32_0 = arith.constant 0 : i32
    return %arg0, %c0_i32 : i32, i32
  }
  func.func @transform_1(%arg0: i32) -> (i32, i32) {
    %c0_i32 = arith.constant 0 : i32
    %c0_i32_0 = arith.constant 0 : i32
    %c0_i32_1 = arith.constant 0 : i32
    return %c0_i32, %c0_i32_0 : i32, i32
  }
  func.func @transform_2(%arg0: i32) -> (i32, i32) {
    %c0_i32 = arith.constant 0 : i32
    %c0_i32_0 = arith.constant 0 : i32
    %c0_i32_1 = arith.constant 0 : i32
    return %c0_i32, %c0_i32_0 : i32, i32
  }
  func.func @transform_3(%arg0: i32) -> (i32, i32) {
    %c0_i32 = arith.constant 0 : i32
    %c0_i32_0 = arith.constant 0 : i32
    return %arg0, %c0_i32 : i32, i32
  }
  func.func @transform_4(%arg0: i32) -> (i32, i32) {
    %c0_i32 = arith.constant 0 : i32
    %c0_i32_0 = arith.constant 0 : i32
    return %arg0, %c0_i32 : i32, i32
  }
}

module attributes {stable_mosaic.version = 11 : i64} {
  func.func @_flash_attn_kernel(%arg0: i32, %arg1: i32, %arg2: i32, %arg3: memref<1x1x8xf32, #tpu.memory_space<vmem>>, %arg4: memref<1x8x32xbf16, #tpu.memory_space<vmem>>, %arg5: memref<1x8x32xbf16, #tpu.memory_space<vmem>>, %arg6: memref<1x8x32xbf16, #tpu.memory_space<vmem>>, %arg7: memref<1x8x32xbf16, #tpu.memory_space<vmem>>, %arg8: memref<4x8x1xf32, #tpu.memory_space<vmem>>, %arg9: memref<4x8x1xf32, #tpu.memory_space<vmem>>, %arg10: memref<4x8x8xf32, #tpu.memory_space<vmem>>) attributes {dimension_semantics = [#tpu.dimension_semantics<parallel>, #tpu.dimension_semantics<parallel>, #tpu.dimension_semantics<arbitrary>], iteration_bounds = array<i64: 2, 1, 1>, scalar_prefetch = 0 : i64, scratch_operands = 3 : i64, tpu.core_type = #tpu.core_type<tc>, window_params = [{transform_indices = @transform_0, window_bounds = array<i64: 1, 1, 8>}, {transform_indices = @transform_1, window_bounds = array<i64: 1, 8, 32>}, {transform_indices = @transform_2, window_bounds = array<i64: 1, 8, 32>}, {transform_indices = @transform_3, window_bounds = array<i64: 1, 8, 32>}, {transform_indices = @transform_4, window_bounds = array<i64: 1, 8, 32>}]} {
    %c0_i32 = arith.constant 0 : i32
    %0 = arith.cmpi eq, %arg2, %c0_i32 : i32
    %1 = arith.extui %0 : i1 to i32
    %c0_i32_0 = arith.constant 0 : i32
    %2 = arith.cmpi ne, %1, %c0_i32_0 : i32
    scf.if %2 {
      %cst_101 = arith.constant 0xFF800000 : f32
      %176 = vector.broadcast %cst_101 : f32 to vector<4x8x1xf32>
      %c0_102 = arith.constant 0 : index
      %c0_103 = arith.constant 0 : index
      %c0_104 = arith.constant 0 : index
      %177 = vector.load %arg8[%c0_102, %c0_103, %c0_104] : memref<4x8x1xf32, #tpu.memory_space<vmem>>, vector<4x8x1xf32>
      tpu.vector_store %arg8[%c0_102, %c0_103, %c0_104], %176 {strides = array<i32>} : memref<4x8x1xf32, #tpu.memory_space<vmem>>, vector<4x8x1xf32>,
      %cst_105 = arith.constant 0.000000e+00 : f32
      %178 = vector.broadcast %cst_105 : f32 to vector<4x8x1xf32>
      %c0_106 = arith.constant 0 : index
      %c0_107 = arith.constant 0 : index
      %c0_108 = arith.constant 0 : index
      %179 = vector.load %arg9[%c0_106, %c0_107, %c0_108] : memref<4x8x1xf32, #tpu.memory_space<vmem>>, vector<4x8x1xf32>
      tpu.vector_store %arg9[%c0_106, %c0_107, %c0_108], %178 {strides = array<i32>} : memref<4x8x1xf32, #tpu.memory_space<vmem>>, vector<4x8x1xf32>,
      %cst_109 = arith.constant 0.000000e+00 : f32
      %180 = vector.broadcast %cst_109 : f32 to vector<4x8x8xf32>
      %c0_110 = arith.constant 0 : index
      %c0_111 = arith.constant 0 : index
      %c0_112 = arith.constant 0 : index
      %181 = vector.load %arg10[%c0_110, %c0_111, %c0_112] : memref<4x8x8xf32, #tpu.memory_space<vmem>>, vector<4x8x8xf32>
      tpu.vector_store %arg10[%c0_110, %c0_111, %c0_112], %180 {strides = array<i32>} : memref<4x8x8xf32, #tpu.memory_space<vmem>>, vector<4x8x8xf32>,
    } else {
    }
    %c0 = arith.constant 0 : index
    %c0_1 = arith.constant 0 : index
    %c0_2 = arith.constant 0 : index
    %3 = vector.load %arg4[%c0, %c0_1, %c0_2] : memref<1x8x32xbf16, #tpu.memory_space<vmem>>, vector<1x8x32xbf16>
    %4 = vector.shape_cast %3 : vector<1x8x32xbf16> to vector<8x32xbf16>
    %c0_3 = arith.constant 0 : index
    %c0_4 = arith.constant 0 : index
    %c0_5 = arith.constant 0 : index
    %5 = vector.load %arg5[%c0_3, %c0_4, %c0_5] : memref<1x8x32xbf16, #tpu.memory_space<vmem>>, vector<1x8x32xbf16>
    %6 = vector.shape_cast %5 : vector<1x8x32xbf16> to vector<8x32xbf16>
    %c0_6 = arith.constant 0 : index
    %c0_7 = arith.constant 0 : index
    %c0_8 = arith.constant 0 : index
    %7 = vector.load %arg6[%c0_6, %c0_7, %c0_8] : memref<1x8x32xbf16, #tpu.memory_space<vmem>>, vector<1x8x32xbf16>
    %8 = vector.shape_cast %7 : vector<1x8x32xbf16> to vector<8x32xbf16>
    %c0_9 = arith.constant 0 : index
    %c0_10 = arith.constant 0 : index
    %c0_11 = arith.constant 0 : index
    %9 = vector.load %arg3[%c0_9, %c0_10, %c0_11] : memref<1x1x8xf32, #tpu.memory_space<vmem>>, vector<1x1x8xf32>
    %10 = vector.shape_cast %9 : vector<1x1x8xf32> to vector<1x8xf32>
    %11 = tpu.iota {dimensions = array<i32: 0>} : vector<8x8xi32>
    %c8_i32 = arith.constant 8 : i32
    %12 = arith.muli %arg1, %c8_i32 : i32
    %13 = vector.broadcast %12 : i32 to vector<8x8xi32>
    %14 = arith.addi %11, %13 : vector<8x8xi32>
    %15 = tpu.iota {dimensions = array<i32: 1>} : vector<8x8xi32>
    %c8_i32_12 = arith.constant 8 : i32
    %16 = arith.muli %arg2, %c8_i32_12 : i32
    %17 = vector.broadcast %16 : i32 to vector<8x8xi32>
    %18 = arith.addi %15, %17 : vector<8x8xi32>
    %19 = arith.cmpi sgt, %18, %14 : vector<8x8xi32>
    %cst = arith.constant -1.000000e+09 : f32
    %cst_13 = arith.constant 0.000000e+00 : f32
    %20 = vector.broadcast %cst : f32 to vector<8x8xf32>
    %21 = vector.broadcast %cst_13 : f32 to vector<8x8xf32>
    %22 = arith.select %19, %20, %21 : vector<8x8xi1>, vector<8x8xf32>
    %23 = vector.broadcast %10 : vector<1x8xf32> to vector<8x8xf32>
    %24 = arith.addf %23, %22 : vector<8x8xf32>
    %25 = vector.extract_strided_slice %4 {offsets = [0, 0], sizes = [8, 8], strides = [1, 1]} : vector<8x32xbf16> to vector<8x8xbf16>
    %26 = vector.extract_strided_slice %6 {offsets = [0, 0], sizes = [8, 8], strides = [1, 1]} : vector<8x32xbf16> to vector<8x8xbf16>
    %cst_14 = arith.constant dense<0.000000e+00> : vector<8x8xf32>
    %27 = tpu.matmul %25, %26, %cst_14 {dimension_numbers = #tpu.dot_dimension_numbers<[1], [1], [0], [0], [0, 0, 1, 0], [], []>} : vector<8x8xbf16>, vector<8x8xbf16>, vector<8x8xf32> -> vector<8x8xf32>
    %28 = arith.addf %27, %24 : vector<8x8xf32>
    %c0_15 = arith.constant 0 : index
    %c0_16 = arith.constant 0 : index
    %c0_17 = arith.constant 0 : index
    %29 = vector.load %arg8[%c0_15, %c0_16, %c0_17] : memref<4x8x1xf32, #tpu.memory_space<vmem>>, vector<1x8x1xf32>
    %30 = vector.shape_cast %29 : vector<1x8x1xf32> to vector<8x1xf32>
    %cst_18 = arith.constant dense<0xFF800000> : vector<8xf32>
    %31 = vector.multi_reduction <maximumf>, %28, %cst_18 [1] : vector<8x8xf32> to vector<8xf32>
    %32 = vector.shape_cast %31 : vector<8xf32> to vector<8x1xf32>
    %33 = arith.maximumf %30, %32 : vector<8x1xf32>
    %34 = arith.subf %30, %33 : vector<8x1xf32>
    %35 = math.exp %34 : vector<8x1xf32>
    %36 = vector.broadcast %33 : vector<8x1xf32> to vector<8x8xf32>
    %37 = arith.subf %28, %36 : vector<8x8xf32>
    %38 = math.exp %37 : vector<8x8xf32>
    %c0_19 = arith.constant 0 : index
    %c0_20 = arith.constant 0 : index
    %c0_21 = arith.constant 0 : index
    %39 = vector.load %arg9[%c0_19, %c0_20, %c0_21] : memref<4x8x1xf32, #tpu.memory_space<vmem>>, vector<1x8x1xf32>
    %40 = vector.shape_cast %39 : vector<1x8x1xf32> to vector<8x1xf32>
    %41 = arith.mulf %35, %40 : vector<8x1xf32>
    %cst_22 = arith.constant dense<0.000000e+00> : vector<8xf32>
    %42 = vector.multi_reduction <add>, %38, %cst_22 [1] : vector<8x8xf32> to vector<8xf32>
    %43 = vector.shape_cast %42 : vector<8xf32> to vector<8x1xf32>
    %44 = arith.addf %41, %43 : vector<8x1xf32>
    %c0_23 = arith.constant 0 : index
    %c0_24 = arith.constant 0 : index
    %c0_25 = arith.constant 0 : index
    %45 = vector.load %arg9[%c0_23, %c0_24, %c0_25] : memref<4x8x1xf32, #tpu.memory_space<vmem>>, vector<1x8x1xf32>
    %46 = vector.shape_cast %45 : vector<1x8x1xf32> to vector<8x1xf32>
    %47 = vector.shape_cast %44 : vector<8x1xf32> to vector<1x8x1xf32>
    tpu.vector_store %arg9[%c0_23, %c0_24, %c0_25], %47 {strides = array<i32>} : memref<4x8x1xf32, #tpu.memory_space<vmem>>, vector<1x8x1xf32>,
    %c0_26 = arith.constant 0 : index
    %c0_27 = arith.constant 0 : index
    %c0_28 = arith.constant 0 : index
    %48 = vector.load %arg10[%c0_26, %c0_27, %c0_28] : memref<4x8x8xf32, #tpu.memory_space<vmem>>, vector<1x8x8xf32>
    %49 = vector.shape_cast %48 : vector<1x8x8xf32> to vector<8x8xf32>
    %50 = vector.broadcast %35 : vector<8x1xf32> to vector<8x8xf32>
    %51 = arith.mulf %50, %49 : vector<8x8xf32>
    %52 = arith.truncf %38 : vector<8x8xf32> to vector<8x8xbf16>
    %53 = vector.extract_strided_slice %8 {offsets = [0, 0], sizes = [8, 8], strides = [1, 1]} : vector<8x32xbf16> to vector<8x8xbf16>
    %cst_29 = arith.constant dense<0.000000e+00> : vector<8x8xf32>
    %54 = tpu.matmul %52, %53, %cst_29 {dimension_numbers = #tpu.dot_dimension_numbers<[1], [0], [0], [1], [0, 0, 1, 1], [], []>} : vector<8x8xbf16>, vector<8x8xbf16>, vector<8x8xf32> -> vector<8x8xf32>
    %55 = arith.addf %51, %54 : vector<8x8xf32>
    %c0_30 = arith.constant 0 : index
    %c0_31 = arith.constant 0 : index
    %c0_32 = arith.constant 0 : index
    %56 = vector.load %arg10[%c0_30, %c0_31, %c0_32] : memref<4x8x8xf32, #tpu.memory_space<vmem>>, vector<1x8x8xf32>
    %57 = vector.shape_cast %56 : vector<1x8x8xf32> to vector<8x8xf32>
    %58 = vector.shape_cast %55 : vector<8x8xf32> to vector<1x8x8xf32>
    tpu.vector_store %arg10[%c0_30, %c0_31, %c0_32], %58 {strides = array<i32>} : memref<4x8x8xf32, #tpu.memory_space<vmem>>, vector<1x8x8xf32>,
    %c0_33 = arith.constant 0 : index
    %c0_34 = arith.constant 0 : index
    %c0_35 = arith.constant 0 : index
    %59 = vector.load %arg8[%c0_33, %c0_34, %c0_35] : memref<4x8x1xf32, #tpu.memory_space<vmem>>, vector<1x8x1xf32>
    %60 = vector.shape_cast %59 : vector<1x8x1xf32> to vector<8x1xf32>
    %61 = vector.shape_cast %33 : vector<8x1xf32> to vector<1x8x1xf32>
    tpu.vector_store %arg8[%c0_33, %c0_34, %c0_35], %61 {strides = array<i32>} : memref<4x8x1xf32, #tpu.memory_space<vmem>>, vector<1x8x1xf32>,
    %62 = vector.extract_strided_slice %4 {offsets = [0, 8], sizes = [8, 8], strides = [1, 1]} : vector<8x32xbf16> to vector<8x8xbf16>
    %63 = vector.extract_strided_slice %6 {offsets = [0, 8], sizes = [8, 8], strides = [1, 1]} : vector<8x32xbf16> to vector<8x8xbf16>
    %cst_36 = arith.constant dense<0.000000e+00> : vector<8x8xf32>
    %64 = tpu.matmul %62, %63, %cst_36 {dimension_numbers = #tpu.dot_dimension_numbers<[1], [1], [0], [0], [0, 0, 1, 0], [], []>} : vector<8x8xbf16>, vector<8x8xbf16>, vector<8x8xf32> -> vector<8x8xf32>
    %65 = arith.addf %64, %24 : vector<8x8xf32>
    %c1 = arith.constant 1 : index
    %c0_37 = arith.constant 0 : index
    %c0_38 = arith.constant 0 : index
    %66 = vector.load %arg8[%c1, %c0_37, %c0_38] : memref<4x8x1xf32, #tpu.memory_space<vmem>>, vector<1x8x1xf32>
    %67 = vector.shape_cast %66 : vector<1x8x1xf32> to vector<8x1xf32>
    %cst_39 = arith.constant dense<0xFF800000> : vector<8xf32>
    %68 = vector.multi_reduction <maximumf>, %65, %cst_39 [1] : vector<8x8xf32> to vector<8xf32>
    %69 = vector.shape_cast %68 : vector<8xf32> to vector<8x1xf32>
    %70 = arith.maximumf %67, %69 : vector<8x1xf32>
    %71 = arith.subf %67, %70 : vector<8x1xf32>
    %72 = math.exp %71 : vector<8x1xf32>
    %73 = vector.broadcast %70 : vector<8x1xf32> to vector<8x8xf32>
    %74 = arith.subf %65, %73 : vector<8x8xf32>
    %75 = math.exp %74 : vector<8x8xf32>
    %c1_40 = arith.constant 1 : index
    %c0_41 = arith.constant 0 : index
    %c0_42 = arith.constant 0 : index
    %76 = vector.load %arg9[%c1_40, %c0_41, %c0_42] : memref<4x8x1xf32, #tpu.memory_space<vmem>>, vector<1x8x1xf32>
    %77 = vector.shape_cast %76 : vector<1x8x1xf32> to vector<8x1xf32>
    %78 = arith.mulf %72, %77 : vector<8x1xf32>
    %cst_43 = arith.constant dense<0.000000e+00> : vector<8xf32>
    %79 = vector.multi_reduction <add>, %75, %cst_43 [1] : vector<8x8xf32> to vector<8xf32>
    %80 = vector.shape_cast %79 : vector<8xf32> to vector<8x1xf32>
    %81 = arith.addf %78, %80 : vector<8x1xf32>
    %c1_44 = arith.constant 1 : index
    %c0_45 = arith.constant 0 : index
    %c0_46 = arith.constant 0 : index
    %82 = vector.load %arg9[%c1_44, %c0_45, %c0_46] : memref<4x8x1xf32, #tpu.memory_space<vmem>>, vector<1x8x1xf32>
    %83 = vector.shape_cast %82 : vector<1x8x1xf32> to vector<8x1xf32>
    %84 = vector.shape_cast %81 : vector<8x1xf32> to vector<1x8x1xf32>
    tpu.vector_store %arg9[%c1_44, %c0_45, %c0_46], %84 {strides = array<i32>} : memref<4x8x1xf32, #tpu.memory_space<vmem>>, vector<1x8x1xf32>,
    %c1_47 = arith.constant 1 : index
    %c0_48 = arith.constant 0 : index
    %c0_49 = arith.constant 0 : index
    %85 = vector.load %arg10[%c1_47, %c0_48, %c0_49] : memref<4x8x8xf32, #tpu.memory_space<vmem>>, vector<1x8x8xf32>
    %86 = vector.shape_cast %85 : vector<1x8x8xf32> to vector<8x8xf32>
    %87 = vector.broadcast %72 : vector<8x1xf32> to vector<8x8xf32>
    %88 = arith.mulf %87, %86 : vector<8x8xf32>
    %89 = arith.truncf %75 : vector<8x8xf32> to vector<8x8xbf16>
    %90 = vector.extract_strided_slice %8 {offsets = [0, 8], sizes = [8, 8], strides = [1, 1]} : vector<8x32xbf16> to vector<8x8xbf16>
    %cst_50 = arith.constant dense<0.000000e+00> : vector<8x8xf32>
    %91 = tpu.matmul %89, %90, %cst_50 {dimension_numbers = #tpu.dot_dimension_numbers<[1], [0], [0], [1], [0, 0, 1, 1], [], []>} : vector<8x8xbf16>, vector<8x8xbf16>, vector<8x8xf32> -> vector<8x8xf32>
    %92 = arith.addf %88, %91 : vector<8x8xf32>
    %c1_51 = arith.constant 1 : index
    %c0_52 = arith.constant 0 : index
    %c0_53 = arith.constant 0 : index
    %93 = vector.load %arg10[%c1_51, %c0_52, %c0_53] : memref<4x8x8xf32, #tpu.memory_space<vmem>>, vector<1x8x8xf32>
    %94 = vector.shape_cast %93 : vector<1x8x8xf32> to vector<8x8xf32>
    %95 = vector.shape_cast %92 : vector<8x8xf32> to vector<1x8x8xf32>
    tpu.vector_store %arg10[%c1_51, %c0_52, %c0_53], %95 {strides = array<i32>} : memref<4x8x8xf32, #tpu.memory_space<vmem>>, vector<1x8x8xf32>,
    %c1_54 = arith.constant 1 : index
    %c0_55 = arith.constant 0 : index
    %c0_56 = arith.constant 0 : index
    %96 = vector.load %arg8[%c1_54, %c0_55, %c0_56] : memref<4x8x1xf32, #tpu.memory_space<vmem>>, vector<1x8x1xf32>
    %97 = vector.shape_cast %96 : vector<1x8x1xf32> to vector<8x1xf32>
    %98 = vector.shape_cast %70 : vector<8x1xf32> to vector<1x8x1xf32>
    tpu.vector_store %arg8[%c1_54, %c0_55, %c0_56], %98 {strides = array<i32>} : memref<4x8x1xf32, #tpu.memory_space<vmem>>, vector<1x8x1xf32>,
    %99 = vector.extract_strided_slice %4 {offsets = [0, 16], sizes = [8, 8], strides = [1, 1]} : vector<8x32xbf16> to vector<8x8xbf16>
    %100 = vector.extract_strided_slice %6 {offsets = [0, 16], sizes = [8, 8], strides = [1, 1]} : vector<8x32xbf16> to vector<8x8xbf16>
    %cst_57 = arith.constant dense<0.000000e+00> : vector<8x8xf32>
    %101 = tpu.matmul %99, %100, %cst_57 {dimension_numbers = #tpu.dot_dimension_numbers<[1], [1], [0], [0], [0, 0, 1, 0], [], []>} : vector<8x8xbf16>, vector<8x8xbf16>, vector<8x8xf32> -> vector<8x8xf32>
    %102 = arith.addf %101, %24 : vector<8x8xf32>
    %c2 = arith.constant 2 : index
    %c0_58 = arith.constant 0 : index
    %c0_59 = arith.constant 0 : index
    %103 = vector.load %arg8[%c2, %c0_58, %c0_59] : memref<4x8x1xf32, #tpu.memory_space<vmem>>, vector<1x8x1xf32>
    %104 = vector.shape_cast %103 : vector<1x8x1xf32> to vector<8x1xf32>
    %cst_60 = arith.constant dense<0xFF800000> : vector<8xf32>
    %105 = vector.multi_reduction <maximumf>, %102, %cst_60 [1] : vector<8x8xf32> to vector<8xf32>
    %106 = vector.shape_cast %105 : vector<8xf32> to vector<8x1xf32>
    %107 = arith.maximumf %104, %106 : vector<8x1xf32>
    %108 = arith.subf %104, %107 : vector<8x1xf32>
    %109 = math.exp %108 : vector<8x1xf32>
    %110 = vector.broadcast %107 : vector<8x1xf32> to vector<8x8xf32>
    %111 = arith.subf %102, %110 : vector<8x8xf32>
    %112 = math.exp %111 : vector<8x8xf32>
    %c2_61 = arith.constant 2 : index
    %c0_62 = arith.constant 0 : index
    %c0_63 = arith.constant 0 : index
    %113 = vector.load %arg9[%c2_61, %c0_62, %c0_63] : memref<4x8x1xf32, #tpu.memory_space<vmem>>, vector<1x8x1xf32>
    %114 = vector.shape_cast %113 : vector<1x8x1xf32> to vector<8x1xf32>
    %115 = arith.mulf %109, %114 : vector<8x1xf32>
    %cst_64 = arith.constant dense<0.000000e+00> : vector<8xf32>
    %116 = vector.multi_reduction <add>, %112, %cst_64 [1] : vector<8x8xf32> to vector<8xf32>
    %117 = vector.shape_cast %116 : vector<8xf32> to vector<8x1xf32>
    %118 = arith.addf %115, %117 : vector<8x1xf32>
    %c2_65 = arith.constant 2 : index
    %c0_66 = arith.constant 0 : index
    %c0_67 = arith.constant 0 : index
    %119 = vector.load %arg9[%c2_65, %c0_66, %c0_67] : memref<4x8x1xf32, #tpu.memory_space<vmem>>, vector<1x8x1xf32>
    %120 = vector.shape_cast %119 : vector<1x8x1xf32> to vector<8x1xf32>
    %121 = vector.shape_cast %118 : vector<8x1xf32> to vector<1x8x1xf32>
    tpu.vector_store %arg9[%c2_65, %c0_66, %c0_67], %121 {strides = array<i32>} : memref<4x8x1xf32, #tpu.memory_space<vmem>>, vector<1x8x1xf32>,
    %c2_68 = arith.constant 2 : index
    %c0_69 = arith.constant 0 : index
    %c0_70 = arith.constant 0 : index
    %122 = vector.load %arg10[%c2_68, %c0_69, %c0_70] : memref<4x8x8xf32, #tpu.memory_space<vmem>>, vector<1x8x8xf32>
    %123 = vector.shape_cast %122 : vector<1x8x8xf32> to vector<8x8xf32>
    %124 = vector.broadcast %109 : vector<8x1xf32> to vector<8x8xf32>
    %125 = arith.mulf %124, %123 : vector<8x8xf32>
    %126 = arith.truncf %112 : vector<8x8xf32> to vector<8x8xbf16>
    %127 = vector.extract_strided_slice %8 {offsets = [0, 16], sizes = [8, 8], strides = [1, 1]} : vector<8x32xbf16> to vector<8x8xbf16>
    %cst_71 = arith.constant dense<0.000000e+00> : vector<8x8xf32>
    %128 = tpu.matmul %126, %127, %cst_71 {dimension_numbers = #tpu.dot_dimension_numbers<[1], [0], [0], [1], [0, 0, 1, 1], [], []>} : vector<8x8xbf16>, vector<8x8xbf16>, vector<8x8xf32> -> vector<8x8xf32>
    %129 = arith.addf %125, %128 : vector<8x8xf32>
    %c2_72 = arith.constant 2 : index
    %c0_73 = arith.constant 0 : index
    %c0_74 = arith.constant 0 : index
    %130 = vector.load %arg10[%c2_72, %c0_73, %c0_74] : memref<4x8x8xf32, #tpu.memory_space<vmem>>, vector<1x8x8xf32>
    %131 = vector.shape_cast %130 : vector<1x8x8xf32> to vector<8x8xf32>
    %132 = vector.shape_cast %129 : vector<8x8xf32> to vector<1x8x8xf32>
    tpu.vector_store %arg10[%c2_72, %c0_73, %c0_74], %132 {strides = array<i32>} : memref<4x8x8xf32, #tpu.memory_space<vmem>>, vector<1x8x8xf32>,
    %c2_75 = arith.constant 2 : index
    %c0_76 = arith.constant 0 : index
    %c0_77 = arith.constant 0 : index
    %133 = vector.load %arg8[%c2_75, %c0_76, %c0_77] : memref<4x8x1xf32, #tpu.memory_space<vmem>>, vector<1x8x1xf32>
    %134 = vector.shape_cast %133 : vector<1x8x1xf32> to vector<8x1xf32>
    %135 = vector.shape_cast %107 : vector<8x1xf32> to vector<1x8x1xf32>
    tpu.vector_store %arg8[%c2_75, %c0_76, %c0_77], %135 {strides = array<i32>} : memref<4x8x1xf32, #tpu.memory_space<vmem>>, vector<1x8x1xf32>,
    %136 = vector.extract_strided_slice %4 {offsets = [0, 24], sizes = [8, 8], strides = [1, 1]} : vector<8x32xbf16> to vector<8x8xbf16>
    %137 = vector.extract_strided_slice %6 {offsets = [0, 24], sizes = [8, 8], strides = [1, 1]} : vector<8x32xbf16> to vector<8x8xbf16>
    %cst_78 = arith.constant dense<0.000000e+00> : vector<8x8xf32>
    %138 = tpu.matmul %136, %137, %cst_78 {dimension_numbers = #tpu.dot_dimension_numbers<[1], [1], [0], [0], [0, 0, 1, 0], [], []>} : vector<8x8xbf16>, vector<8x8xbf16>, vector<8x8xf32> -> vector<8x8xf32>
    %139 = arith.addf %138, %24 : vector<8x8xf32>
    %c3 = arith.constant 3 : index
    %c0_79 = arith.constant 0 : index
    %c0_80 = arith.constant 0 : index
    %140 = vector.load %arg8[%c3, %c0_79, %c0_80] : memref<4x8x1xf32, #tpu.memory_space<vmem>>, vector<1x8x1xf32>
    %141 = vector.shape_cast %140 : vector<1x8x1xf32> to vector<8x1xf32>
    %cst_81 = arith.constant dense<0xFF800000> : vector<8xf32>
    %142 = vector.multi_reduction <maximumf>, %139, %cst_81 [1] : vector<8x8xf32> to vector<8xf32>
    %143 = vector.shape_cast %142 : vector<8xf32> to vector<8x1xf32>
    %144 = arith.maximumf %141, %143 : vector<8x1xf32>
    %145 = arith.subf %141, %144 : vector<8x1xf32>
    %146 = math.exp %145 : vector<8x1xf32>
    %147 = vector.broadcast %144 : vector<8x1xf32> to vector<8x8xf32>
    %148 = arith.subf %139, %147 : vector<8x8xf32>
    %149 = math.exp %148 : vector<8x8xf32>
    %c3_82 = arith.constant 3 : index
    %c0_83 = arith.constant 0 : index
    %c0_84 = arith.constant 0 : index
    %150 = vector.load %arg9[%c3_82, %c0_83, %c0_84] : memref<4x8x1xf32, #tpu.memory_space<vmem>>, vector<1x8x1xf32>
    %151 = vector.shape_cast %150 : vector<1x8x1xf32> to vector<8x1xf32>
    %152 = arith.mulf %146, %151 : vector<8x1xf32>
    %cst_85 = arith.constant dense<0.000000e+00> : vector<8xf32>
    %153 = vector.multi_reduction <add>, %149, %cst_85 [1] : vector<8x8xf32> to vector<8xf32>
    %154 = vector.shape_cast %153 : vector<8xf32> to vector<8x1xf32>
    %155 = arith.addf %152, %154 : vector<8x1xf32>
    %c3_86 = arith.constant 3 : index
    %c0_87 = arith.constant 0 : index
    %c0_88 = arith.constant 0 : index
    %156 = vector.load %arg9[%c3_86, %c0_87, %c0_88] : memref<4x8x1xf32, #tpu.memory_space<vmem>>, vector<1x8x1xf32>
    %157 = vector.shape_cast %156 : vector<1x8x1xf32> to vector<8x1xf32>
    %158 = vector.shape_cast %155 : vector<8x1xf32> to vector<1x8x1xf32>
    tpu.vector_store %arg9[%c3_86, %c0_87, %c0_88], %158 {strides = array<i32>} : memref<4x8x1xf32, #tpu.memory_space<vmem>>, vector<1x8x1xf32>,
    %c3_89 = arith.constant 3 : index
    %c0_90 = arith.constant 0 : index
    %c0_91 = arith.constant 0 : index
    %159 = vector.load %arg10[%c3_89, %c0_90, %c0_91] : memref<4x8x8xf32, #tpu.memory_space<vmem>>, vector<1x8x8xf32>
    %160 = vector.shape_cast %159 : vector<1x8x8xf32> to vector<8x8xf32>
    %161 = vector.broadcast %146 : vector<8x1xf32> to vector<8x8xf32>
    %162 = arith.mulf %161, %160 : vector<8x8xf32>
    %163 = arith.truncf %149 : vector<8x8xf32> to vector<8x8xbf16>
    %164 = vector.extract_strided_slice %8 {offsets = [0, 24], sizes = [8, 8], strides = [1, 1]} : vector<8x32xbf16> to vector<8x8xbf16>
    %cst_92 = arith.constant dense<0.000000e+00> : vector<8x8xf32>
    %165 = tpu.matmul %163, %164, %cst_92 {dimension_numbers = #tpu.dot_dimension_numbers<[1], [0], [0], [1], [0, 0, 1, 1], [], []>} : vector<8x8xbf16>, vector<8x8xbf16>, vector<8x8xf32> -> vector<8x8xf32>
    %166 = arith.addf %162, %165 : vector<8x8xf32>
    %c3_93 = arith.constant 3 : index
    %c0_94 = arith.constant 0 : index
    %c0_95 = arith.constant 0 : index
    %167 = vector.load %arg10[%c3_93, %c0_94, %c0_95] : memref<4x8x8xf32, #tpu.memory_space<vmem>>, vector<1x8x8xf32>
    %168 = vector.shape_cast %167 : vector<1x8x8xf32> to vector<8x8xf32>
    %169 = vector.shape_cast %166 : vector<8x8xf32> to vector<1x8x8xf32>
    tpu.vector_store %arg10[%c3_93, %c0_94, %c0_95], %169 {strides = array<i32>} : memref<4x8x8xf32, #tpu.memory_space<vmem>>, vector<1x8x8xf32>,
    %c3_96 = arith.constant 3 : index
    %c0_97 = arith.constant 0 : index
    %c0_98 = arith.constant 0 : index
    %170 = vector.load %arg8[%c3_96, %c0_97, %c0_98] : memref<4x8x1xf32, #tpu.memory_space<vmem>>, vector<1x8x1xf32>
    %171 = vector.shape_cast %170 : vector<1x8x1xf32> to vector<8x1xf32>
    %172 = vector.shape_cast %144 : vector<8x1xf32> to vector<1x8x1xf32>
    tpu.vector_store %arg8[%c3_96, %c0_97, %c0_98], %172 {strides = array<i32>} : memref<4x8x1xf32, #tpu.memory_space<vmem>>, vector<1x8x1xf32>,
    %c0_i32_99 = arith.constant 0 : i32
    %173 = arith.cmpi eq, %arg2, %c0_i32_99 : i32
    %174 = arith.extui %173 : i1 to i32
    %c0_i32_100 = arith.constant 0 : i32
    %175 = arith.cmpi ne, %174, %c0_i32_100 : i32
    scf.if %175 {
      %c0_101 = arith.constant 0 : index
      %c0_102 = arith.constant 0 : index
      %c0_103 = arith.constant 0 : index
      %176 = vector.load %arg10[%c0_101, %c0_102, %c0_103] : memref<4x8x8xf32, #tpu.memory_space<vmem>>, vector<1x8x8xf32>
      %177 = vector.shape_cast %176 : vector<1x8x8xf32> to vector<8x8xf32>
      %c0_104 = arith.constant 0 : index
      %c0_105 = arith.constant 0 : index
      %c0_106 = arith.constant 0 : index
      %178 = vector.load %arg9[%c0_104, %c0_105, %c0_106] : memref<4x8x1xf32, #tpu.memory_space<vmem>>, vector<1x8x1xf32>
      %179 = vector.shape_cast %178 : vector<1x8x1xf32> to vector<8x1xf32>
      %180 = tpu.reciprocal %179 {approx = true} : vector<8x1xf32> -> vector<8x1xf32>
      %181 = vector.broadcast %180 : vector<8x1xf32> to vector<8x8xf32>
      %182 = arith.mulf %177, %181 : vector<8x8xf32>
      %183 = arith.truncf %182 : vector<8x8xf32> to vector<8x8xbf16>
      %c0_107 = arith.constant 0 : index
      %c0_108 = arith.constant 0 : index
      %c0_109 = arith.constant 0 : index
      %184 = vector.load %arg7[%c0_107, %c0_108, %c0_109] : memref<1x8x32xbf16, #tpu.memory_space<vmem>>, vector<1x8x8xbf16>
      %185 = vector.shape_cast %184 : vector<1x8x8xbf16> to vector<8x8xbf16>
      %186 = vector.shape_cast %183 : vector<8x8xbf16> to vector<1x8x8xbf16>
      tpu.vector_store %arg7[%c0_107, %c0_108, %c0_109], %186 {strides = array<i32>} : memref<1x8x32xbf16, #tpu.memory_space<vmem>>, vector<1x8x8xbf16>,
      %c1_110 = arith.constant 1 : index
      %c0_111 = arith.constant 0 : index
      %c0_112 = arith.constant 0 : index
      %187 = vector.load %arg10[%c1_110, %c0_111, %c0_112] : memref<4x8x8xf32, #tpu.memory_space<vmem>>, vector<1x8x8xf32>
      %188 = vector.shape_cast %187 : vector<1x8x8xf32> to vector<8x8xf32>
      %c1_113 = arith.constant 1 : index
      %c0_114 = arith.constant 0 : index
      %c0_115 = arith.constant 0 : index
      %189 = vector.load %arg9[%c1_113, %c0_114, %c0_115] : memref<4x8x1xf32, #tpu.memory_space<vmem>>, vector<1x8x1xf32>
      %190 = vector.shape_cast %189 : vector<1x8x1xf32> to vector<8x1xf32>
      %191 = tpu.reciprocal %190 {approx = true} : vector<8x1xf32> -> vector<8x1xf32>
      %192 = vector.broadcast %191 : vector<8x1xf32> to vector<8x8xf32>
      %193 = arith.mulf %188, %192 : vector<8x8xf32>
      %194 = arith.truncf %193 : vector<8x8xf32> to vector<8x8xbf16>
      %c0_116 = arith.constant 0 : index
      %c0_117 = arith.constant 0 : index
      %c8 = arith.constant 8 : index
      %195 = vector.load %arg7[%c0_116, %c0_117, %c8] : memref<1x8x32xbf16, #tpu.memory_space<vmem>>, vector<1x8x8xbf16>
      %196 = vector.shape_cast %195 : vector<1x8x8xbf16> to vector<8x8xbf16>
      %197 = vector.shape_cast %194 : vector<8x8xbf16> to vector<1x8x8xbf16>
      tpu.vector_store %arg7[%c0_116, %c0_117, %c8], %197 {strides = array<i32>} : memref<1x8x32xbf16, #tpu.memory_space<vmem>>, vector<1x8x8xbf16>,
      %c2_118 = arith.constant 2 : index
      %c0_119 = arith.constant 0 : index
      %c0_120 = arith.constant 0 : index
      %198 = vector.load %arg10[%c2_118, %c0_119, %c0_120] : memref<4x8x8xf32, #tpu.memory_space<vmem>>, vector<1x8x8xf32>
      %199 = vector.shape_cast %198 : vector<1x8x8xf32> to vector<8x8xf32>
      %c2_121 = arith.constant 2 : index
      %c0_122 = arith.constant 0 : index
      %c0_123 = arith.constant 0 : index
      %200 = vector.load %arg9[%c2_121, %c0_122, %c0_123] : memref<4x8x1xf32, #tpu.memory_space<vmem>>, vector<1x8x1xf32>
      %201 = vector.shape_cast %200 : vector<1x8x1xf32> to vector<8x1xf32>
      %202 = tpu.reciprocal %201 {approx = true} : vector<8x1xf32> -> vector<8x1xf32>
      %203 = vector.broadcast %202 : vector<8x1xf32> to vector<8x8xf32>
      %204 = arith.mulf %199, %203 : vector<8x8xf32>
      %205 = arith.truncf %204 : vector<8x8xf32> to vector<8x8xbf16>
      %c0_124 = arith.constant 0 : index
      %c0_125 = arith.constant 0 : index
      %c16 = arith.constant 16 : index
      %206 = vector.load %arg7[%c0_124, %c0_125, %c16] : memref<1x8x32xbf16, #tpu.memory_space<vmem>>, vector<1x8x8xbf16>
      %207 = vector.shape_cast %206 : vector<1x8x8xbf16> to vector<8x8xbf16>
      %208 = vector.shape_cast %205 : vector<8x8xbf16> to vector<1x8x8xbf16>
      tpu.vector_store %arg7[%c0_124, %c0_125, %c16], %208 {strides = array<i32>} : memref<1x8x32xbf16, #tpu.memory_space<vmem>>, vector<1x8x8xbf16>,
      %c3_126 = arith.constant 3 : index
      %c0_127 = arith.constant 0 : index
      %c0_128 = arith.constant 0 : index
      %209 = vector.load %arg10[%c3_126, %c0_127, %c0_128] : memref<4x8x8xf32, #tpu.memory_space<vmem>>, vector<1x8x8xf32>
      %210 = vector.shape_cast %209 : vector<1x8x8xf32> to vector<8x8xf32>
      %c3_129 = arith.constant 3 : index
      %c0_130 = arith.constant 0 : index
      %c0_131 = arith.constant 0 : index
      %211 = vector.load %arg9[%c3_129, %c0_130, %c0_131] : memref<4x8x1xf32, #tpu.memory_space<vmem>>, vector<1x8x1xf32>
      %212 = vector.shape_cast %211 : vector<1x8x1xf32> to vector<8x1xf32>
      %213 = tpu.reciprocal %212 {approx = true} : vector<8x1xf32> -> vector<8x1xf32>
      %214 = vector.broadcast %213 : vector<8x1xf32> to vector<8x8xf32>
      %215 = arith.mulf %210, %214 : vector<8x8xf32>
      %216 = arith.truncf %215 : vector<8x8xf32> to vector<8x8xbf16>
      %c0_132 = arith.constant 0 : index
      %c0_133 = arith.constant 0 : index
      %c24 = arith.constant 24 : index
      %217 = vector.load %arg7[%c0_132, %c0_133, %c24] : memref<1x8x32xbf16, #tpu.memory_space<vmem>>, vector<1x8x8xbf16>
      %218 = vector.shape_cast %217 : vector<1x8x8xbf16> to vector<8x8xbf16>
      %219 = vector.shape_cast %216 : vector<8x8xbf16> to vector<1x8x8xbf16>
      tpu.vector_store %arg7[%c0_132, %c0_133, %c24], %219 {strides = array<i32>} : memref<1x8x32xbf16, #tpu.memory_space<vmem>>, vector<1x8x8xbf16>,
    } else {
    }
    return
  }
  func.func @transform_0(%arg0: i32, %arg1: i32, %arg2: i32) -> (i32, i32, i32) {
    %c0_i32 = arith.constant 0 : i32
    %c0_i32_0 = arith.constant 0 : i32
    return %arg0, %c0_i32, %arg2 : i32, i32, i32
  }
  func.func @transform_1(%arg0: i32, %arg1: i32, %arg2: i32) -> (i32, i32, i32) {
    %c0_i32 = arith.constant 0 : i32
    %c0_i32_0 = arith.constant 0 : i32
    return %arg0, %arg1, %c0_i32 : i32, i32, i32
  }
  func.func @transform_2(%arg0: i32, %arg1: i32, %arg2: i32) -> (i32, i32, i32) {
    %c0_i32 = arith.constant 0 : i32
    %c0_i32_0 = arith.constant 0 : i32
    return %arg0, %arg2, %c0_i32 : i32, i32, i32
  }
  func.func @transform_3(%arg0: i32, %arg1: i32, %arg2: i32) -> (i32, i32, i32) {
    %c0_i32 = arith.constant 0 : i32
    %c0_i32_0 = arith.constant 0 : i32
    return %arg0, %arg2, %c0_i32 : i32, i32, i32
  }
  func.func @transform_4(%arg0: i32, %arg1: i32, %arg2: i32) -> (i32, i32, i32) {
    %c0_i32 = arith.constant 0 : i32
    %c0_i32_0 = arith.constant 0 : i32
    return %arg0, %arg1, %c0_i32 : i32, i32, i32
  }
}

module attributes {stable_mosaic.version = 11 : i64} {
  func.func @_ln_linear_kernel(%arg0: i32, %arg1: memref<16x32xf32, #tpu.memory_space<vmem>>, %arg2: memref<1x32xf32, #tpu.memory_space<vmem>>, %arg3: memref<1x32xf32, #tpu.memory_space<vmem>>, %arg4: memref<32x32xbf16, #tpu.memory_space<vmem>>, %arg5: memref<1x32xf32, #tpu.memory_space<vmem>>, %arg6: memref<16x32xbf16, #tpu.memory_space<vmem>>) attributes {dimension_semantics = [#tpu.dimension_semantics<parallel>], iteration_bounds = array<i64: 1>, scalar_prefetch = 0 : i64, scratch_operands = 0 : i64, tpu.core_type = #tpu.core_type<tc>, window_params = [{transform_indices = @transform_0, window_bounds = array<i64: 16, 32>}, {pipeline_mode = #tpu.pipeline_mode<synchronous>, transform_indices = @transform_1, window_bounds = array<i64: 1, 32>}, {pipeline_mode = #tpu.pipeline_mode<synchronous>, transform_indices = @transform_2, window_bounds = array<i64: 1, 32>}, {pipeline_mode = #tpu.pipeline_mode<synchronous>, transform_indices = @transform_3, window_bounds = array<i64: 32, 32>}, {pipeline_mode = #tpu.pipeline_mode<synchronous>, transform_indices = @transform_4, window_bounds = array<i64: 1, 32>}, {transform_indices = @transform_5, window_bounds = array<i64: 16, 32>}]} {
    %c0 = arith.constant 0 : index
    %c0_0 = arith.constant 0 : index
    %0 = vector.load %arg1[%c0, %c0_0] : memref<16x32xf32, #tpu.memory_space<vmem>>, vector<16x32xf32>
    %cst = arith.constant dense<0.000000e+00> : vector<16xf32>
    %1 = vector.multi_reduction <add>, %0, %cst [1] : vector<16x32xf32> to vector<16xf32>
    %2 = vector.shape_cast %1 : vector<16xf32> to vector<16x1xf32>
    %cst_1 = arith.constant 3.200000e+01 : f32
    %3 = vector.broadcast %cst_1 : f32 to vector<16x1xf32>
    %4 = arith.divf %2, %3 : vector<16x1xf32>
    %5 = vector.broadcast %4 : vector<16x1xf32> to vector<16x32xf32>
    %6 = arith.subf %0, %5 : vector<16x32xf32>
    %7 = arith.mulf %6, %6 : vector<16x32xf32>
    %cst_2 = arith.constant dense<0.000000e+00> : vector<16xf32>
    %8 = vector.multi_reduction <add>, %7, %cst_2 [1] : vector<16x32xf32> to vector<16xf32>
    %9 = vector.shape_cast %8 : vector<16xf32> to vector<16x1xf32>
    %cst_3 = arith.constant 3.200000e+01 : f32
    %10 = vector.broadcast %cst_3 : f32 to vector<16x1xf32>
    %11 = arith.divf %9, %10 : vector<16x1xf32>
    %12 = vector.broadcast %4 : vector<16x1xf32> to vector<16x32xf32>
    %13 = arith.subf %0, %12 : vector<16x32xf32>
    %cst_4 = arith.constant 9.99999974E-6 : f32
    %14 = vector.broadcast %cst_4 : f32 to vector<16x1xf32>
    %15 = arith.addf %11, %14 : vector<16x1xf32>
    %16 = math.rsqrt %15 : vector<16x1xf32>
    %17 = vector.broadcast %16 : vector<16x1xf32> to vector<16x32xf32>
    %18 = arith.mulf %13, %17 : vector<16x32xf32>
    %c0_5 = arith.constant 0 : index
    %c0_6 = arith.constant 0 : index
    %19 = vector.load %arg2[%c0_5, %c0_6] : memref<1x32xf32, #tpu.memory_space<vmem>>, vector<1x32xf32>
    %20 = vector.broadcast %19 : vector<1x32xf32> to vector<16x32xf32>
    %21 = arith.mulf %18, %20 : vector<16x32xf32>
    %c0_7 = arith.constant 0 : index
    %c0_8 = arith.constant 0 : index
    %22 = vector.load %arg3[%c0_7, %c0_8] : memref<1x32xf32, #tpu.memory_space<vmem>>, vector<1x32xf32>
    %23 = vector.broadcast %22 : vector<1x32xf32> to vector<16x32xf32>
    %24 = arith.addf %21, %23 : vector<16x32xf32>
    %25 = arith.truncf %24 : vector<16x32xf32> to vector<16x32xbf16>
    %c0_9 = arith.constant 0 : index
    %c0_10 = arith.constant 0 : index
    %26 = vector.load %arg4[%c0_9, %c0_10] : memref<32x32xbf16, #tpu.memory_space<vmem>>, vector<32x32xbf16>
    %cst_11 = arith.constant dense<0.000000e+00> : vector<16x32xf32>
    %27 = tpu.matmul %25, %26, %cst_11 {dimension_numbers = #tpu.dot_dimension_numbers<[1], [0], [0], [1], [0, 0, 1, 1], [], []>} : vector<16x32xbf16>, vector<32x32xbf16>, vector<16x32xf32> -> vector<16x32xf32>
    %c0_12 = arith.constant 0 : index
    %c0_13 = arith.constant 0 : index
    %28 = vector.load %arg5[%c0_12, %c0_13] : memref<1x32xf32, #tpu.memory_space<vmem>>, vector<1x32xf32>
    %29 = vector.broadcast %28 : vector<1x32xf32> to vector<16x32xf32>
    %30 = arith.addf %27, %29 : vector<16x32xf32>
    %31 = arith.truncf %30 : vector<16x32xf32> to vector<16x32xbf16>
    %c0_14 = arith.constant 0 : index
    %c0_15 = arith.constant 0 : index
    %32 = vector.load %arg6[%c0_14, %c0_15] : memref<16x32xbf16, #tpu.memory_space<vmem>>, vector<16x32xbf16>
    tpu.vector_store %arg6[%c0_14, %c0_15], %31 {strides = array<i32>} : memref<16x32xbf16, #tpu.memory_space<vmem>>, vector<16x32xbf16>,
    return
  }
  func.func @transform_0(%arg0: i32) -> (i32, i32) {
    %c0_i32 = arith.constant 0 : i32
    %c0_i32_0 = arith.constant 0 : i32
    return %arg0, %c0_i32 : i32, i32
  }
  func.func @transform_1(%arg0: i32) -> (i32, i32) {
    %c0_i32 = arith.constant 0 : i32
    %c0_i32_0 = arith.constant 0 : i32
    %c0_i32_1 = arith.constant 0 : i32
    return %c0_i32, %c0_i32_0 : i32, i32
  }
  func.func @transform_2(%arg0: i32) -> (i32, i32) {
    %c0_i32 = arith.constant 0 : i32
    %c0_i32_0 = arith.constant 0 : i32
    %c0_i32_1 = arith.constant 0 : i32
    return %c0_i32, %c0_i32_0 : i32, i32
  }
  func.func @transform_3(%arg0: i32) -> (i32, i32) {
    %c0_i32 = arith.constant 0 : i32
    %c0_i32_0 = arith.constant 0 : i32
    %c0_i32_1 = arith.constant 0 : i32
    return %c0_i32, %c0_i32_0 : i32, i32
  }
  func.func @transform_4(%arg0: i32) -> (i32, i32) {
    %c0_i32 = arith.constant 0 : i32
    %c0_i32_0 = arith.constant 0 : i32
    %c0_i32_1 = arith.constant 0 : i32
    return %c0_i32, %c0_i32_0 : i32, i32
  }
  func.func @transform_5(%arg0: i32) -> (i32, i32) {
    %c0_i32 = arith.constant 0 : i32
    %c0_i32_0 = arith.constant 0 : i32
    return %arg0, %c0_i32 : i32, i32
  }
}

module attributes {stable_mosaic.version = 11 : i64} {
  func.func @_linear_residual_kernel(%arg0: i32, %arg1: memref<16x32xbf16, #tpu.memory_space<vmem>>, %arg2: memref<16x32xf32, #tpu.memory_space<vmem>>, %arg3: memref<32x32xbf16, #tpu.memory_space<vmem>>, %arg4: memref<1x32xf32, #tpu.memory_space<vmem>>, %arg5: memref<16x32xf32, #tpu.memory_space<vmem>>) attributes {dimension_semantics = [#tpu.dimension_semantics<parallel>], iteration_bounds = array<i64: 1>, scalar_prefetch = 0 : i64, scratch_operands = 0 : i64, tpu.core_type = #tpu.core_type<tc>, window_params = [{transform_indices = @transform_0, window_bounds = array<i64: 16, 32>}, {transform_indices = @transform_1, window_bounds = array<i64: 16, 32>}, {pipeline_mode = #tpu.pipeline_mode<synchronous>, transform_indices = @transform_2, window_bounds = array<i64: 32, 32>}, {pipeline_mode = #tpu.pipeline_mode<synchronous>, transform_indices = @transform_3, window_bounds = array<i64: 1, 32>}, {transform_indices = @transform_4, window_bounds = array<i64: 16, 32>}]} {
    %c0 = arith.constant 0 : index
    %c0_0 = arith.constant 0 : index
    %0 = vector.load %arg1[%c0, %c0_0] : memref<16x32xbf16, #tpu.memory_space<vmem>>, vector<16x32xbf16>
    %c0_1 = arith.constant 0 : index
    %c0_2 = arith.constant 0 : index
    %1 = vector.load %arg3[%c0_1, %c0_2] : memref<32x32xbf16, #tpu.memory_space<vmem>>, vector<32x32xbf16>
    %cst = arith.constant dense<0.000000e+00> : vector<16x32xf32>
    %2 = tpu.matmul %0, %1, %cst {dimension_numbers = #tpu.dot_dimension_numbers<[1], [0], [0], [1], [0, 0, 1, 1], [], []>} : vector<16x32xbf16>, vector<32x32xbf16>, vector<16x32xf32> -> vector<16x32xf32>
    %c0_3 = arith.constant 0 : index
    %c0_4 = arith.constant 0 : index
    %3 = vector.load %arg4[%c0_3, %c0_4] : memref<1x32xf32, #tpu.memory_space<vmem>>, vector<1x32xf32>
    %4 = vector.broadcast %3 : vector<1x32xf32> to vector<16x32xf32>
    %5 = arith.addf %2, %4 : vector<16x32xf32>
    %c0_5 = arith.constant 0 : index
    %c0_6 = arith.constant 0 : index
    %6 = vector.load %arg2[%c0_5, %c0_6] : memref<16x32xf32, #tpu.memory_space<vmem>>, vector<16x32xf32>
    %7 = arith.addf %6, %5 : vector<16x32xf32>
    %c0_7 = arith.constant 0 : index
    %c0_8 = arith.constant 0 : index
    %8 = vector.load %arg5[%c0_7, %c0_8] : memref<16x32xf32, #tpu.memory_space<vmem>>, vector<16x32xf32>
    tpu.vector_store %arg5[%c0_7, %c0_8], %7 {strides = array<i32>} : memref<16x32xf32, #tpu.memory_space<vmem>>, vector<16x32xf32>,
    return
  }
  func.func @transform_0(%arg0: i32) -> (i32, i32) {
    %c0_i32 = arith.constant 0 : i32
    %c0_i32_0 = arith.constant 0 : i32
    return %arg0, %c0_i32 : i32, i32
  }
  func.func @transform_1(%arg0: i32) -> (i32, i32) {
    %c0_i32 = arith.constant 0 : i32
    %c0_i32_0 = arith.constant 0 : i32
    return %arg0, %c0_i32 : i32, i32
  }
  func.func @transform_2(%arg0: i32) -> (i32, i32) {
    %c0_i32 = arith.constant 0 : i32
    %c0_i32_0 = arith.constant 0 : i32
    %c0_i32_1 = arith.constant 0 : i32
    return %c0_i32, %c0_i32_0 : i32, i32
  }
  func.func @transform_3(%arg0: i32) -> (i32, i32) {
    %c0_i32 = arith.constant 0 : i32
    %c0_i32_0 = arith.constant 0 : i32
    %c0_i32_1 = arith.constant 0 : i32
    return %c0_i32, %c0_i32_0 : i32, i32
  }
  func.func @transform_4(%arg0: i32) -> (i32, i32) {
    %c0_i32 = arith.constant 0 : i32
    %c0_i32_0 = arith.constant 0 : i32
    return %arg0, %c0_i32 : i32, i32
  }
}

module attributes {stable_mosaic.version = 11 : i64} {
  func.func @_ln_ffn_kernel(%arg0: i32, %arg1: memref<16x32xf32, #tpu.memory_space<vmem>>, %arg2: memref<1x32xf32, #tpu.memory_space<vmem>>, %arg3: memref<1x32xf32, #tpu.memory_space<vmem>>, %arg4: memref<32x64xbf16, #tpu.memory_space<vmem>>, %arg5: memref<1x64xf32, #tpu.memory_space<vmem>>, %arg6: memref<64x32xbf16, #tpu.memory_space<vmem>>, %arg7: memref<1x32xf32, #tpu.memory_space<vmem>>, %arg8: memref<16x32xf32, #tpu.memory_space<vmem>>) attributes {dimension_semantics = [#tpu.dimension_semantics<parallel>], iteration_bounds = array<i64: 1>, scalar_prefetch = 0 : i64, scratch_operands = 0 : i64, tpu.core_type = #tpu.core_type<tc>, window_params = [{transform_indices = @transform_0, window_bounds = array<i64: 16, 32>}, {pipeline_mode = #tpu.pipeline_mode<synchronous>, transform_indices = @transform_1, window_bounds = array<i64: 1, 32>}, {pipeline_mode = #tpu.pipeline_mode<synchronous>, transform_indices = @transform_2, window_bounds = array<i64: 1, 32>}, {pipeline_mode = #tpu.pipeline_mode<synchronous>, transform_indices = @transform_3, window_bounds = array<i64: 32, 64>}, {pipeline_mode = #tpu.pipeline_mode<synchronous>, transform_indices = @transform_4, window_bounds = array<i64: 1, 64>}, {pipeline_mode = #tpu.pipeline_mode<synchronous>, transform_indices = @transform_5, window_bounds = array<i64: 64, 32>}, {pipeline_mode = #tpu.pipeline_mode<synchronous>, transform_indices = @transform_6, window_bounds = array<i64: 1, 32>}, {transform_indices = @transform_7, window_bounds = array<i64: 16, 32>}]} {
    %c0 = arith.constant 0 : index
    %c0_0 = arith.constant 0 : index
    %0 = vector.load %arg1[%c0, %c0_0] : memref<16x32xf32, #tpu.memory_space<vmem>>, vector<16x32xf32>
    %cst = arith.constant dense<0.000000e+00> : vector<16xf32>
    %1 = vector.multi_reduction <add>, %0, %cst [1] : vector<16x32xf32> to vector<16xf32>
    %2 = vector.shape_cast %1 : vector<16xf32> to vector<16x1xf32>
    %cst_1 = arith.constant 3.200000e+01 : f32
    %3 = vector.broadcast %cst_1 : f32 to vector<16x1xf32>
    %4 = arith.divf %2, %3 : vector<16x1xf32>
    %5 = vector.broadcast %4 : vector<16x1xf32> to vector<16x32xf32>
    %6 = arith.subf %0, %5 : vector<16x32xf32>
    %7 = arith.mulf %6, %6 : vector<16x32xf32>
    %cst_2 = arith.constant dense<0.000000e+00> : vector<16xf32>
    %8 = vector.multi_reduction <add>, %7, %cst_2 [1] : vector<16x32xf32> to vector<16xf32>
    %9 = vector.shape_cast %8 : vector<16xf32> to vector<16x1xf32>
    %cst_3 = arith.constant 3.200000e+01 : f32
    %10 = vector.broadcast %cst_3 : f32 to vector<16x1xf32>
    %11 = arith.divf %9, %10 : vector<16x1xf32>
    %12 = vector.broadcast %4 : vector<16x1xf32> to vector<16x32xf32>
    %13 = arith.subf %0, %12 : vector<16x32xf32>
    %cst_4 = arith.constant 9.99999974E-6 : f32
    %14 = vector.broadcast %cst_4 : f32 to vector<16x1xf32>
    %15 = arith.addf %11, %14 : vector<16x1xf32>
    %16 = math.rsqrt %15 : vector<16x1xf32>
    %17 = vector.broadcast %16 : vector<16x1xf32> to vector<16x32xf32>
    %18 = arith.mulf %13, %17 : vector<16x32xf32>
    %c0_5 = arith.constant 0 : index
    %c0_6 = arith.constant 0 : index
    %19 = vector.load %arg2[%c0_5, %c0_6] : memref<1x32xf32, #tpu.memory_space<vmem>>, vector<1x32xf32>
    %20 = vector.broadcast %19 : vector<1x32xf32> to vector<16x32xf32>
    %21 = arith.mulf %18, %20 : vector<16x32xf32>
    %c0_7 = arith.constant 0 : index
    %c0_8 = arith.constant 0 : index
    %22 = vector.load %arg3[%c0_7, %c0_8] : memref<1x32xf32, #tpu.memory_space<vmem>>, vector<1x32xf32>
    %23 = vector.broadcast %22 : vector<1x32xf32> to vector<16x32xf32>
    %24 = arith.addf %21, %23 : vector<16x32xf32>
    %25 = arith.truncf %24 : vector<16x32xf32> to vector<16x32xbf16>
    %c0_9 = arith.constant 0 : index
    %c0_10 = arith.constant 0 : index
    %26 = vector.load %arg4[%c0_9, %c0_10] : memref<32x64xbf16, #tpu.memory_space<vmem>>, vector<32x64xbf16>
    %cst_11 = arith.constant dense<0.000000e+00> : vector<16x64xf32>
    %27 = tpu.matmul %25, %26, %cst_11 {dimension_numbers = #tpu.dot_dimension_numbers<[1], [0], [0], [1], [0, 0, 1, 1], [], []>} : vector<16x32xbf16>, vector<32x64xbf16>, vector<16x64xf32> -> vector<16x64xf32>
    %c0_12 = arith.constant 0 : index
    %c0_13 = arith.constant 0 : index
    %28 = vector.load %arg5[%c0_12, %c0_13] : memref<1x64xf32, #tpu.memory_space<vmem>>, vector<1x64xf32>
    %29 = vector.broadcast %28 : vector<1x64xf32> to vector<16x64xf32>
    %30 = arith.addf %27, %29 : vector<16x64xf32>
    %cst_14 = arith.constant 0.000000e+00 : f32
    %31 = vector.broadcast %cst_14 : f32 to vector<16x64xf32>
    %32 = arith.maximumf %30, %31 : vector<16x64xf32>
    %33 = arith.truncf %32 : vector<16x64xf32> to vector<16x64xbf16>
    %c0_15 = arith.constant 0 : index
    %c0_16 = arith.constant 0 : index
    %34 = vector.load %arg6[%c0_15, %c0_16] : memref<64x32xbf16, #tpu.memory_space<vmem>>, vector<64x32xbf16>
    %cst_17 = arith.constant dense<0.000000e+00> : vector<16x32xf32>
    %35 = tpu.matmul %33, %34, %cst_17 {dimension_numbers = #tpu.dot_dimension_numbers<[1], [0], [0], [1], [0, 0, 1, 1], [], []>} : vector<16x64xbf16>, vector<64x32xbf16>, vector<16x32xf32> -> vector<16x32xf32>
    %c0_18 = arith.constant 0 : index
    %c0_19 = arith.constant 0 : index
    %36 = vector.load %arg7[%c0_18, %c0_19] : memref<1x32xf32, #tpu.memory_space<vmem>>, vector<1x32xf32>
    %37 = vector.broadcast %36 : vector<1x32xf32> to vector<16x32xf32>
    %38 = arith.addf %35, %37 : vector<16x32xf32>
    %39 = arith.addf %0, %38 : vector<16x32xf32>
    %c0_20 = arith.constant 0 : index
    %c0_21 = arith.constant 0 : index
    %40 = vector.load %arg8[%c0_20, %c0_21] : memref<16x32xf32, #tpu.memory_space<vmem>>, vector<16x32xf32>
    tpu.vector_store %arg8[%c0_20, %c0_21], %39 {strides = array<i32>} : memref<16x32xf32, #tpu.memory_space<vmem>>, vector<16x32xf32>,
    return
  }
  func.func @transform_0(%arg0: i32) -> (i32, i32) {
    %c0_i32 = arith.constant 0 : i32
    %c0_i32_0 = arith.constant 0 : i32
    return %arg0, %c0_i32 : i32, i32
  }
  func.func @transform_1(%arg0: i32) -> (i32, i32) {
    %c0_i32 = arith.constant 0 : i32
    %c0_i32_0 = arith.constant 0 : i32
    %c0_i32_1 = arith.constant 0 : i32
    return %c0_i32, %c0_i32_0 : i32, i32
  }
  func.func @transform_2(%arg0: i32) -> (i32, i32) {
    %c0_i32 = arith.constant 0 : i32
    %c0_i32_0 = arith.constant 0 : i32
    %c0_i32_1 = arith.constant 0 : i32
    return %c0_i32, %c0_i32_0 : i32, i32
  }
  func.func @transform_3(%arg0: i32) -> (i32, i32) {
    %c0_i32 = arith.constant 0 : i32
    %c0_i32_0 = arith.constant 0 : i32
    %c0_i32_1 = arith.constant 0 : i32
    return %c0_i32, %c0_i32_0 : i32, i32
  }
  func.func @transform_4(%arg0: i32) -> (i32, i32) {
    %c0_i32 = arith.constant 0 : i32
    %c0_i32_0 = arith.constant 0 : i32
    %c0_i32_1 = arith.constant 0 : i32
    return %c0_i32, %c0_i32_0 : i32, i32
  }
  func.func @transform_5(%arg0: i32) -> (i32, i32) {
    %c0_i32 = arith.constant 0 : i32
    %c0_i32_0 = arith.constant 0 : i32
    %c0_i32_1 = arith.constant 0 : i32
    return %c0_i32, %c0_i32_0 : i32, i32
  }
  func.func @transform_6(%arg0: i32) -> (i32, i32) {
    %c0_i32 = arith.constant 0 : i32
    %c0_i32_0 = arith.constant 0 : i32
    %c0_i32_1 = arith.constant 0 : i32
    return %c0_i32, %c0_i32_0 : i32, i32
  }
  func.func @transform_7(%arg0: i32) -> (i32, i32) {
    %c0_i32 = arith.constant 0 : i32
    %c0_i32_0 = arith.constant 0 : i32
    return %arg0, %c0_i32 : i32, i32
  }
}

module attributes {stable_mosaic.version = 11 : i64} {
  func.func @_ln_linear_kernel(%arg0: i32, %arg1: memref<16x32xf32, #tpu.memory_space<vmem>>, %arg2: memref<1x32xf32, #tpu.memory_space<vmem>>, %arg3: memref<1x32xf32, #tpu.memory_space<vmem>>, %arg4: memref<32x96xbf16, #tpu.memory_space<vmem>>, %arg5: memref<1x96xf32, #tpu.memory_space<vmem>>, %arg6: memref<16x32xbf16, #tpu.memory_space<vmem>>, %arg7: memref<16x32xbf16, #tpu.memory_space<vmem>>, %arg8: memref<16x32xbf16, #tpu.memory_space<vmem>>) attributes {dimension_semantics = [#tpu.dimension_semantics<parallel>], iteration_bounds = array<i64: 1>, scalar_prefetch = 0 : i64, scratch_operands = 0 : i64, tpu.core_type = #tpu.core_type<tc>, window_params = [{transform_indices = @transform_0, window_bounds = array<i64: 16, 32>}, {pipeline_mode = #tpu.pipeline_mode<synchronous>, transform_indices = @transform_1, window_bounds = array<i64: 1, 32>}, {pipeline_mode = #tpu.pipeline_mode<synchronous>, transform_indices = @transform_2, window_bounds = array<i64: 1, 32>}, {pipeline_mode = #tpu.pipeline_mode<synchronous>, transform_indices = @transform_3, window_bounds = array<i64: 32, 96>}, {pipeline_mode = #tpu.pipeline_mode<synchronous>, transform_indices = @transform_4, window_bounds = array<i64: 1, 96>}, {transform_indices = @transform_5, window_bounds = array<i64: 16, 32>}, {transform_indices = @transform_6, window_bounds = array<i64: 16, 32>}, {transform_indices = @transform_7, window_bounds = array<i64: 16, 32>}]} {
    %c0 = arith.constant 0 : index
    %c0_0 = arith.constant 0 : index
    %0 = vector.load %arg1[%c0, %c0_0] : memref<16x32xf32, #tpu.memory_space<vmem>>, vector<16x32xf32>
    %cst = arith.constant dense<0.000000e+00> : vector<16xf32>
    %1 = vector.multi_reduction <add>, %0, %cst [1] : vector<16x32xf32> to vector<16xf32>
    %2 = vector.shape_cast %1 : vector<16xf32> to vector<16x1xf32>
    %cst_1 = arith.constant 3.200000e+01 : f32
    %3 = vector.broadcast %cst_1 : f32 to vector<16x1xf32>
    %4 = arith.divf %2, %3 : vector<16x1xf32>
    %5 = vector.broadcast %4 : vector<16x1xf32> to vector<16x32xf32>
    %6 = arith.subf %0, %5 : vector<16x32xf32>
    %7 = arith.mulf %6, %6 : vector<16x32xf32>
    %cst_2 = arith.constant dense<0.000000e+00> : vector<16xf32>
    %8 = vector.multi_reduction <add>, %7, %cst_2 [1] : vector<16x32xf32> to vector<16xf32>
    %9 = vector.shape_cast %8 : vector<16xf32> to vector<16x1xf32>
    %cst_3 = arith.constant 3.200000e+01 : f32
    %10 = vector.broadcast %cst_3 : f32 to vector<16x1xf32>
    %11 = arith.divf %9, %10 : vector<16x1xf32>
    %12 = vector.broadcast %4 : vector<16x1xf32> to vector<16x32xf32>
    %13 = arith.subf %0, %12 : vector<16x32xf32>
    %cst_4 = arith.constant 9.99999974E-6 : f32
    %14 = vector.broadcast %cst_4 : f32 to vector<16x1xf32>
    %15 = arith.addf %11, %14 : vector<16x1xf32>
    %16 = math.rsqrt %15 : vector<16x1xf32>
    %17 = vector.broadcast %16 : vector<16x1xf32> to vector<16x32xf32>
    %18 = arith.mulf %13, %17 : vector<16x32xf32>
    %c0_5 = arith.constant 0 : index
    %c0_6 = arith.constant 0 : index
    %19 = vector.load %arg2[%c0_5, %c0_6] : memref<1x32xf32, #tpu.memory_space<vmem>>, vector<1x32xf32>
    %20 = vector.broadcast %19 : vector<1x32xf32> to vector<16x32xf32>
    %21 = arith.mulf %18, %20 : vector<16x32xf32>
    %c0_7 = arith.constant 0 : index
    %c0_8 = arith.constant 0 : index
    %22 = vector.load %arg3[%c0_7, %c0_8] : memref<1x32xf32, #tpu.memory_space<vmem>>, vector<1x32xf32>
    %23 = vector.broadcast %22 : vector<1x32xf32> to vector<16x32xf32>
    %24 = arith.addf %21, %23 : vector<16x32xf32>
    %25 = arith.truncf %24 : vector<16x32xf32> to vector<16x32xbf16>
    %c0_9 = arith.constant 0 : index
    %c0_10 = arith.constant 0 : index
    %26 = vector.load %arg4[%c0_9, %c0_10] : memref<32x96xbf16, #tpu.memory_space<vmem>>, vector<32x96xbf16>
    %cst_11 = arith.constant dense<0.000000e+00> : vector<16x96xf32>
    %27 = tpu.matmul %25, %26, %cst_11 {dimension_numbers = #tpu.dot_dimension_numbers<[1], [0], [0], [1], [0, 0, 1, 1], [], []>} : vector<16x32xbf16>, vector<32x96xbf16>, vector<16x96xf32> -> vector<16x96xf32>
    %c0_12 = arith.constant 0 : index
    %c0_13 = arith.constant 0 : index
    %28 = vector.load %arg5[%c0_12, %c0_13] : memref<1x96xf32, #tpu.memory_space<vmem>>, vector<1x96xf32>
    %29 = vector.broadcast %28 : vector<1x96xf32> to vector<16x96xf32>
    %30 = arith.addf %27, %29 : vector<16x96xf32>
    %31 = vector.extract_strided_slice %30 {offsets = [0, 0], sizes = [16, 32], strides = [1, 1]} : vector<16x96xf32> to vector<16x32xf32>
    %32 = arith.truncf %31 : vector<16x32xf32> to vector<16x32xbf16>
    %c0_14 = arith.constant 0 : index
    %c0_15 = arith.constant 0 : index
    %33 = vector.load %arg6[%c0_14, %c0_15] : memref<16x32xbf16, #tpu.memory_space<vmem>>, vector<16x32xbf16>
    tpu.vector_store %arg6[%c0_14, %c0_15], %32 {strides = array<i32>} : memref<16x32xbf16, #tpu.memory_space<vmem>>, vector<16x32xbf16>,
    %34 = vector.extract_strided_slice %30 {offsets = [0, 32], sizes = [16, 32], strides = [1, 1]} : vector<16x96xf32> to vector<16x32xf32>
    %35 = arith.truncf %34 : vector<16x32xf32> to vector<16x32xbf16>
    %c0_16 = arith.constant 0 : index
    %c0_17 = arith.constant 0 : index
    %36 = vector.load %arg7[%c0_16, %c0_17] : memref<16x32xbf16, #tpu.memory_space<vmem>>, vector<16x32xbf16>
    tpu.vector_store %arg7[%c0_16, %c0_17], %35 {strides = array<i32>} : memref<16x32xbf16, #tpu.memory_space<vmem>>, vector<16x32xbf16>,
    %37 = vector.extract_strided_slice %30 {offsets = [0, 64], sizes = [16, 32], strides = [1, 1]} : vector<16x96xf32> to vector<16x32xf32>
    %38 = arith.truncf %37 : vector<16x32xf32> to vector<16x32xbf16>
    %c0_18 = arith.constant 0 : index
    %c0_19 = arith.constant 0 : index
    %39 = vector.load %arg8[%c0_18, %c0_19] : memref<16x32xbf16, #tpu.memory_space<vmem>>, vector<16x32xbf16>
    tpu.vector_store %arg8[%c0_18, %c0_19], %38 {strides = array<i32>} : memref<16x32xbf16, #tpu.memory_space<vmem>>, vector<16x32xbf16>,
    return
  }
  func.func @transform_0(%arg0: i32) -> (i32, i32) {
    %c0_i32 = arith.constant 0 : i32
    %c0_i32_0 = arith.constant 0 : i32
    return %arg0, %c0_i32 : i32, i32
  }
  func.func @transform_1(%arg0: i32) -> (i32, i32) {
    %c0_i32 = arith.constant 0 : i32
    %c0_i32_0 = arith.constant 0 : i32
    %c0_i32_1 = arith.constant 0 : i32
    return %c0_i32, %c0_i32_0 : i32, i32
  }
  func.func @transform_2(%arg0: i32) -> (i32, i32) {
    %c0_i32 = arith.constant 0 : i32
    %c0_i32_0 = arith.constant 0 : i32
    %c0_i32_1 = arith.constant 0 : i32
    return %c0_i32, %c0_i32_0 : i32, i32
  }
  func.func @transform_3(%arg0: i32) -> (i32, i32) {
    %c0_i32 = arith.constant 0 : i32
    %c0_i32_0 = arith.constant 0 : i32
    %c0_i32_1 = arith.constant 0 : i32
    return %c0_i32, %c0_i32_0 : i32, i32
  }
  func.func @transform_4(%arg0: i32) -> (i32, i32) {
    %c0_i32 = arith.constant 0 : i32
    %c0_i32_0 = arith.constant 0 : i32
    %c0_i32_1 = arith.constant 0 : i32
    return %c0_i32, %c0_i32_0 : i32, i32
  }
  func.func @transform_5(%arg0: i32) -> (i32, i32) {
    %c0_i32 = arith.constant 0 : i32
    %c0_i32_0 = arith.constant 0 : i32
    return %arg0, %c0_i32 : i32, i32
  }
  func.func @transform_6(%arg0: i32) -> (i32, i32) {
    %c0_i32 = arith.constant 0 : i32
    %c0_i32_0 = arith.constant 0 : i32
    return %arg0, %c0_i32 : i32, i32
  }
  func.func @transform_7(%arg0: i32) -> (i32, i32) {
    %c0_i32 = arith.constant 0 : i32
    %c0_i32_0 = arith.constant 0 : i32
    return %arg0, %c0_i32 : i32, i32
  }
}

module attributes {stable_mosaic.version = 11 : i64} {
  func.func @_ln_linear_kernel(%arg0: i32, %arg1: memref<16x32xf32, #tpu.memory_space<vmem>>, %arg2: memref<1x32xf32, #tpu.memory_space<vmem>>, %arg3: memref<1x32xf32, #tpu.memory_space<vmem>>, %arg4: memref<32x32xbf16, #tpu.memory_space<vmem>>, %arg5: memref<1x32xf32, #tpu.memory_space<vmem>>, %arg6: memref<16x32xbf16, #tpu.memory_space<vmem>>) attributes {dimension_semantics = [#tpu.dimension_semantics<parallel>], iteration_bounds = array<i64: 1>, scalar_prefetch = 0 : i64, scratch_operands = 0 : i64, tpu.core_type = #tpu.core_type<tc>, window_params = [{transform_indices = @transform_0, window_bounds = array<i64: 16, 32>}, {pipeline_mode = #tpu.pipeline_mode<synchronous>, transform_indices = @transform_1, window_bounds = array<i64: 1, 32>}, {pipeline_mode = #tpu.pipeline_mode<synchronous>, transform_indices = @transform_2, window_bounds = array<i64: 1, 32>}, {pipeline_mode = #tpu.pipeline_mode<synchronous>, transform_indices = @transform_3, window_bounds = array<i64: 32, 32>}, {pipeline_mode = #tpu.pipeline_mode<synchronous>, transform_indices = @transform_4, window_bounds = array<i64: 1, 32>}, {transform_indices = @transform_5, window_bounds = array<i64: 16, 32>}]} {
    %c0 = arith.constant 0 : index
    %c0_0 = arith.constant 0 : index
    %0 = vector.load %arg1[%c0, %c0_0] : memref<16x32xf32, #tpu.memory_space<vmem>>, vector<16x32xf32>
    %cst = arith.constant dense<0.000000e+00> : vector<16xf32>
    %1 = vector.multi_reduction <add>, %0, %cst [1] : vector<16x32xf32> to vector<16xf32>
    %2 = vector.shape_cast %1 : vector<16xf32> to vector<16x1xf32>
    %cst_1 = arith.constant 3.200000e+01 : f32
    %3 = vector.broadcast %cst_1 : f32 to vector<16x1xf32>
    %4 = arith.divf %2, %3 : vector<16x1xf32>
    %5 = vector.broadcast %4 : vector<16x1xf32> to vector<16x32xf32>
    %6 = arith.subf %0, %5 : vector<16x32xf32>
    %7 = arith.mulf %6, %6 : vector<16x32xf32>
    %cst_2 = arith.constant dense<0.000000e+00> : vector<16xf32>
    %8 = vector.multi_reduction <add>, %7, %cst_2 [1] : vector<16x32xf32> to vector<16xf32>
    %9 = vector.shape_cast %8 : vector<16xf32> to vector<16x1xf32>
    %cst_3 = arith.constant 3.200000e+01 : f32
    %10 = vector.broadcast %cst_3 : f32 to vector<16x1xf32>
    %11 = arith.divf %9, %10 : vector<16x1xf32>
    %12 = vector.broadcast %4 : vector<16x1xf32> to vector<16x32xf32>
    %13 = arith.subf %0, %12 : vector<16x32xf32>
    %cst_4 = arith.constant 9.99999974E-6 : f32
    %14 = vector.broadcast %cst_4 : f32 to vector<16x1xf32>
    %15 = arith.addf %11, %14 : vector<16x1xf32>
    %16 = math.rsqrt %15 : vector<16x1xf32>
    %17 = vector.broadcast %16 : vector<16x1xf32> to vector<16x32xf32>
    %18 = arith.mulf %13, %17 : vector<16x32xf32>
    %c0_5 = arith.constant 0 : index
    %c0_6 = arith.constant 0 : index
    %19 = vector.load %arg2[%c0_5, %c0_6] : memref<1x32xf32, #tpu.memory_space<vmem>>, vector<1x32xf32>
    %20 = vector.broadcast %19 : vector<1x32xf32> to vector<16x32xf32>
    %21 = arith.mulf %18, %20 : vector<16x32xf32>
    %c0_7 = arith.constant 0 : index
    %c0_8 = arith.constant 0 : index
    %22 = vector.load %arg3[%c0_7, %c0_8] : memref<1x32xf32, #tpu.memory_space<vmem>>, vector<1x32xf32>
    %23 = vector.broadcast %22 : vector<1x32xf32> to vector<16x32xf32>
    %24 = arith.addf %21, %23 : vector<16x32xf32>
    %25 = arith.truncf %24 : vector<16x32xf32> to vector<16x32xbf16>
    %c0_9 = arith.constant 0 : index
    %c0_10 = arith.constant 0 : index
    %26 = vector.load %arg4[%c0_9, %c0_10] : memref<32x32xbf16, #tpu.memory_space<vmem>>, vector<32x32xbf16>
    %cst_11 = arith.constant dense<0.000000e+00> : vector<16x32xf32>
    %27 = tpu.matmul %25, %26, %cst_11 {dimension_numbers = #tpu.dot_dimension_numbers<[1], [0], [0], [1], [0, 0, 1, 1], [], []>} : vector<16x32xbf16>, vector<32x32xbf16>, vector<16x32xf32> -> vector<16x32xf32>
    %c0_12 = arith.constant 0 : index
    %c0_13 = arith.constant 0 : index
    %28 = vector.load %arg5[%c0_12, %c0_13] : memref<1x32xf32, #tpu.memory_space<vmem>>, vector<1x32xf32>
    %29 = vector.broadcast %28 : vector<1x32xf32> to vector<16x32xf32>
    %30 = arith.addf %27, %29 : vector<16x32xf32>
    %31 = arith.truncf %30 : vector<16x32xf32> to vector<16x32xbf16>
    %c0_14 = arith.constant 0 : index
    %c0_15 = arith.constant 0 : index
    %32 = vector.load %arg6[%c0_14, %c0_15] : memref<16x32xbf16, #tpu.memory_space<vmem>>, vector<16x32xbf16>
    tpu.vector_store %arg6[%c0_14, %c0_15], %31 {strides = array<i32>} : memref<16x32xbf16, #tpu.memory_space<vmem>>, vector<16x32xbf16>,
    return
  }
  func.func @transform_0(%arg0: i32) -> (i32, i32) {
    %c0_i32 = arith.constant 0 : i32
    %c0_i32_0 = arith.constant 0 : i32
    return %arg0, %c0_i32 : i32, i32
  }
  func.func @transform_1(%arg0: i32) -> (i32, i32) {
    %c0_i32 = arith.constant 0 : i32
    %c0_i32_0 = arith.constant 0 : i32
    %c0_i32_1 = arith.constant 0 : i32
    return %c0_i32, %c0_i32_0 : i32, i32
  }
  func.func @transform_2(%arg0: i32) -> (i32, i32) {
    %c0_i32 = arith.constant 0 : i32
    %c0_i32_0 = arith.constant 0 : i32
    %c0_i32_1 = arith.constant 0 : i32
    return %c0_i32, %c0_i32_0 : i32, i32
  }
  func.func @transform_3(%arg0: i32) -> (i32, i32) {
    %c0_i32 = arith.constant 0 : i32
    %c0_i32_0 = arith.constant 0 : i32
    %c0_i32_1 = arith.constant 0 : i32
    return %c0_i32, %c0_i32_0 : i32, i32
  }
  func.func @transform_4(%arg0: i32) -> (i32, i32) {
    %c0_i32 = arith.constant 0 : i32
    %c0_i32_0 = arith.constant 0 : i32
    %c0_i32_1 = arith.constant 0 : i32
    return %c0_i32, %c0_i32_0 : i32, i32
  }
  func.func @transform_5(%arg0: i32) -> (i32, i32) {
    %c0_i32 = arith.constant 0 : i32
    %c0_i32_0 = arith.constant 0 : i32
    return %arg0, %c0_i32 : i32, i32
  }
}

module attributes {stable_mosaic.version = 11 : i64} {
  func.func @_linear_kernel(%arg0: i32, %arg1: memref<16x32xf32, #tpu.memory_space<vmem>>, %arg2: memref<32x64xbf16, #tpu.memory_space<vmem>>, %arg3: memref<1x64xf32, #tpu.memory_space<vmem>>, %arg4: memref<16x32xbf16, #tpu.memory_space<vmem>>, %arg5: memref<16x32xbf16, #tpu.memory_space<vmem>>) attributes {dimension_semantics = [#tpu.dimension_semantics<parallel>], iteration_bounds = array<i64: 1>, scalar_prefetch = 0 : i64, scratch_operands = 0 : i64, tpu.core_type = #tpu.core_type<tc>, window_params = [{transform_indices = @transform_0, window_bounds = array<i64: 16, 32>}, {pipeline_mode = #tpu.pipeline_mode<synchronous>, transform_indices = @transform_1, window_bounds = array<i64: 32, 64>}, {pipeline_mode = #tpu.pipeline_mode<synchronous>, transform_indices = @transform_2, window_bounds = array<i64: 1, 64>}, {transform_indices = @transform_3, window_bounds = array<i64: 16, 32>}, {transform_indices = @transform_4, window_bounds = array<i64: 16, 32>}]} {
    %c0 = arith.constant 0 : index
    %c0_0 = arith.constant 0 : index
    %0 = vector.load %arg1[%c0, %c0_0] : memref<16x32xf32, #tpu.memory_space<vmem>>, vector<16x32xf32>
    %1 = arith.truncf %0 : vector<16x32xf32> to vector<16x32xbf16>
    %c0_1 = arith.constant 0 : index
    %c0_2 = arith.constant 0 : index
    %2 = vector.load %arg2[%c0_1, %c0_2] : memref<32x64xbf16, #tpu.memory_space<vmem>>, vector<32x64xbf16>
    %cst = arith.constant dense<0.000000e+00> : vector<16x64xf32>
    %3 = tpu.matmul %1, %2, %cst {dimension_numbers = #tpu.dot_dimension_numbers<[1], [0], [0], [1], [0, 0, 1, 1], [], []>} : vector<16x32xbf16>, vector<32x64xbf16>, vector<16x64xf32> -> vector<16x64xf32>
    %c0_3 = arith.constant 0 : index
    %c0_4 = arith.constant 0 : index
    %4 = vector.load %arg3[%c0_3, %c0_4] : memref<1x64xf32, #tpu.memory_space<vmem>>, vector<1x64xf32>
    %5 = vector.broadcast %4 : vector<1x64xf32> to vector<16x64xf32>
    %6 = arith.addf %3, %5 : vector<16x64xf32>
    %7 = vector.extract_strided_slice %6 {offsets = [0, 0], sizes = [16, 32], strides = [1, 1]} : vector<16x64xf32> to vector<16x32xf32>
    %8 = arith.truncf %7 : vector<16x32xf32> to vector<16x32xbf16>
    %c0_5 = arith.constant 0 : index
    %c0_6 = arith.constant 0 : index
    %9 = vector.load %arg4[%c0_5, %c0_6] : memref<16x32xbf16, #tpu.memory_space<vmem>>, vector<16x32xbf16>
    tpu.vector_store %arg4[%c0_5, %c0_6], %8 {strides = array<i32>} : memref<16x32xbf16, #tpu.memory_space<vmem>>, vector<16x32xbf16>,
    %10 = vector.extract_strided_slice %6 {offsets = [0, 32], sizes = [16, 32], strides = [1, 1]} : vector<16x64xf32> to vector<16x32xf32>
    %11 = arith.truncf %10 : vector<16x32xf32> to vector<16x32xbf16>
    %c0_7 = arith.constant 0 : index
    %c0_8 = arith.constant 0 : index
    %12 = vector.load %arg5[%c0_7, %c0_8] : memref<16x32xbf16, #tpu.memory_space<vmem>>, vector<16x32xbf16>
    tpu.vector_store %arg5[%c0_7, %c0_8], %11 {strides = array<i32>} : memref<16x32xbf16, #tpu.memory_space<vmem>>, vector<16x32xbf16>,
    return
  }
  func.func @transform_0(%arg0: i32) -> (i32, i32) {
    %c0_i32 = arith.constant 0 : i32
    %c0_i32_0 = arith.constant 0 : i32
    return %arg0, %c0_i32 : i32, i32
  }
  func.func @transform_1(%arg0: i32) -> (i32, i32) {
    %c0_i32 = arith.constant 0 : i32
    %c0_i32_0 = arith.constant 0 : i32
    %c0_i32_1 = arith.constant 0 : i32
    return %c0_i32, %c0_i32_0 : i32, i32
  }
  func.func @transform_2(%arg0: i32) -> (i32, i32) {
    %c0_i32 = arith.constant 0 : i32
    %c0_i32_0 = arith.constant 0 : i32
    %c0_i32_1 = arith.constant 0 : i32
    return %c0_i32, %c0_i32_0 : i32, i32
  }
  func.func @transform_3(%arg0: i32) -> (i32, i32) {
    %c0_i32 = arith.constant 0 : i32
    %c0_i32_0 = arith.constant 0 : i32
    return %arg0, %c0_i32 : i32, i32
  }
  func.func @transform_4(%arg0: i32) -> (i32, i32) {
    %c0_i32 = arith.constant 0 : i32
    %c0_i32_0 = arith.constant 0 : i32
    return %arg0, %c0_i32 : i32, i32
  }
}

module attributes {stable_mosaic.version = 11 : i64} {
  func.func @_linear_kernel(%arg0: i32, %arg1: i32, %arg2: memref<16x32xf32, #tpu.memory_space<vmem>>, %arg3: memref<32x48xbf16, #tpu.memory_space<vmem>>, %arg4: memref<1x48xf32, #tpu.memory_space<vmem>>, %arg5: memref<16x48xf32, #tpu.memory_space<vmem>>) attributes {dimension_semantics = [#tpu.dimension_semantics<parallel>, #tpu.dimension_semantics<parallel>], iteration_bounds = array<i64: 1, 1>, scalar_prefetch = 0 : i64, scratch_operands = 0 : i64, tpu.core_type = #tpu.core_type<tc>, window_params = [{transform_indices = @transform_0, window_bounds = array<i64: 16, 32>}, {transform_indices = @transform_1, window_bounds = array<i64: 32, 48>}, {transform_indices = @transform_2, window_bounds = array<i64: 1, 48>}, {transform_indices = @transform_3, window_bounds = array<i64: 16, 48>}]} {
    %c0 = arith.constant 0 : index
    %c0_0 = arith.constant 0 : index
    %0 = vector.load %arg2[%c0, %c0_0] : memref<16x32xf32, #tpu.memory_space<vmem>>, vector<16x32xf32>
    %1 = arith.truncf %0 : vector<16x32xf32> to vector<16x32xbf16>
    %c0_1 = arith.constant 0 : index
    %c0_2 = arith.constant 0 : index
    %2 = vector.load %arg3[%c0_1, %c0_2] : memref<32x48xbf16, #tpu.memory_space<vmem>>, vector<32x48xbf16>
    %cst = arith.constant dense<0.000000e+00> : vector<16x48xf32>
    %3 = tpu.matmul %1, %2, %cst {dimension_numbers = #tpu.dot_dimension_numbers<[1], [0], [0], [1], [0, 0, 1, 1], [], []>} : vector<16x32xbf16>, vector<32x48xbf16>, vector<16x48xf32> -> vector<16x48xf32>
    %c0_3 = arith.constant 0 : index
    %c0_4 = arith.constant 0 : index
    %4 = vector.load %arg4[%c0_3, %c0_4] : memref<1x48xf32, #tpu.memory_space<vmem>>, vector<1x48xf32>
    %5 = vector.broadcast %4 : vector<1x48xf32> to vector<16x48xf32>
    %6 = arith.addf %3, %5 : vector<16x48xf32>
    %c0_5 = arith.constant 0 : index
    %c0_6 = arith.constant 0 : index
    %7 = vector.load %arg5[%c0_5, %c0_6] : memref<16x48xf32, #tpu.memory_space<vmem>>, vector<16x48xf32>
    tpu.vector_store %arg5[%c0_5, %c0_6], %6 {strides = array<i32>} : memref<16x48xf32, #tpu.memory_space<vmem>>, vector<16x48xf32>,
    return
  }
  func.func @transform_0(%arg0: i32, %arg1: i32) -> (i32, i32) {
    %c0_i32 = arith.constant 0 : i32
    %c0_i32_0 = arith.constant 0 : i32
    return %arg1, %c0_i32 : i32, i32
  }
  func.func @transform_1(%arg0: i32, %arg1: i32) -> (i32, i32) {
    %c0_i32 = arith.constant 0 : i32
    %c0_i32_0 = arith.constant 0 : i32
    return %c0_i32, %arg0 : i32, i32
  }
  func.func @transform_2(%arg0: i32, %arg1: i32) -> (i32, i32) {
    %c0_i32 = arith.constant 0 : i32
    %c0_i32_0 = arith.constant 0 : i32
    return %c0_i32, %arg0 : i32, i32
  }
  func.func @transform_3(%arg0: i32, %arg1: i32) -> (i32, i32) {
    %c0_i32 = arith.constant 0 : i32
    return %arg1, %arg0 : i32, i32
  }
}

</mosaic_0001>

<llo_original>
// kernel: tpu_custom_call.1
$region0: #{tpu_custom_call.1}
  #allocation0 [shape = 'u32[]', space=smem, size = 0x4, offset = 0x4, fixed_abs, tag = 'smem constant byte address 0x4 - core index']
  #allocation1 [shape = 'u32[72,128]{1,0:T(1,128)}', space=vmem, size = 0x9000, scoped, tag = 'internal scratch']
  %s0 = inlined_call_operand.hbm [shape: f32[8,128], index: 0, kind: input, shape index: {}]
  %s1 = inlined_call_operand.hbm [shape: f32[16,128], index: 1, kind: output, shape index: {}]
  %s2 = sld [smem:[#allocation0]]
  $region41: #{tpu_custom_call.1} parent=0
    _
  %s4 = ssub.s32 1, %s2
  %s5 = scalar_select 0, %s4, %s2
  $region1: #{tpu_custom_call.1} parent=0
    #allocation2 [shape = 'u8[4096]{0}', space=vmem, size = 0x1000, scoped, tag = 'input window, operand 0, single buffered']
    #allocation3 [shape = 's32[2]{0}', space=sflag, size = 0x8, scoped, tag = 'scoped memory for tpu_custom_call.1']
    #allocation4 [shape = 's32[2]{0}', space=sflag, size = 0x8, scoped, tag = 'scoped memory for tpu_custom_call.1']
    #allocation5 [shape = 'u8[8192]{0}', space=vmem, size = 0x2000, scoped, tag = 'output window, operand 0']
    %6 = vsyncpa [#allocation3], 0
    %7 = vsyncpa [#allocation4], 0
    %s8 = scalar_lea.sflag [#allocation4], 1
    %9 = vsyncpa %s8, 0
    loop: start=0, step=1, limit=4
    $region2: #{tpu_custom_call.1} parent=1 // loop_pre_header
      _
    $region3: #{tpu_custom_call.1} parent=1 // loop_header
      %s11 = sphi 0, %s15
      %p12 = scmp.ge.s32.totalorder %s11, 4
      %s19 = sphi 0, %s19
      %s21 = sphi 0, %s19
      %s22 = sphi 0, %s21
      %s36 = sphi 0, %s22
      %s42 = sphi 0, %s44
      %s45 = sphi 0, %s42
      %s46 = sphi 0, %s45
      %s62 = sphi 0, %s46
    $region4: #{tpu_custom_call.1} parent=1 // loop_header_branch
      %14 = sbr.rel (%p12) target = $region8
    $region5: #{tpu_custom_call.1} parent=1 // loop_body
      %s16 = ssub.s32 %s11, 1
      %s17 = ssub.s32 %s11, 2
      %s18 = sadd.s32 %s11, 1
      %s20 = sadd.s32 %s19, 1
      %p23 = scmp.eq.s32.totalorder %s11, 1
      %p24 = scmp.ne.s32.totalorder %s19, %s21
      %p25 = scmp.eq.s32.totalorder %s11, 0
      %p26 = por %p24, %p25
      %p27 = scmp.ne.s32.totalorder %s19, %s21
      %p28 = scmp.eq.s32.totalorder %s16, 1
      %p29 = por %p27, %p28
      %p30 = scmp.ne.s32.totalorder %s21, %s22
      %p31 = scmp.eq.s32.totalorder %s16, 0
      %p32 = por %p30, %p31
      %p33 = scmp.ne.s32.totalorder %s21, %s22
      %p34 = scmp.eq.s32.totalorder %s17, 1
      %p35 = por %p33, %p34
      %p37 = scmp.ne.s32.totalorder %s22, %s36
      %p38 = scmp.eq.s32.totalorder %s17, 0
      %p39 = por %p37, %p38
      %s40 = ssub.s32 %s11, %s18
      %p41 = scmp.eq.s32.totalorder %s40, 0
      %s43 = sadd.s32 %s42, 1
      %s44 = scalar_select %p41, %s42, %s43
      %p47 = pneg %p41
      %p48 = scmp.eq.s32.totalorder %s11, 1
      %p49 = por %p47, %p48
      %p50 = scmp.ne.s32.totalorder %s42, %s45
      %p51 = scmp.eq.s32.totalorder %s11, 0
      %p52 = por %p50, %p51
      %p53 = scmp.ne.s32.totalorder %s42, %s45
      %p54 = scmp.eq.s32.totalorder %s16, 1
      %p55 = por %p53, %p54
      %p56 = scmp.ne.s32.totalorder %s45, %s46
      %p57 = scmp.eq.s32.totalorder %s16, 0
      %p58 = por %p56, %p57
      %p59 = scmp.ne.s32.totalorder %s45, %s46
      %p60 = scmp.eq.s32.totalorder %s17, 1
      %p61 = por %p59, %p60
      %p63 = scmp.ne.s32.totalorder %s46, %s62
      %p64 = scmp.eq.s32.totalorder %s17, 0
      %p65 = por %p63, %p64
      %p66 = scmp.le.s32.totalorder 1, %s11
      %p67 = scmp.lt.s32.totalorder %s11, 3
      %p68 = pnand %p66, %p67
      %p69 = pneg %p68
      // Predicated region
      $region9: #{tpu_custom_call.1} parent=5 // pred_check
        _
      $region10: #{tpu_custom_call.1} parent=5 // pred_check_branch
        %71 = sbr.rel (%p68) target = $region12
      $region11: #{tpu_custom_call.1} parent=5 // pred_region
        %s72 = ssub.s32 %s11, 1
        // Predicated region
        $region13: #{tpu_custom_call.1} parent=11 // pred_check
          %p73 = pneg %p32
        $region14: #{tpu_custom_call.1} parent=11 // pred_check_branch
          %75 = sbr.rel (%p73) target = $region16
        $region15: #{tpu_custom_call.1} parent=11 // pred_region
          %77 = vsyncadd [#allocation3], 0
          %s79 = sshll.u32 %s0, 4
          %s80 = int_to_ptr.hbm [resolvable:$true] %s79
          %s81 = sshll.u32 [#allocation2], 4
          %s82 = int_to_ptr.vmem [resolvable:$true] %s81
          %84 = dma.hbm_to_vmem [thread:$0]  %s80, 128, %s82, [#allocation3]
        $region16: #{tpu_custom_call.1} parent=11 // pred_fallthru
          _
      $region12: #{tpu_custom_call.1} parent=5 // pred_fallthru
        _
      %p85 = scmp.lt.s32.totalorder %s11, 2
      // Predicated region
      $region17: #{tpu_custom_call.1} parent=5 // pred_check
        %p86 = pneg %p85
      $region18: #{tpu_custom_call.1} parent=5 // pred_check_branch
        %88 = sbr.rel (%p86) target = $region20
      $region19: #{tpu_custom_call.1} parent=5 // pred_region
        _
      $region20: #{tpu_custom_call.1} parent=5 // pred_fallthru
        _
      %p89 = scmp.le.s32.totalorder 1, %s11
      %p90 = scmp.lt.s32.totalorder %s11, 3
      %p91 = pnand %p89, %p90
      %p92 = pneg %p91
      // Predicated region
      $region21: #{tpu_custom_call.1} parent=5 // pred_check
        _
      $region22: #{tpu_custom_call.1} parent=5 // pred_check_branch
        %94 = sbr.rel (%p91) target = $region24
      $region23: #{tpu_custom_call.1} parent=5 // pred_region
        %s95 = ssub.s32 %s11, 1
        // Predicated region
        $region25: #{tpu_custom_call.1} parent=23 // pred_check
          %p96 = pneg %p32
        $region26: #{tpu_custom_call.1} parent=23 // pred_check_branch
          %98 = sbr.rel (%p96) target = $region28
        $region27: #{tpu_custom_call.1} parent=23 // pred_region
          %100 = dma.done [#allocation3], 128
        $region28: #{tpu_custom_call.1} parent=23 // pred_fallthru
          _
        %p101 = pneg %p32
        %p102 = pneg %p29
        %p103 = pneg %p58
        %p104 = pneg %p55
        %s105 = sand.u32 %s45, 1
        %s106 = scalar_lea.sflag [#allocation4], %s105
        %s107 = sand.u32 %s45, 1
        %s108 = smul.addr %s107, 8
        %s109 = scalar_lea.vmem [#allocation5], %s108
        %v110 = vld [vmem:[#allocation2] sm:$0xff]
        %v111 = vmul.f32 %v110, 2.0
        %112 = vst [vmem:[%s109] sm:$0xff] %v111
        %s113 = sand.u32 %s45, 1
        %s114 = scalar_lea.sflag [#allocation4], %s113
        %s115 = sand.u32 %s45, 1
        %s116 = smul.addr %s115, 8
        %s117 = scalar_lea.vmem [#allocation5], %s116
        // Predicated region
        $region29: #{tpu_custom_call.1} parent=23 // pred_check
          %p118 = pneg %p55
        $region30: #{tpu_custom_call.1} parent=23 // pred_check_branch
          %120 = sbr.rel (%p118) target = $region32
        $region31: #{tpu_custom_call.1} parent=23 // pred_region
          %122 = vsyncadd %s114, 0
          %s123 = smul.addr %s16, 8
          %s124 = scalar_lea.hbm %s1, %s123
          %s126 = sshll.u32 %s117, 4
          %s127 = int_to_ptr.vmem [resolvable:$true] %s126
          %s128 = sshll.u32 %s124, 4
          %s129 = int_to_ptr.hbm [resolvable:$true] %s128
          %131 = dma.vmem_to_hbm [thread:$0]  %s127, 128, %s129, %s114
        $region32: #{tpu_custom_call.1} parent=23 // pred_fallthru
          _
      $region24: #{tpu_custom_call.1} parent=5 // pred_fallthru
        _
      %p132 = scmp.le.s32.totalorder 2, %s11
      // Predicated region
      $region33: #{tpu_custom_call.1} parent=5 // pred_check
        %p133 = pneg %p132
      $region34: #{tpu_custom_call.1} parent=5 // pred_check_branch
        %135 = sbr.rel (%p133) target = $region36
      $region35: #{tpu_custom_call.1} parent=5 // pred_region
        %s136 = ssub.s32 %s11, 2
        // Predicated region
        $region37: #{tpu_custom_call.1} parent=35 // pred_check
          %p137 = pneg %p61
        $region38: #{tpu_custom_call.1} parent=35 // pred_check_branch
          %139 = sbr.rel (%p137) target = $region40
        $region39: #{tpu_custom_call.1} parent=35 // pred_region
          %s140 = sand.u32 %s46, 1
          %s141 = scalar_lea.sflag [#allocation4], %s140
          %s142 = sand.u32 %s46, 1
          %s143 = smul.addr %s142, 8
          %s144 = scalar_lea.vmem [#allocation5], %s143
          %146 = dma.done %s141, 128
        $region40: #{tpu_custom_call.1} parent=35 // pred_fallthru
          _
      $region36: #{tpu_custom_call.1} parent=5 // pred_fallthru
        _
    $region6: #{tpu_custom_call.1} parent=1 // loop_footer
      %s15 = sadd.s32 1, %s11
    $region7: #{tpu_custom_call.1} parent=1 // loop_footer_branch
      %10 = sbr.rel target = $region3
    $region8: #{tpu_custom_call.1} parent=1 // loop_exit
      _
    %147 = vsyncpa [#allocation3], 1
    %s148 = scalar_lea.sflag [#allocation3], 1
    %149 = vsyncpa %s148, 1
    %150 = vsyncpa [#allocation4], 1
    %s151 = scalar_lea.sflag [#allocation4], 1
    %152 = vsyncpa %s151, 1

// kernel: transformer_forward.27
$region0: #{transformer_forward.27}
  #allocation0 [shape = 'u32[]', space=smem, size = 0x4, offset = 0x4, fixed_abs, tag = 'smem constant byte address 0x4 - core index']
  #allocation1 [shape = 'u32[72,128]{1,0:T(1,128)}', space=vmem, size = 0x9000, scoped, tag = 'internal scratch']
  %s0 = inlined_call_operand.vmem [shape: bf16[16,32], index: 0, kind: input, shape index: {}]
  %s1 = inlined_call_operand.vmem [shape: f32[16,32], index: 1, kind: input, shape index: {}]
  %s2 = inlined_call_operand.vmem [shape: bf16[32,32], index: 2, kind: input, shape index: {}]
  %s3 = inlined_call_operand.vmem [shape: f32[1,32], index: 3, kind: input, shape index: {}]
  %s4 = inlined_call_operand.vmem [shape: f32[16,32], index: 4, kind: output, shape index: {}]
  %s5 = sld [smem:[#allocation0]]
  $region26: #{transformer_forward.27} parent=0
    _
  %s7 = ssub.s32 1, %s5
  %s8 = scalar_select 0, %s7, %s5
  // Predicated region
  $region2: #{transformer_forward.27} parent=0 // pred_check
    _
  $region3: #{transformer_forward.27} parent=0 // pred_check_branch
    %10 = sbr.rel (0) target = $region5
  $region4: #{transformer_forward.27} parent=0 // pred_region
    _
  $region5: #{transformer_forward.27} parent=0 // pred_fallthru
    _
  // Predicated region
  $region6: #{transformer_forward.27} parent=0 // pred_check
    _
  $region7: #{transformer_forward.27} parent=0 // pred_check_branch
    %12 = sbr.rel (0) target = $region9
  $region8: #{transformer_forward.27} parent=0 // pred_region
    _
  $region9: #{transformer_forward.27} parent=0 // pred_fallthru
    _
  // Predicated region
  $region10: #{transformer_forward.27} parent=0 // pred_check
    _
  $region11: #{transformer_forward.27} parent=0 // pred_check_branch
    %14 = sbr.rel (0) target = $region13
  $region12: #{transformer_forward.27} parent=0 // pred_region
    _
  $region13: #{transformer_forward.27} parent=0 // pred_fallthru
    _
  // Predicated region
  $region14: #{transformer_forward.27} parent=0 // pred_check
    _
  $region15: #{transformer_forward.27} parent=0 // pred_check_branch
    %16 = sbr.rel (0) target = $region17
  $region16: #{transformer_forward.27} parent=0 // pred_region
    _
  $region17: #{transformer_forward.27} parent=0 // pred_fallthru
    _
  %v18 = vld [vmem:[%s0] sm:$0xf]
  %v19 = vld [vmem:[%s0 + $0x4] sm:$0xf]
  %v20 = vld [vmem:[%s2] sm:$0xf]
  %v21 = vld [vmem:[%s2 + $0x4] sm:$0xf]
  %v22 = vld [vmem:[%s2 + $0x8] sm:$0xf]
  %v23 = vld [vmem:[%s2 + $0xc] sm:$0xf]
  %v24 = vld [vmem:[%s3] sm:$0x1]
  %v26 = vperm.slane %v24, 0
  %v30 = vunpack.c.l.b16 %v18
  %v31 = vunpack.c.l.b16 %v19
  %v32 = vpack.c.b16 %v31, %v30
  %v37 = vunpack.c.l.b16 %v20
  %v38 = vunpack.c.l.b16 %v21
  %v39 = vunpack.c.l.b16 %v22
  %v40 = vunpack.c.l.b16 %v23
  %v41 = vpack.c.b16 %v38, %v37
  %v42 = vpack.c.b16 %v40, %v39
  %vm45 = vcmask 261120
  %v47 = vsel %vm45, %v32, 0
  %49 = vmatpush.bf16.msra.mxu0 0
  %50 = vmatpush.bf16.msra.mxu0 0
  %51 = vmatpush.bf16.msra.mxu0 0
  %52 = vmatpush.bf16.msra.mxu0 0
  %53 = vmatpush.bf16.msra.mxu0 0
  %54 = vmatpush.bf16.msra.mxu0 0
  %55 = vmatpush.bf16.msra.mxu0 %v42
  %56 = vmatpush.bf16.msra.mxu0 %v41
  %57 = vmatmul.bf16.gmra.mxu0 %v47
  %v58 = vpop.f32.mrf.mxu0
  %v59 = vadd.f32 %v26, %v58
  %v60 = vpop.f32.mrf.mxu0
  %v61 = vadd.f32 %v26, %v60
  %62 = vdwg.mxu0
  %v63 = vld [vmem:[%s1] sm:$0xff]
  %v64 = vld [vmem:[%s1 + $0x8] sm:$0xff]
  %v65 = vadd.f32 %v63, %v59
  %v66 = vadd.f32 %v64, %v61
  %67 = vst.msk [vmem:[%s4] sm:$0xff] %vm45, %v65
  %68 = vst.msk [vmem:[%s4 + $0x8] sm:$0xff] %vm45, %v66
  // Predicated region
  $region18: #{transformer_forward.27} parent=0 // pred_check
    _
  $region19: #{transformer_forward.27} parent=0 // pred_check_branch
    %70 = sbr.rel (0) target = $region21
  $region20: #{transformer_forward.27} parent=0 // pred_region
    _
  $region21: #{transformer_forward.27} parent=0 // pred_fallthru
    _
  // Predicated region
  $region22: #{transformer_forward.27} parent=0 // pred_check
    _
  $region23: #{transformer_forward.27} parent=0 // pred_check_branch
    %72 = sbr.rel (0) target = $region25
  $region24: #{transformer_forward.27} parent=0 // pred_region
    _
  $region25: #{transformer_forward.27} parent=0 // pred_fallthru
    _

// kernel: transformer_forward.25
$region0: #{transformer_forward.25}
  #allocation0 [shape = 'u32[]', space=smem, size = 0x4, offset = 0x4, fixed_abs, tag = 'smem constant byte address 0x4 - core index']
  #allocation1 [shape = 'u32[72,128]{1,0:T(1,128)}', space=vmem, size = 0x9000, scoped, tag = 'internal scratch']
  %s0 = inlined_call_operand.vmem [shape: f32[16,32], index: 0, kind: input, shape index: {}]
  %s1 = inlined_call_operand.vmem [shape: f32[1,32], index: 1, kind: input, shape index: {}]
  %s2 = inlined_call_operand.vmem [shape: f32[1,32], index: 2, kind: input, shape index: {}]
  %s3 = inlined_call_operand.vmem [shape: bf16[32,96], index: 3, kind: input, shape index: {}]
  %s4 = inlined_call_operand.vmem [shape: f32[1,96], index: 4, kind: input, shape index: {}]
  %s5 = inlined_call_operand.vmem [shape: bf16[16,32], index: 5, kind: output, shape index: {0}]
  %s6 = inlined_call_operand.vmem [shape: bf16[16,32], index: 6, kind: output, shape index: {1}]
  %s7 = inlined_call_operand.vmem [shape: bf16[16,32], index: 7, kind: output, shape index: {2}]
  %8 = xla_tuple %s5, %s6, %s7
  %s9 = sld [smem:[#allocation0]]
  $region46: #{transformer_forward.25} parent=0
    _
  %s11 = ssub.s32 1, %s9
  %s12 = scalar_select 0, %s11, %s9
  // Predicated region
  $region2: #{transformer_forward.25} parent=0 // pred_check
    _
  $region3: #{transformer_forward.25} parent=0 // pred_check_branch
    %14 = sbr.rel (0) target = $region5
  $region4: #{transformer_forward.25} parent=0 // pred_region
    _
  $region5: #{transformer_forward.25} parent=0 // pred_fallthru
    _
  // Predicated region
  $region6: #{transformer_forward.25} parent=0 // pred_check
    _
  $region7: #{transformer_forward.25} parent=0 // pred_check_branch
    %16 = sbr.rel (0) target = $region9
  $region8: #{transformer_forward.25} parent=0 // pred_region
    _
  $region9: #{transformer_forward.25} parent=0 // pred_fallthru
    _
  // Predicated region
  $region10: #{transformer_forward.25} parent=0 // pred_check
    _
  $region11: #{transformer_forward.25} parent=0 // pred_check_branch
    %18 = sbr.rel (0) target = $region13
  $region12: #{transformer_forward.25} parent=0 // pred_region
    _
  $region13: #{transformer_forward.25} parent=0 // pred_fallthru
    _
  // Predicated region
  $region14: #{transformer_forward.25} parent=0 // pred_check
    _
  $region15: #{transformer_forward.25} parent=0 // pred_check_branch
    %20 = sbr.rel (0) target = $region17
  $region16: #{transformer_forward.25} parent=0 // pred_region
    _
  $region17: #{transformer_forward.25} parent=0 // pred_fallthru
    _
  // Predicated region
  $region18: #{transformer_forward.25} parent=0 // pred_check
    _
  $region19: #{transformer_forward.25} parent=0 // pred_check_branch
    %22 = sbr.rel (0) target = $region21
  $region20: #{transformer_forward.25} parent=0 // pred_region
    _
  $region21: #{transformer_forward.25} parent=0 // pred_fallthru
    _
  %v24 = vld [vmem:[%s0] sm:$0xff]
  %v25 = vld [vmem:[%s0 + $0x8] sm:$0xff]
  %vm26 = vcmask 261120
  %v27 = vsel %vm26, %v24, 0.0
  %28 = vadd.xlane.f32.xlu0 %v27
  %v29 = vpop.xlane.xlu0 %28
  %v30 = vsel %vm26, %v25, 0.0
  %31 = vadd.xlane.f32.xlu0 %v30
  %v32 = vpop.xlane.xlu0 %31
  %v33 = vrcp.pop 32.0
  %v34 = vmul.f32 32.0, %v33
  %v35 = vsub.f32 1.0, %v34
  %v36 = vmul.f32 %v33, %v35
  %v37 = vadd.f32 %v33, %v36
  %vm38 = vweird.f32 %v33
  %v39 = vsel %vm38, %v33, %v37
  %v40 = vmul.f32 %v29, %v39
  %v41 = vmul.f32 %v32, %v39
  %v42 = vsub.f32 %v24, %v40
  %v43 = vsub.f32 %v25, %v41
  %v44 = vmul.f32 %v42, %v42
  %v45 = vmul.f32 %v43, %v43
  %v46 = vsel %vm26, %v44, 0.0
  %47 = vadd.xlane.f32.xlu0 %v46
  %v48 = vpop.xlane.xlu0 %47
  %v49 = vsel %vm26, %v45, 0.0
  %50 = vadd.xlane.f32.xlu0 %v49
  %v51 = vpop.xlane.xlu0 %50
  %v52 = vmul.f32 %v48, %v39
  %v53 = vmul.f32 %v51, %v39
  %v54 = vadd.f32 %v52, 1e-05
  %v55 = vadd.f32 %v53, 1e-05
  %v56 = vrsqrt.pop %v54
  %v57 = vmul.f32 %v56, %v54
  %v58 = vmul.f32 %v57, %v56
  %v59 = vmul.f32 0.5, %v58
  %v60 = vsub.f32 1.5, %v59
  %v61 = vmul.f32 %v56, %v60
  %vm62 = vweird.f32 %v54
  %vm63 = vweird.f32 %v56
  %vm64 = vmor %vm62, %vm63
  %v65 = vsel %vm64, %v56, %v61
  %v66 = vrsqrt.pop %v55
  %v67 = vmul.f32 %v66, %v55
  %v68 = vmul.f32 %v67, %v66
  %v69 = vmul.f32 0.5, %v68
  %v70 = vsub.f32 1.5, %v69
  %v71 = vmul.f32 %v66, %v70
  %vm72 = vweird.f32 %v55
  %vm73 = vweird.f32 %v66
  %vm74 = vmor %vm72, %vm73
  %v75 = vsel %vm74, %v66, %v71
  %v76 = vmul.f32 %v42, %v65
  %v77 = vmul.f32 %v43, %v75
  %v78 = vld [vmem:[%s1] sm:$0x1]
  %v80 = vperm.slane %v78, 0
  %v82 = vmul.f32 %v76, %v80
  %v83 = vmul.f32 %v77, %v80
  %v84 = vld [vmem:[%s2] sm:$0x1]
  %v86 = vperm.slane %v84, 0
  %v88 = vadd.f32 %v82, %v86
  %v89 = vadd.f32 %v83, %v86
  %v90 = vpack.c.bf16 %v89, %v88
  %v91 = vld [vmem:[%s3] sm:$0xf]
  %v92 = vld [vmem:[%s3 + $0x4] sm:$0xf]
  %v93 = vld [vmem:[%s3 + $0x8] sm:$0xf]
  %v94 = vld [vmem:[%s3 + $0xc] sm:$0xf]
  %v95 = vld [vmem:[%s4] sm:$0x1]
  %v97 = vperm.slane %v95, 0
  %v103 = vunpack.c.l.b16 %v91
  %v104 = vunpack.c.l.b16 %v92
  %v105 = vunpack.c.l.b16 %v93
  %v106 = vunpack.c.l.b16 %v94
  %v107 = vpack.c.b16 %v104, %v103
  %v108 = vpack.c.b16 %v106, %v105
  %v112 = vsel %vm26, %v90, 0
  %114 = vmatpush.bf16.msra.mxu0 0
  %115 = vmatpush.bf16.msra.mxu0 0
  %116 = vmatpush.bf16.msra.mxu0 0
  %117 = vmatpush.bf16.msra.mxu0 0
  %118 = vmatpush.bf16.msra.mxu0 0
  %119 = vmatpush.bf16.msra.mxu0 0
  %120 = vmatpush.bf16.msra.mxu0 %v108
  %121 = vmatpush.bf16.msra.mxu0 %v107
  %122 = vmatmul.bf16.gmra.mxu0 %v112
  %v123 = vpop.f32.mrf.mxu0
  %v124 = vadd.f32 %v97, %v123
  %v125 = vpop.f32.mrf.mxu0
  %v126 = vadd.f32 %v97, %v125
  %127 = vdwg.mxu0
  %v128 = vpack.c.bf16 %v124, %v124
  %v129 = vpack.c.bf16 %v126, %v126
  %vm130 = vcmask 257024
  %131 = vst.msk [vmem:[%s5] sm:$0xf] %vm130, %v128
  %132 = vst.msk [vmem:[%s5 + $0x4] sm:$0xf] %vm130, %v129
  %135 = vrot.lane.b32.xlu0 %v128, 96
  %v136 = vpop.permute.xlu0 %135
  %137 = vrot.lane.b32.xlu0 %v129, 96
  %v138 = vpop.permute.xlu0 %137
  %141 = vst.msk [vmem:[%s6] sm:$0xf] %vm130, %v136
  %142 = vst.msk [vmem:[%s6 + $0x4] sm:$0xf] %vm130, %v138
  %143 = vrot.lane.b32.xlu0 %v128, 64
  %v144 = vpop.permute.xlu0 %143
  %145 = vrot.lane.b32.xlu0 %v129, 64
  %v146 = vpop.permute.xlu0 %145
  %149 = vst.msk [vmem:[%s7] sm:$0xf] %vm130, %v144
  %150 = vst.msk [vmem:[%s7 + $0x4] sm:$0xf] %vm130, %v146
  // Predicated region
  $region22: #{transformer_forward.25} parent=0 // pred_check
    _
  $region23: #{transformer_forward.25} parent=0 // pred_check_branch
    %152 = sbr.rel (0) target = $region25
  $region24: #{transformer_forward.25} parent=0 // pred_region
    _
  $region25: #{transformer_forward.25} parent=0 // pred_fallthru
    _
  // Predicated region
  $region26: #{transformer_forward.25} parent=0 // pred_check
    _
  $region27: #{transformer_forward.25} parent=0 // pred_check_branch
    %154 = sbr.rel (0) target = $region29
  $region28: #{transformer_forward.25} parent=0 // pred_region
    _
  $region29: #{transformer_forward.25} parent=0 // pred_fallthru
    _
  // Predicated region
  $region30: #{transformer_forward.25} parent=0 // pred_check
    _
  $region31: #{transformer_forward.25} parent=0 // pred_check_branch
    %156 = sbr.rel (0) target = $region33
  $region32: #{transformer_forward.25} parent=0 // pred_region
    _
  $region33: #{transformer_forward.25} parent=0 // pred_fallthru
    _
  // Predicated region
  $region34: #{transformer_forward.25} parent=0 // pred_check
    _
  $region35: #{transformer_forward.25} parent=0 // pred_check_branch
    %158 = sbr.rel (0) target = $region37
  $region36: #{transformer_forward.25} parent=0 // pred_region
    _
  $region37: #{transformer_forward.25} parent=0 // pred_fallthru
    _
  // Predicated region
  $region38: #{transformer_forward.25} parent=0 // pred_check
    _
  $region39: #{transformer_forward.25} parent=0 // pred_check_branch
    %160 = sbr.rel (0) target = $region41
  $region40: #{transformer_forward.25} parent=0 // pred_region
    _
  $region41: #{transformer_forward.25} parent=0 // pred_fallthru
    _
  // Predicated region
  $region42: #{transformer_forward.25} parent=0 // pred_check
    _
  $region43: #{transformer_forward.25} parent=0 // pred_check_branch
    %162 = sbr.rel (0) target = $region45
  $region44: #{transformer_forward.25} parent=0 // pred_region
    _
  $region45: #{transformer_forward.25} parent=0 // pred_fallthru
    _

// kernel: transformer_forward.28
$region0: #{transformer_forward.28}
  #allocation0 [shape = 'u32[]', space=smem, size = 0x4, offset = 0x4, fixed_abs, tag = 'smem constant byte address 0x4 - core index']
  #allocation1 [shape = 'u32[72,128]{1,0:T(1,128)}', space=vmem, size = 0x9000, scoped, tag = 'internal scratch']
  %s0 = inlined_call_operand.vmem [shape: f32[16,32], index: 0, kind: input, shape index: {}]
  %s1 = inlined_call_operand.vmem [shape: f32[1,32], index: 1, kind: input, shape index: {}]
  %s2 = inlined_call_operand.vmem [shape: f32[1,32], index: 2, kind: input, shape index: {}]
  %s3 = inlined_call_operand.vmem [shape: bf16[32,64], index: 3, kind: input, shape index: {}]
  %s4 = inlined_call_operand.vmem [shape: f32[1,64], index: 4, kind: input, shape index: {}]
  %s5 = inlined_call_operand.vmem [shape: bf16[64,32], index: 5, kind: input, shape index: {}]
  %s6 = inlined_call_operand.vmem [shape: f32[1,32], index: 6, kind: input, shape index: {}]
  %s7 = inlined_call_operand.vmem [shape: f32[16,32], index: 7, kind: output, shape index: {}]
  %s8 = sld [smem:[#allocation0]]
  $region38: #{transformer_forward.28} parent=0
    _
  %s10 = ssub.s32 1, %s8
  %s11 = scalar_select 0, %s10, %s8
  // Predicated region
  $region2: #{transformer_forward.28} parent=0 // pred_check
    _
  $region3: #{transformer_forward.28} parent=0 // pred_check_branch
    %13 = sbr.rel (0) target = $region5
  $region4: #{transformer_forward.28} parent=0 // pred_region
    _
  $region5: #{transformer_forward.28} parent=0 // pred_fallthru
    _
  // Predicated region
  $region6: #{transformer_forward.28} parent=0 // pred_check
    _
  $region7: #{transformer_forward.28} parent=0 // pred_check_branch
    %15 = sbr.rel (0) target = $region9
  $region8: #{transformer_forward.28} parent=0 // pred_region
    _
  $region9: #{transformer_forward.28} parent=0 // pred_fallthru
    _
  // Predicated region
  $region10: #{transformer_forward.28} parent=0 // pred_check
    _
  $region11: #{transformer_forward.28} parent=0 // pred_check_branch
    %17 = sbr.rel (0) target = $region13
  $region12: #{transformer_forward.28} parent=0 // pred_region
    _
  $region13: #{transformer_forward.28} parent=0 // pred_fallthru
    _
  // Predicated region
  $region14: #{transformer_forward.28} parent=0 // pred_check
    _
  $region15: #{transformer_forward.28} parent=0 // pred_check_branch
    %19 = sbr.rel (0) target = $region17
  $region16: #{transformer_forward.28} parent=0 // pred_region
    _
  $region17: #{transformer_forward.28} parent=0 // pred_fallthru
    _
  // Predicated region
  $region18: #{transformer_forward.28} parent=0 // pred_check
    _
  $region19: #{transformer_forward.28} parent=0 // pred_check_branch
    %21 = sbr.rel (0) target = $region21
  $region20: #{transformer_forward.28} parent=0 // pred_region
    _
  $region21: #{transformer_forward.28} parent=0 // pred_fallthru
    _
  // Predicated region
  $region22: #{transformer_forward.28} parent=0 // pred_check
    _
  $region23: #{transformer_forward.28} parent=0 // pred_check_branch
    %23 = sbr.rel (0) target = $region25
  $region24: #{transformer_forward.28} parent=0 // pred_region
    _
  $region25: #{transformer_forward.28} parent=0 // pred_fallthru
    _
  // Predicated region
  $region26: #{transformer_forward.28} parent=0 // pred_check
    _
  $region27: #{transformer_forward.28} parent=0 // pred_check_branch
    %25 = sbr.rel (0) target = $region29
  $region28: #{transformer_forward.28} parent=0 // pred_region
    _
  $region29: #{transformer_forward.28} parent=0 // pred_fallthru
    _
  %v27 = vld [vmem:[%s0] sm:$0xff]
  %v28 = vld [vmem:[%s0 + $0x8] sm:$0xff]
  %vm29 = vcmask 261120
  %v30 = vsel %vm29, %v27, 0.0
  %31 = vadd.xlane.f32.xlu0 %v30
  %v32 = vpop.xlane.xlu0 %31
  %v33 = vsel %vm29, %v28, 0.0
  %34 = vadd.xlane.f32.xlu0 %v33
  %v35 = vpop.xlane.xlu0 %34
  %v36 = vrcp.pop 32.0
  %v37 = vmul.f32 32.0, %v36
  %v38 = vsub.f32 1.0, %v37
  %v39 = vmul.f32 %v36, %v38
  %v40 = vadd.f32 %v36, %v39
  %vm41 = vweird.f32 %v36
  %v42 = vsel %vm41, %v36, %v40
  %v43 = vmul.f32 %v32, %v42
  %v44 = vmul.f32 %v35, %v42
  %v45 = vsub.f32 %v27, %v43
  %v46 = vsub.f32 %v28, %v44
  %v47 = vmul.f32 %v45, %v45
  %v48 = vmul.f32 %v46, %v46
  %v49 = vsel %vm29, %v47, 0.0
  %50 = vadd.xlane.f32.xlu0 %v49
  %v51 = vpop.xlane.xlu0 %50
  %v52 = vsel %vm29, %v48, 0.0
  %53 = vadd.xlane.f32.xlu0 %v52
  %v54 = vpop.xlane.xlu0 %53
  %v55 = vmul.f32 %v51, %v42
  %v56 = vmul.f32 %v54, %v42
  %v57 = vadd.f32 %v55, 1e-05
  %v58 = vadd.f32 %v56, 1e-05
  %v59 = vrsqrt.pop %v57
  %v60 = vmul.f32 %v59, %v57
  %v61 = vmul.f32 %v60, %v59
  %v62 = vmul.f32 0.5, %v61
  %v63 = vsub.f32 1.5, %v62
  %v64 = vmul.f32 %v59, %v63
  %vm65 = vweird.f32 %v57
  %vm66 = vweird.f32 %v59
  %vm67 = vmor %vm65, %vm66
  %v68 = vsel %vm67, %v59, %v64
  %v69 = vrsqrt.pop %v58
  %v70 = vmul.f32 %v69, %v58
  %v71 = vmul.f32 %v70, %v69
  %v72 = vmul.f32 0.5, %v71
  %v73 = vsub.f32 1.5, %v72
  %v74 = vmul.f32 %v69, %v73
  %vm75 = vweird.f32 %v58
  %vm76 = vweird.f32 %v69
  %vm77 = vmor %vm75, %vm76
  %v78 = vsel %vm77, %v69, %v74
  %v79 = vmul.f32 %v45, %v68
  %v80 = vmul.f32 %v46, %v78
  %v81 = vld [vmem:[%s1] sm:$0x1]
  %v83 = vperm.slane %v81, 0
  %v85 = vmul.f32 %v79, %v83
  %v86 = vmul.f32 %v80, %v83
  %v87 = vld [vmem:[%s2] sm:$0x1]
  %v89 = vperm.slane %v87, 0
  %v91 = vadd.f32 %v85, %v89
  %v92 = vadd.f32 %v86, %v89
  %v93 = vpack.c.bf16 %v92, %v91
  %v94 = vld [vmem:[%s3] sm:$0xf]
  %v95 = vld [vmem:[%s3 + $0x4] sm:$0xf]
  %v96 = vld [vmem:[%s3 + $0x8] sm:$0xf]
  %v97 = vld [vmem:[%s3 + $0xc] sm:$0xf]
  %v98 = vld [vmem:[%s4] sm:$0x1]
  %v100 = vperm.slane %v98, 0
  %v106 = vunpack.c.l.b16 %v94
  %v107 = vunpack.c.l.b16 %v95
  %v108 = vunpack.c.l.b16 %v96
  %v109 = vunpack.c.l.b16 %v97
  %v110 = vpack.c.b16 %v107, %v106
  %v111 = vpack.c.b16 %v109, %v108
  %v115 = vsel %vm29, %v93, 0
  %117 = vmatpush.bf16.msra.mxu0 0
  %118 = vmatpush.bf16.msra.mxu0 0
  %119 = vmatpush.bf16.msra.mxu0 0
  %120 = vmatpush.bf16.msra.mxu0 0
  %121 = vmatpush.bf16.msra.mxu0 0
  %122 = vmatpush.bf16.msra.mxu0 0
  %123 = vmatpush.bf16.msra.mxu0 %v111
  %124 = vmatpush.bf16.msra.mxu0 %v110
  %125 = vmatmul.bf16.gmra.mxu0 %v115
  %v126 = vpop.f32.mrf.mxu0
  %v127 = vadd.f32 %v100, %v126
  %v128 = vpop.f32.mrf.mxu0
  %v129 = vadd.f32 %v100, %v128
  %130 = vdwg.mxu0
  %v131 = vmax.f32 %v127, 0.0
  %v132 = vmax.f32 %v129, 0.0
  %v133 = vpack.c.bf16 %v132, %v131
  %v134 = vld [vmem:[%s5] sm:$0xf]
  %v135 = vld [vmem:[%s5 + $0x4] sm:$0xf]
  %v136 = vld [vmem:[%s5 + $0x8] sm:$0xf]
  %v137 = vld [vmem:[%s5 + $0xc] sm:$0xf]
  %v138 = vld [vmem:[%s5 + $0x10] sm:$0xf]
  %v139 = vld [vmem:[%s5 + $0x14] sm:$0xf]
  %v140 = vld [vmem:[%s5 + $0x18] sm:$0xf]
  %v141 = vld [vmem:[%s5 + $0x1c] sm:$0xf]
  %v142 = vld [vmem:[%s6] sm:$0x1]
  %v144 = vperm.slane %v142, 0
  %v154 = vunpack.c.l.b16 %v134
  %v155 = vunpack.c.l.b16 %v135
  %v156 = vunpack.c.l.b16 %v136
  %v157 = vunpack.c.l.b16 %v137
  %v158 = vunpack.c.l.b16 %v138
  %v159 = vunpack.c.l.b16 %v139
  %v160 = vunpack.c.l.b16 %v140
  %v161 = vunpack.c.l.b16 %v141
  %v162 = vpack.c.b16 %v155, %v154
  %v163 = vpack.c.b16 %v157, %v156
  %v164 = vpack.c.b16 %v159, %v158
  %v165 = vpack.c.b16 %v161, %v160
  %vm170 = vcmask 523264
  %v172 = vsel %vm170, %v133, 0
  %174 = vmatpush.bf16.msra.mxu0 0
  %175 = vmatpush.bf16.msra.mxu0 0
  %176 = vmatpush.bf16.msra.mxu0 0
  %177 = vmatpush.bf16.msra.mxu0 0
  %178 = vmatpush.bf16.msra.mxu0 %v165
  %179 = vmatpush.bf16.msra.mxu0 %v164
  %180 = vmatpush.bf16.msra.mxu0 %v163
  %181 = vmatpush.bf16.msra.mxu0 %v162
  %182 = vmatmul.bf16.gmra.mxu0 %v172
  %v183 = vpop.f32.mrf.mxu0
  %v184 = vadd.f32 %v144, %v183
  %v185 = vpop.f32.mrf.mxu0
  %v186 = vadd.f32 %v144, %v185
  %187 = vdwg.mxu0
  %v188 = vadd.f32 %v27, %v184
  %v189 = vadd.f32 %v28, %v186
  %190 = vst.msk [vmem:[%s7] sm:$0xff] %vm29, %v188
  %191 = vst.msk [vmem:[%s7 + $0x8] sm:$0xff] %vm29, %v189
  // Predicated region
  $region30: #{transformer_forward.28} parent=0 // pred_check
    _
  $region31: #{transformer_forward.28} parent=0 // pred_check_branch
    %193 = sbr.rel (0) target = $region33
  $region32: #{transformer_forward.28} parent=0 // pred_region
    _
  $region33: #{transformer_forward.28} parent=0 // pred_fallthru
    _
  // Predicated region
  $region34: #{transformer_forward.28} parent=0 // pred_check
    _
  $region35: #{transformer_forward.28} parent=0 // pred_check_branch
    %195 = sbr.rel (0) target = $region37
  $region36: #{transformer_forward.28} parent=0 // pred_region
    _
  $region37: #{transformer_forward.28} parent=0 // pred_fallthru
    _

// kernel: transformer_forward.26
$region0: #{transformer_forward.26}
  #allocation0 [shape = 'u32[]', space=smem, size = 0x4, offset = 0x4, fixed_abs, tag = 'smem constant byte address 0x4 - core index']
  #allocation1 [shape = 'u32[72,128]{1,0:T(1,128)}', space=vmem, size = 0x9000, scoped, tag = 'internal scratch']
  #allocation2 [shape = 'f32[4,8,1]{2,1,0:T(8,128)}', space=vmem, size = 0x4000, scoped, tag = 'scratch operand']
  #allocation3 [shape = 'f32[4,8,1]{2,1,0:T(8,128)}', space=vmem, size = 0x4000, scoped, tag = 'scratch operand']
  #allocation4 [shape = 'f32[4,8,8]{2,1,0:T(8,128)}', space=vmem, size = 0x4000, scoped, tag = 'scratch operand']
  %s0 = inlined_call_operand.vmem [shape: f32[2,1,8], index: 0, kind: input, shape index: {}]
  %s1 = inlined_call_operand.vmem [shape: bf16[2,8,32], index: 1, kind: input, shape index: {}]
  %s2 = inlined_call_operand.vmem [shape: bf16[2,8,32], index: 2, kind: input, shape index: {}]
  %s3 = inlined_call_operand.vmem [shape: bf16[2,8,32], index: 3, kind: input, shape index: {}]
  %s4 = inlined_call_operand.vmem [shape: bf16[2,8,32], index: 4, kind: output, shape index: {}]
  %s5 = sld [smem:[#allocation0]]
  $region57: #{transformer_forward.26} parent=0
    _
  %s7 = ssub.s32 1, %s5
  %s8 = scalar_select 0, %s7, %s5
  loop: start=0, step=1, limit=4
  $region2: #{transformer_forward.26} parent=0 // loop_pre_header
    _
  $region3: #{transformer_forward.26} parent=0 // loop_header
    %s10 = sphi 0, %s14
    %p11 = scmp.ge.s32.totalorder %s10, 4
    %s17 = sphi 0, %s36
    %s18 = sphi 0, %s32
    %s19 = sphi 0, %s28
    %s20 = sphi 0, %s17
    %s21 = sphi 0, %s18
    %s22 = sphi 0, %s19
    %s23 = sphi 0, %s20
    %s24 = sphi 0, %s21
    %s25 = sphi 0, %s22
    %s41 = sphi 0, %s43
    %s44 = sphi 0, %s41
    %s45 = sphi 0, %s44
    %s61 = sphi 0, %s45
    %s69 = sphi 0, %s71
    %s72 = sphi 0, %s69
    %s73 = sphi 0, %s72
    %s89 = sphi 0, %s73
    %s97 = sphi 0, %s99
    %s100 = sphi 0, %s97
    %s101 = sphi 0, %s100
    %s117 = sphi 0, %s101
    %s125 = sphi 0, %s127
    %s128 = sphi 0, %s125
    %s129 = sphi 0, %s128
    %s145 = sphi 0, %s129
    %s153 = sphi 0, %s155
    %s156 = sphi 0, %s153
    %s157 = sphi 0, %s156
    %s173 = sphi 0, %s157
  $region4: #{transformer_forward.26} parent=0 // loop_header_branch
    %13 = sbr.rel (%p11) target = $region8
  $region5: #{transformer_forward.26} parent=0 // loop_body
    %s15 = ssub.s32 %s10, 1
    %s16 = ssub.s32 %s10, 2
    %s26 = sadd.s32 1, %s19
    %p27 = scmp.ge.s32.totalorder %s26, 1
    %s28 = scalar_select %p27, 0, %s26
    %s29 = sadd.s32 1, %s18
    %s30 = scalar_select %p27, %s29, %s18
    %p31 = scmp.ge.s32.totalorder %s30, 1
    %s32 = scalar_select %p31, 0, %s30
    %s33 = sadd.s32 1, %s17
    %s34 = scalar_select %p31, %s33, %s17
    %p35 = scmp.ge.s32.totalorder %s34, 2
    %s36 = scalar_select %p35, 0, %s34
    %s37 = ssub.s32 %s17, %s36
    %s38 = ssub.s32 %s19, %s28
    %s39 = sor.u32 %s37, %s38
    %p40 = scmp.eq.s32.totalorder %s39, 0
    %s42 = sadd.s32 %s41, 1
    %s43 = scalar_select %p40, %s41, %s42
    %p46 = pneg %p40
    %p47 = scmp.eq.s32.totalorder %s10, 1
    %p48 = por %p46, %p47
    %p49 = scmp.ne.s32.totalorder %s41, %s44
    %p50 = scmp.eq.s32.totalorder %s10, 0
    %p51 = por %p49, %p50
    %p52 = scmp.ne.s32.totalorder %s41, %s44
    %p53 = scmp.eq.s32.totalorder %s15, 1
    %p54 = por %p52, %p53
    %p55 = scmp.ne.s32.totalorder %s44, %s45
    %p56 = scmp.eq.s32.totalorder %s15, 0
    %p57 = por %p55, %p56
    %p58 = scmp.ne.s32.totalorder %s44, %s45
    %p59 = scmp.eq.s32.totalorder %s16, 1
    %p60 = por %p58, %p59
    %p62 = scmp.ne.s32.totalorder %s45, %s61
    %p63 = scmp.eq.s32.totalorder %s16, 0
    %p64 = por %p62, %p63
    %s65 = ssub.s32 %s17, %s36
    %s66 = ssub.s32 %s18, %s32
    %s67 = sor.u32 %s65, %s66
    %p68 = scmp.eq.s32.totalorder %s67, 0
    %s70 = sadd.s32 %s69, 1
    %s71 = scalar_select %p68, %s69, %s70
    %p74 = pneg %p68
    %p75 = scmp.eq.s32.totalorder %s10, 1
    %p76 = por %p74, %p75
    %p77 = scmp.ne.s32.totalorder %s69, %s72
    %p78 = scmp.eq.s32.totalorder %s10, 0
    %p79 = por %p77, %p78
    %p80 = scmp.ne.s32.totalorder %s69, %s72
    %p81 = scmp.eq.s32.totalorder %s15, 1
    %p82 = por %p80, %p81
    %p83 = scmp.ne.s32.totalorder %s72, %s73
    %p84 = scmp.eq.s32.totalorder %s15, 0
    %p85 = por %p83, %p84
    %p86 = scmp.ne.s32.totalorder %s72, %s73
    %p87 = scmp.eq.s32.totalorder %s16, 1
    %p88 = por %p86, %p87
    %p90 = scmp.ne.s32.totalorder %s73, %s89
    %p91 = scmp.eq.s32.totalorder %s16, 0
    %p92 = por %p90, %p91
    %s93 = ssub.s32 %s17, %s36
    %s94 = ssub.s32 %s19, %s28
    %s95 = sor.u32 %s93, %s94
    %p96 = scmp.eq.s32.totalorder %s95, 0
    %s98 = sadd.s32 %s97, 1
    %s99 = scalar_select %p96, %s97, %s98
    %p102 = pneg %p96
    %p103 = scmp.eq.s32.totalorder %s10, 1
    %p104 = por %p102, %p103
    %p105 = scmp.ne.s32.totalorder %s97, %s100
    %p106 = scmp.eq.s32.totalorder %s10, 0
    %p107 = por %p105, %p106
    %p108 = scmp.ne.s32.totalorder %s97, %s100
    %p109 = scmp.eq.s32.totalorder %s15, 1
    %p110 = por %p108, %p109
    %p111 = scmp.ne.s32.totalorder %s100, %s101
    %p112 = scmp.eq.s32.totalorder %s15, 0
    %p113 = por %p111, %p112
    %p114 = scmp.ne.s32.totalorder %s100, %s101
    %p115 = scmp.eq.s32.totalorder %s16, 1
    %p116 = por %p114, %p115
    %p118 = scmp.ne.s32.totalorder %s101, %s117
    %p119 = scmp.eq.s32.totalorder %s16, 0
    %p120 = por %p118, %p119
    %s121 = ssub.s32 %s17, %s36
    %s122 = ssub.s32 %s19, %s28
    %s123 = sor.u32 %s121, %s122
    %p124 = scmp.eq.s32.totalorder %s123, 0
    %s126 = sadd.s32 %s125, 1
    %s127 = scalar_select %p124, %s125, %s126
    %p130 = pneg %p124
    %p131 = scmp.eq.s32.totalorder %s10, 1
    %p132 = por %p130, %p131
    %p133 = scmp.ne.s32.totalorder %s125, %s128
    %p134 = scmp.eq.s32.totalorder %s10, 0
    %p135 = por %p133, %p134
    %p136 = scmp.ne.s32.totalorder %s125, %s128
    %p137 = scmp.eq.s32.totalorder %s15, 1
    %p138 = por %p136, %p137
    %p139 = scmp.ne.s32.totalorder %s128, %s129
    %p140 = scmp.eq.s32.totalorder %s15, 0
    %p141 = por %p139, %p140
    %p142 = scmp.ne.s32.totalorder %s128, %s129
    %p143 = scmp.eq.s32.totalorder %s16, 1
    %p144 = por %p142, %p143
    %p146 = scmp.ne.s32.totalorder %s129, %s145
    %p147 = scmp.eq.s32.totalorder %s16, 0
    %p148 = por %p146, %p147
    %s149 = ssub.s32 %s17, %s36
    %s150 = ssub.s32 %s18, %s32
    %s151 = sor.u32 %s149, %s150
    %p152 = scmp.eq.s32.totalorder %s151, 0
    %s154 = sadd.s32 %s153, 1
    %s155 = scalar_select %p152, %s153, %s154
    %p158 = pneg %p152
    %p159 = scmp.eq.s32.totalorder %s10, 1
    %p160 = por %p158, %p159
    %p161 = scmp.ne.s32.totalorder %s153, %s156
    %p162 = scmp.eq.s32.totalorder %s10, 0
    %p163 = por %p161, %p162
    %p164 = scmp.ne.s32.totalorder %s153, %s156
    %p165 = scmp.eq.s32.totalorder %s15, 1
    %p166 = por %p164, %p165
    %p167 = scmp.ne.s32.totalorder %s156, %s157
    %p168 = scmp.eq.s32.totalorder %s15, 0
    %p169 = por %p167, %p168
    %p170 = scmp.ne.s32.totalorder %s156, %s157
    %p171 = scmp.eq.s32.totalorder %s16, 1
    %p172 = por %p170, %p171
    %p174 = scmp.ne.s32.totalorder %s157, %s173
    %p175 = scmp.eq.s32.totalorder %s16, 0
    %p176 = por %p174, %p175
    %p177 = scmp.le.s32.totalorder 1, %s10
    %p178 = scmp.lt.s32.totalorder %s10, 3
    %p179 = pnand %p177, %p178
    %p180 = pneg %p179
    // Predicated region
    $region9: #{transformer_forward.26} parent=5 // pred_check
      _
    $region10: #{transformer_forward.26} parent=5 // pred_check_branch
      %182 = sbr.rel (%p179) target = $region12
    $region11: #{transformer_forward.26} parent=5 // pred_region
      %s183 = ssub.s32 %s10, 1
    $region12: #{transformer_forward.26} parent=5 // pred_fallthru
      _
    %p184 = scmp.lt.s32.totalorder %s10, 2
    // Predicated region
    $region13: #{transformer_forward.26} parent=5 // pred_check
      %p185 = pneg %p184
    $region14: #{transformer_forward.26} parent=5 // pred_check_branch
      %187 = sbr.rel (%p185) target = $region16
    $region15: #{transformer_forward.26} parent=5 // pred_region
      // Predicated region
      $region17: #{transformer_forward.26} parent=15 // pred_check
        %p188 = pneg %p51
      $region18: #{transformer_forward.26} parent=15 // pred_check_branch
        %190 = sbr.rel (%p188) target = $region20
      $region19: #{transformer_forward.26} parent=15 // pred_region
        %p191 = scmp.lt.s32.totalorder %s17, 1
        %s192 = scalar_select %p191, %s17, 1
        %p193 = scmp.lt.s32.totalorder %s19, 0
        %s194 = scalar_select %p193, %s19, 0
        %s195 = sadd.s32 %s194, %s192
        %s196 = scalar_lea.vmem %s0, %s195
      $region20: #{transformer_forward.26} parent=15 // pred_fallthru
        _
      // Predicated region
      $region21: #{transformer_forward.26} parent=15 // pred_check
        %p197 = pneg %p79
      $region22: #{transformer_forward.26} parent=15 // pred_check_branch
        %199 = sbr.rel (%p197) target = $region24
      $region23: #{transformer_forward.26} parent=15 // pred_region
        %p200 = scmp.lt.s32.totalorder %s17, 1
        %s201 = scalar_select %p200, %s17, 1
        %p202 = scmp.lt.s32.totalorder %s18, 0
        %s203 = scalar_select %p202, %s18, 0
        %s204 = sadd.s32 %s203, %s201
        %s205 = smul.addr %s204, 4
        %s206 = scalar_lea.vmem %s1, %s205
      $region24: #{transformer_forward.26} parent=15 // pred_fallthru
        _
      // Predicated region
      $region25: #{transformer_forward.26} parent=15 // pred_check
        %p207 = pneg %p107
      $region26: #{transformer_forward.26} parent=15 // pred_check_branch
        %209 = sbr.rel (%p207) target = $region28
      $region27: #{transformer_forward.26} parent=15 // pred_region
        %p210 = scmp.lt.s32.totalorder %s17, 1
        %s211 = scalar_select %p210, %s17, 1
        %p212 = scmp.lt.s32.totalorder %s19, 0
        %s213 = scalar_select %p212, %s19, 0
        %s214 = sadd.s32 %s213, %s211
        %s215 = smul.addr %s214, 4
        %s216 = scalar_lea.vmem %s2, %s215
      $region28: #{transformer_forward.26} parent=15 // pred_fallthru
        _
      // Predicated region
      $region29: #{transformer_forward.26} parent=15 // pred_check
        %p217 = pneg %p135
      $region30: #{transformer_forward.26} parent=15 // pred_check_branch
        %219 = sbr.rel (%p217) target = $region32
      $region31: #{transformer_forward.26} parent=15 // pred_region
        %p220 = scmp.lt.s32.totalorder %s17, 1
        %s221 = scalar_select %p220, %s17, 1
        %p222 = scmp.lt.s32.totalorder %s19, 0
        %s223 = scalar_select %p222, %s19, 0
        %s224 = sadd.s32 %s223, %s221
        %s225 = smul.addr %s224, 4
        %s226 = scalar_lea.vmem %s3, %s225
      $region32: #{transformer_forward.26} parent=15 // pred_fallthru
        _
    $region16: #{transformer_forward.26} parent=5 // pred_fallthru
      _
    %p227 = scmp.le.s32.totalorder 1, %s10
    %p228 = scmp.lt.s32.totalorder %s10, 3
    %p229 = pnand %p227, %p228
    %p230 = pneg %p229
    // Predicated region
    $region33: #{transformer_forward.26} parent=5 // pred_check
      _
    $region34: #{transformer_forward.26} parent=5 // pred_check_branch
      %232 = sbr.rel (%p229) target = $region36
    $region35: #{transformer_forward.26} parent=5 // pred_region
      %s233 = ssub.s32 %s10, 1
      %p234 = scmp.lt.s32.totalorder %s20, 1
      %s235 = scalar_select %p234, %s20, 1
      %p236 = scmp.lt.s32.totalorder %s22, 0
      %s237 = scalar_select %p236, %s22, 0
      %s238 = sadd.s32 %s237, %s235
      %s239 = scalar_lea.vmem %s0, %s238
      %p240 = pneg %p57
      %p241 = pneg %p54
      %p242 = scmp.lt.s32.totalorder %s20, 1
      %s243 = scalar_select %p242, %s20, 1
      %p244 = scmp.lt.s32.totalorder %s21, 0
      %s245 = scalar_select %p244, %s21, 0
      %s246 = sadd.s32 %s245, %s243
      %s247 = smul.addr %s246, 4
      %s248 = scalar_lea.vmem %s1, %s247
      %p249 = pneg %p85
      %p250 = pneg %p82
      %p251 = scmp.lt.s32.totalorder %s20, 1
      %s252 = scalar_select %p251, %s20, 1
      %p253 = scmp.lt.s32.totalorder %s22, 0
      %s254 = scalar_select %p253, %s22, 0
      %s255 = sadd.s32 %s254, %s252
      %s256 = smul.addr %s255, 4
      %s257 = scalar_lea.vmem %s2, %s256
      %p258 = pneg %p113
      %p259 = pneg %p110
      %p260 = scmp.lt.s32.totalorder %s20, 1
      %s261 = scalar_select %p260, %s20, 1
      %p262 = scmp.lt.s32.totalorder %s22, 0
      %s263 = scalar_select %p262, %s22, 0
      %s264 = sadd.s32 %s263, %s261
      %s265 = smul.addr %s264, 4
      %s266 = scalar_lea.vmem %s3, %s265
      %p267 = pneg %p141
      %p268 = pneg %p138
      %p269 = pneg %p169
      %p270 = pneg %p166
      %p271 = scmp.lt.s32.totalorder %s20, 1
      %s272 = scalar_select %p271, %s20, 1
      %p273 = scmp.lt.s32.totalorder %s21, 0
      %s274 = scalar_select %p273, %s21, 0
      %s275 = sadd.s32 %s274, %s272
      %s276 = smul.addr %s275, 4
      %s277 = scalar_lea.vmem %s4, %s276
      %p278 = scmp.lt.s32.totalorder %s20, 1
      %s279 = scalar_select %p278, %s20, 1
      %p280 = scmp.lt.s32.totalorder %s22, 0
      %s281 = scalar_select %p280, %s22, 0
      %s282 = sadd.s32 %s281, %s279
      %s283 = scalar_lea.vmem %s0, %s282
      %p284 = scmp.lt.s32.totalorder %s20, 1
      %s285 = scalar_select %p284, %s20, 1
      %p286 = scmp.lt.s32.totalorder %s21, 0
      %s287 = scalar_select %p286, %s21, 0
      %s288 = sadd.s32 %s287, %s285
      %s289 = smul.addr %s288, 4
      %s290 = scalar_lea.vmem %s1, %s289
      %p291 = scmp.lt.s32.totalorder %s20, 1
      %s292 = scalar_select %p291, %s20, 1
      %p293 = scmp.lt.s32.totalorder %s22, 0
      %s294 = scalar_select %p293, %s22, 0
      %s295 = sadd.s32 %s294, %s292
      %s296 = smul.addr %s295, 4
      %s297 = scalar_lea.vmem %s2, %s296
      %p298 = scmp.lt.s32.totalorder %s20, 1
      %s299 = scalar_select %p298, %s20, 1
      %p300 = scmp.lt.s32.totalorder %s22, 0
      %s301 = scalar_select %p300, %s22, 0
      %s302 = sadd.s32 %s301, %s299
      %s303 = smul.addr %s302, 4
      %s304 = scalar_lea.vmem %s3, %s303
      %p305 = scmp.lt.s32.totalorder %s20, 1
      %s306 = scalar_select %p305, %s20, 1
      %p307 = scmp.lt.s32.totalorder %s21, 0
      %s308 = scalar_select %p307, %s21, 0
      %s309 = sadd.s32 %s308, %s306
      %s310 = smul.addr %s309, 4
      %s311 = scalar_lea.vmem %s4, %s310
      %p313 = scmp.eq.s32.totalorder %s22, 0
      // Predicated region
      $region37: #{transformer_forward.26} parent=35 // pred_check
        %p314 = pneg %p313
      $region38: #{transformer_forward.26} parent=35 // pred_check_branch
        %316 = sbr.rel (%p314) target = $region40
      $region39: #{transformer_forward.26} parent=35 // pred_region
        %vm317 = vcmask 7168
        %318 = vst.msk [vmem:[#allocation2] sm:$0xff] %vm317, -inf
        %319 = vst.msk [vmem:[#allocation2 + $0x8] sm:$0xff] %vm317, -inf
        %320 = vst.msk [vmem:[#allocation2 + $0x10] sm:$0xff] %vm317, -inf
        %321 = vst.msk [vmem:[#allocation2 + $0x18] sm:$0xff] %vm317, -inf
        %322 = vst.msk [vmem:[#allocation3] sm:$0xff] %vm317, 0.0
        %323 = vst.msk [vmem:[#allocation3 + $0x8] sm:$0xff] %vm317, 0.0
        %324 = vst.msk [vmem:[#allocation3 + $0x10] sm:$0xff] %vm317, 0.0
        %325 = vst.msk [vmem:[#allocation3 + $0x18] sm:$0xff] %vm317, 0.0
        %vm326 = vcmask 64512
        %327 = vst.msk [vmem:[#allocation4] sm:$0xff] %vm326, 0.0
        %328 = vst.msk [vmem:[#allocation4 + $0x8] sm:$0xff] %vm326, 0.0
        %329 = vst.msk [vmem:[#allocation4 + $0x10] sm:$0xff] %vm326, 0.0
        %330 = vst.msk [vmem:[#allocation4 + $0x18] sm:$0xff] %vm326, 0.0
      $region40: #{transformer_forward.26} parent=35 // pred_fallthru
        _
      %v331 = vld [vmem:[%s290] sm:$0xf]
      %v332 = vld [vmem:[%s297] sm:$0xf]
      %v333 = vld [vmem:[%s304] sm:$0xf]
      %v334 = vld [vmem:[%s283] sm:$0x1]
      %v336 = vperm.slane %v334, 0
      %vm338 = vcmask 64512
      %v340 = vsel %vm338, %v331, 0
      %v343 = vsel %vm338, %v332, 0
      %345 = vmatpush.bf16.xpose.msra.mxu0 0
      %346 = vmatpush.bf16.xpose.msra.mxu0 0
      %347 = vmatpush.bf16.xpose.msra.mxu0 0
      %348 = vmatpush.bf16.xpose.msra.mxu0 0
      %349 = vmatpush.bf16.xpose.msra.mxu0 0
      %350 = vmatpush.bf16.xpose.msra.mxu0 0
      %351 = vmatpush.bf16.xpose.msra.mxu0 0
      %352 = vmatpush.bf16.xpose.msra.mxu0 %v343
      %353 = vmatmul.bf16.gmra.mxu0 %v340
      %v354 = vpop.f32.mrf.mxu0
      %v355 = vadd.f32 %v336, %v354
      %v356 = vpop.f32.mrf.mxu0
      %357 = vdwg.mxu0
      %v358 = vld [vmem:[#allocation2] sm:$0xff]
      %v359 = vsel %vm338, %v355, -inf
      %360 = vmax.xlane.f32.xlu0 %v359
      %v361 = vpop.xlane.xlu0 %360
      %v362 = vmax.f32 %v358, %v361
      %v363 = vsub.f32 %v358, %v362
      %v364 = vmul.f32 %v363, 1.442695
      %v365 = vpow.pop %v364
      %367 = vset.pattern.permute.xlu0 0
      %368 = vperm.xlu0 %367, %v362
      %v369 = vpop.permute.xlu0 %368
      %v371 = vsub.f32 %v355, %v369
      %v372 = vmul.f32 %v371, 1.442695
      %v373 = vpow.pop %v372
      %v374 = vld [vmem:[#allocation3] sm:$0xff]
      %v375 = vmul.f32 %v365, %v374
      %v376 = vsel %vm338, %v373, 0.0
      %377 = vadd.xlane.f32.xlu0 %v376
      %v378 = vpop.xlane.xlu0 %377
      %v379 = vadd.f32 %v375, %v378
      %vm380 = vcmask 7168
      %381 = vst.msk [vmem:[#allocation3] sm:$0xff] %vm380, %v379
      %v382 = vld [vmem:[#allocation4] sm:$0xff]
      %384 = vset.pattern.permute.xlu0 0
      %385 = vperm.xlu0 %384, %v365
      %v386 = vpop.permute.xlu0 %385
      %v388 = vmul.f32 %v386, %v382
      %v389 = vpack.c.bf16 %v373, %v373
      %v391 = vsel %vm338, %v389, 0
      %vm393 = vcmask 1043456
      %v395 = vsel %vm393, %v333, 0
      %397 = vmatpush.bf16.msra.mxu0 0
      %398 = vmatpush.bf16.msra.mxu0 0
      %399 = vmatpush.bf16.msra.mxu0 0
      %400 = vmatpush.bf16.msra.mxu0 0
      %401 = vmatpush.bf16.msra.mxu0 0
      %402 = vmatpush.bf16.msra.mxu0 0
      %403 = vmatpush.bf16.msra.mxu0 0
      %404 = vmatpush.bf16.msra.mxu0 %v395
      %405 = vmatmul.bf16.gmra.mxu0 %v391
      %v406 = vpop.f32.mrf.mxu0
      %v407 = vadd.f32 0.0, %v406
      %v408 = vpop.f32.mrf.mxu0
      %409 = vdwg.mxu0
      %v410 = vadd.f32 %v388, %v407
      %411 = vst.msk [vmem:[#allocation4] sm:$0xff] %vm338, %v410
      %412 = vst.msk [vmem:[#allocation2] sm:$0xff] %vm380, %v362
      %v414 = vunpack.c.l.b16 %v331
      %v415 = vpack.c.b16 %v414, %v414
      %416 = vrot.lane.b32.xlu0 %v415, 120
      %v417 = vpop.permute.xlu0 %416
      %v419 = vunpack.c.l.b16 %v332
      %v420 = vpack.c.b16 %v419, %v419
      %421 = vrot.lane.b32.xlu0 %v420, 120
      %v422 = vpop.permute.xlu0 %421
      %v424 = vsel %vm338, %v417, 0
      %v427 = vsel %vm338, %v422, 0
      %429 = vmatpush.bf16.xpose.msra.mxu0 0
      %430 = vmatpush.bf16.xpose.msra.mxu0 0
      %431 = vmatpush.bf16.xpose.msra.mxu0 0
      %432 = vmatpush.bf16.xpose.msra.mxu0 0
      %433 = vmatpush.bf16.xpose.msra.mxu0 0
      %434 = vmatpush.bf16.xpose.msra.mxu0 0
      %435 = vmatpush.bf16.xpose.msra.mxu0 0
      %436 = vmatpush.bf16.xpose.msra.mxu0 %v427
      %437 = vmatmul.bf16.gmra.mxu0 %v424
      %v438 = vpop.f32.mrf.mxu0
      %v439 = vadd.f32 %v336, %v438
      %v440 = vpop.f32.mrf.mxu0
      %441 = vdwg.mxu0
      %s442 = scalar_lea.vmem [#allocation2], 8
      %v443 = vld [vmem:[%s442] sm:$0xff]
      %v444 = vsel %vm338, %v439, -inf
      %445 = vmax.xlane.f32.xlu0 %v444
      %v446 = vpop.xlane.xlu0 %445
      %v447 = vmax.f32 %v443, %v446
      %v448 = vsub.f32 %v443, %v447
      %v449 = vmul.f32 %v448, 1.442695
      %v450 = vpow.pop %v449
      %452 = vset.pattern.permute.xlu0 0
      %453 = vperm.xlu0 %452, %v447
      %v454 = vpop.permute.xlu0 %453
      %v456 = vsub.f32 %v439, %v454
      %v457 = vmul.f32 %v456, 1.442695
      %v458 = vpow.pop %v457
      %s459 = scalar_lea.vmem [#allocation3], 8
      %v460 = vld [vmem:[%s459] sm:$0xff]
      %v461 = vmul.f32 %v450, %v460
      %v462 = vsel %vm338, %v458, 0.0
      %463 = vadd.xlane.f32.xlu0 %v462
      %v464 = vpop.xlane.xlu0 %463
      %v465 = vadd.f32 %v461, %v464
      %466 = vst.msk [vmem:[%s459] sm:$0xff] %vm380, %v465
      %s467 = scalar_lea.vmem [#allocation4], 8
      %v468 = vld [vmem:[%s467] sm:$0xff]
      %470 = vset.pattern.permute.xlu0 0
      %471 = vperm.xlu0 %470, %v450
      %v472 = vpop.permute.xlu0 %471
      %v474 = vmul.f32 %v472, %v468
      %v475 = vpack.c.bf16 %v458, %v458
      %v477 = vunpack.c.l.b16 %v333
      %v478 = vpack.c.b16 %v477, %v477
      %479 = vrot.lane.b32.xlu0 %v478, 120
      %v480 = vpop.permute.xlu0 %479
      %v482 = vsel %vm338, %v475, 0
      %v485 = vsel %vm393, %v480, 0
      %487 = vmatpush.bf16.msra.mxu0 0
      %488 = vmatpush.bf16.msra.mxu0 0
      %489 = vmatpush.bf16.msra.mxu0 0
      %490 = vmatpush.bf16.msra.mxu0 0
      %491 = vmatpush.bf16.msra.mxu0 0
      %492 = vmatpush.bf16.msra.mxu0 0
      %493 = vmatpush.bf16.msra.mxu0 0
      %494 = vmatpush.bf16.msra.mxu0 %v485
      %495 = vmatmul.bf16.gmra.mxu0 %v482
      %v496 = vpop.f32.mrf.mxu0
      %v497 = vadd.f32 0.0, %v496
      %v498 = vpop.f32.mrf.mxu0
      %499 = vdwg.mxu0
      %v500 = vadd.f32 %v474, %v497
      %501 = vst.msk [vmem:[%s467] sm:$0xff] %vm338, %v500
      %502 = vst.msk [vmem:[%s442] sm:$0xff] %vm380, %v447
      %503 = vrot.lane.b32.xlu0 %v415, 112
      %v504 = vpop.permute.xlu0 %503
      %505 = vrot.lane.b32.xlu0 %v420, 112
      %v506 = vpop.permute.xlu0 %505
      %v508 = vsel %vm338, %v504, 0
      %v511 = vsel %vm338, %v506, 0
      %513 = vmatpush.bf16.xpose.msra.mxu0 0
      %514 = vmatpush.bf16.xpose.msra.mxu0 0
      %515 = vmatpush.bf16.xpose.msra.mxu0 0
      %516 = vmatpush.bf16.xpose.msra.mxu0 0
      %517 = vmatpush.bf16.xpose.msra.mxu0 0
      %518 = vmatpush.bf16.xpose.msra.mxu0 0
      %519 = vmatpush.bf16.xpose.msra.mxu0 0
      %520 = vmatpush.bf16.xpose.msra.mxu0 %v511
      %521 = vmatmul.bf16.gmra.mxu0 %v508
      %v522 = vpop.f32.mrf.mxu0
      %v523 = vadd.f32 %v336, %v522
      %v524 = vpop.f32.mrf.mxu0
      %525 = vdwg.mxu0
      %s526 = scalar_lea.vmem [#allocation2], 16
      %v527 = vld [vmem:[%s526] sm:$0xff]
      %v528 = vsel %vm338, %v523, -inf
      %529 = vmax.xlane.f32.xlu0 %v528
      %v530 = vpop.xlane.xlu0 %529
      %v531 = vmax.f32 %v527, %v530
      %v532 = vsub.f32 %v527, %v531
      %v533 = vmul.f32 %v532, 1.442695
      %v534 = vpow.pop %v533
      %536 = vset.pattern.permute.xlu0 0
      %537 = vperm.xlu0 %536, %v531
      %v538 = vpop.permute.xlu0 %537
      %v540 = vsub.f32 %v523, %v538
      %v541 = vmul.f32 %v540, 1.442695
      %v542 = vpow.pop %v541
      %s543 = scalar_lea.vmem [#allocation3], 16
      %v544 = vld [vmem:[%s543] sm:$0xff]
      %v545 = vmul.f32 %v534, %v544
      %v546 = vsel %vm338, %v542, 0.0
      %547 = vadd.xlane.f32.xlu0 %v546
      %v548 = vpop.xlane.xlu0 %547
      %v549 = vadd.f32 %v545, %v548
      %550 = vst.msk [vmem:[%s543] sm:$0xff] %vm380, %v549
      %s551 = scalar_lea.vmem [#allocation4], 16
      %v552 = vld [vmem:[%s551] sm:$0xff]
      %554 = vset.pattern.permute.xlu0 0
      %555 = vperm.xlu0 %554, %v534
      %v556 = vpop.permute.xlu0 %555
      %v558 = vmul.f32 %v556, %v552
      %v559 = vpack.c.bf16 %v542, %v542
      %560 = vrot.lane.b32.xlu0 %v478, 112
      %v561 = vpop.permute.xlu0 %560
      %v563 = vsel %vm338, %v559, 0
      %v566 = vsel %vm393, %v561, 0
      %568 = vmatpush.bf16.msra.mxu0 0
      %569 = vmatpush.bf16.msra.mxu0 0
      %570 = vmatpush.bf16.msra.mxu0 0
      %571 = vmatpush.bf16.msra.mxu0 0
      %572 = vmatpush.bf16.msra.mxu0 0
      %573 = vmatpush.bf16.msra.mxu0 0
      %574 = vmatpush.bf16.msra.mxu0 0
      %575 = vmatpush.bf16.msra.mxu0 %v566
      %576 = vmatmul.bf16.gmra.mxu0 %v563
      %v577 = vpop.f32.mrf.mxu0
      %v578 = vadd.f32 0.0, %v577
      %v579 = vpop.f32.mrf.mxu0
      %580 = vdwg.mxu0
      %v581 = vadd.f32 %v558, %v578
      %582 = vst.msk [vmem:[%s551] sm:$0xff] %vm338, %v581
      %583 = vst.msk [vmem:[%s526] sm:$0xff] %vm380, %v531
      %584 = vrot.lane.b32.xlu0 %v415, 104
      %v585 = vpop.permute.xlu0 %584
      %586 = vrot.lane.b32.xlu0 %v420, 104
      %v587 = vpop.permute.xlu0 %586
      %v589 = vsel %vm338, %v585, 0
      %v592 = vsel %vm338, %v587, 0
      %594 = vmatpush.bf16.xpose.msra.mxu0 0
      %595 = vmatpush.bf16.xpose.msra.mxu0 0
      %596 = vmatpush.bf16.xpose.msra.mxu0 0
      %597 = vmatpush.bf16.xpose.msra.mxu0 0
      %598 = vmatpush.bf16.xpose.msra.mxu0 0
      %599 = vmatpush.bf16.xpose.msra.mxu0 0
      %600 = vmatpush.bf16.xpose.msra.mxu0 0
      %601 = vmatpush.bf16.xpose.msra.mxu0 %v592
      %602 = vmatmul.bf16.gmra.mxu0 %v589
      %v603 = vpop.f32.mrf.mxu0
      %v604 = vadd.f32 %v336, %v603
      %v605 = vpop.f32.mrf.mxu0
      %606 = vdwg.mxu0
      %s607 = scalar_lea.vmem [#allocation2], 24
      %v608 = vld [vmem:[%s607] sm:$0xff]
      %v609 = vsel %vm338, %v604, -inf
      %610 = vmax.xlane.f32.xlu0 %v609
      %v611 = vpop.xlane.xlu0 %610
      %v612 = vmax.f32 %v608, %v611
      %v613 = vsub.f32 %v608, %v612
      %v614 = vmul.f32 %v613, 1.442695
      %v615 = vpow.pop %v614
      %617 = vset.pattern.permute.xlu0 0
      %618 = vperm.xlu0 %617, %v612
      %v619 = vpop.permute.xlu0 %618
      %v621 = vsub.f32 %v604, %v619
      %v622 = vmul.f32 %v621, 1.442695
      %v623 = vpow.pop %v622
      %s624 = scalar_lea.vmem [#allocation3], 24
      %v625 = vld [vmem:[%s624] sm:$0xff]
      %v626 = vmul.f32 %v615, %v625
      %v627 = vsel %vm338, %v623, 0.0
      %628 = vadd.xlane.f32.xlu0 %v627
      %v629 = vpop.xlane.xlu0 %628
      %v630 = vadd.f32 %v626, %v629
      %631 = vst.msk [vmem:[%s624] sm:$0xff] %vm380, %v630
      %s632 = scalar_lea.vmem [#allocation4], 24
      %v633 = vld [vmem:[%s632] sm:$0xff]
      %635 = vset.pattern.permute.xlu0 0
      %636 = vperm.xlu0 %635, %v615
      %v637 = vpop.permute.xlu0 %636
      %v639 = vmul.f32 %v637, %v633
      %v640 = vpack.c.bf16 %v623, %v623
      %641 = vrot.lane.b32.xlu0 %v478, 104
      %v642 = vpop.permute.xlu0 %641
      %v644 = vsel %vm338, %v640, 0
      %v647 = vsel %vm393, %v642, 0
      %649 = vmatpush.bf16.msra.mxu0 0
      %650 = vmatpush.bf16.msra.mxu0 0
      %651 = vmatpush.bf16.msra.mxu0 0
      %652 = vmatpush.bf16.msra.mxu0 0
      %653 = vmatpush.bf16.msra.mxu0 0
      %654 = vmatpush.bf16.msra.mxu0 0
      %655 = vmatpush.bf16.msra.mxu0 0
      %656 = vmatpush.bf16.msra.mxu0 %v647
      %657 = vmatmul.bf16.gmra.mxu0 %v644
      %v658 = vpop.f32.mrf.mxu0
      %v659 = vadd.f32 0.0, %v658
      %v660 = vpop.f32.mrf.mxu0
      %661 = vdwg.mxu0
      %v662 = vadd.f32 %v639, %v659
      %663 = vst.msk [vmem:[%s632] sm:$0xff] %vm338, %v662
      %664 = vst.msk [vmem:[%s607] sm:$0xff] %vm380, %v612
      // Predicated region
      $region41: #{transformer_forward.26} parent=35 // pred_check
        %p665 = pneg %p313
      $region42: #{transformer_forward.26} parent=35 // pred_check_branch
        %667 = sbr.rel (%p665) target = $region44
      $region43: #{transformer_forward.26} parent=35 // pred_region
        %v668 = vld [vmem:[#allocation4] sm:$0xff]
        %v669 = vld [vmem:[#allocation3] sm:$0xff]
        %v670 = vrcp.pop %v669
        %672 = vset.pattern.permute.xlu0 0
        %673 = vperm.xlu0 %672, %v670
        %v674 = vpop.permute.xlu0 %673
        %v676 = vmul.f32 %v668, %v674
        %v677 = vpack.c.bf16 %v676, %v676
        %vm678 = vcmask 60416
        %679 = vst.msk [vmem:[%s311] sm:$0xf] %vm678, %v677
        %v680 = vld [vmem:[%s467] sm:$0xff]
        %v681 = vld [vmem:[%s459] sm:$0xff]
        %v682 = vrcp.pop %v681
        %684 = vset.pattern.permute.xlu0 0
        %685 = vperm.xlu0 %684, %v682
        %v686 = vpop.permute.xlu0 %685
        %v688 = vmul.f32 %v680, %v686
        %v689 = vpack.c.bf16 %v688, %v688
        %691 = vrot.lane.b32.xlu0 %v689, 8
        %v692 = vpop.permute.xlu0 %691
        %vm694 = vcmask 126016
        %695 = vst.msk [vmem:[%s311] sm:$0xf] %vm694, %v692
        %v696 = vld [vmem:[%s551] sm:$0xff]
        %v697 = vld [vmem:[%s543] sm:$0xff]
        %v698 = vrcp.pop %v697
        %700 = vset.pattern.permute.xlu0 0
        %701 = vperm.xlu0 %700, %v698
        %v702 = vpop.permute.xlu0 %701
        %v704 = vmul.f32 %v696, %v702
        %v705 = vpack.c.bf16 %v704, %v704
        %707 = vrot.lane.b32.xlu0 %v705, 16
        %v708 = vpop.permute.xlu0 %707
        %vm710 = vcmask 191616
        %711 = vst.msk [vmem:[%s311] sm:$0xf] %vm710, %v708
        %v712 = vld [vmem:[%s632] sm:$0xff]
        %v713 = vld [vmem:[%s624] sm:$0xff]
        %v714 = vrcp.pop %v713
        %716 = vset.pattern.permute.xlu0 0
        %717 = vperm.xlu0 %716, %v714
        %v718 = vpop.permute.xlu0 %717
        %v720 = vmul.f32 %v712, %v718
        %v721 = vpack.c.bf16 %v720, %v720
        %723 = vrot.lane.b32.xlu0 %v721, 24
        %v724 = vpop.permute.xlu0 %723
        %vm726 = vcmask 257216
        %727 = vst.msk [vmem:[%s311] sm:$0xf] %vm726, %v724
      $region44: #{transformer_forward.26} parent=35 // pred_fallthru
        _
      %p728 = scmp.lt.s32.totalorder %s20, 1
      %s729 = scalar_select %p728, %s20, 1
      %p730 = scmp.lt.s32.totalorder %s21, 0
      %s731 = scalar_select %p730, %s21, 0
      %s732 = sadd.s32 %s731, %s729
      %s733 = smul.addr %s732, 4
      %s734 = scalar_lea.vmem %s4, %s733
      // Predicated region
      $region45: #{transformer_forward.26} parent=35 // pred_check
        %p735 = pneg %p166
      $region46: #{transformer_forward.26} parent=35 // pred_check_branch
        %737 = sbr.rel (%p735) target = $region48
      $region47: #{transformer_forward.26} parent=35 // pred_region
        _
      $region48: #{transformer_forward.26} parent=35 // pred_fallthru
        _
    $region36: #{transformer_forward.26} parent=5 // pred_fallthru
      _
    %p738 = scmp.le.s32.totalorder 2, %s10
    // Predicated region
    $region49: #{transformer_forward.26} parent=5 // pred_check
      %p739 = pneg %p738
    $region50: #{transformer_forward.26} parent=5 // pred_check_branch
      %741 = sbr.rel (%p739) target = $region52
    $region51: #{transformer_forward.26} parent=5 // pred_region
      %s742 = ssub.s32 %s10, 2
      // Predicated region
      $region53: #{transformer_forward.26} parent=51 // pred_check
        %p743 = pneg %p172
      $region54: #{transformer_forward.26} parent=51 // pred_check_branch
        %745 = sbr.rel (%p743) target = $region56
      $region55: #{transformer_forward.26} parent=51 // pred_region
        %p746 = scmp.lt.s32.totalorder %s23, 1
        %s747 = scalar_select %p746, %s23, 1
        %p748 = scmp.lt.s32.totalorder %s24, 0
        %s749 = scalar_select %p748, %s24, 0
        %s750 = sadd.s32 %s749, %s747
        %s751 = smul.addr %s750, 4
        %s752 = scalar_lea.vmem %s4, %s751
      $region56: #{transformer_forward.26} parent=51 // pred_fallthru
        _
    $region52: #{transformer_forward.26} parent=5 // pred_fallthru
      _
  $region6: #{transformer_forward.26} parent=0 // loop_footer
    %s14 = sadd.s32 1, %s10
  $region7: #{transformer_forward.26} parent=0 // loop_footer_branch
    %9 = sbr.rel target = $region3
  $region8: #{transformer_forward.26} parent=0 // loop_exit
    _

// kernel: transformer_forward.37
$region0: #{transformer_forward.37}
  #allocation0 [shape = 'u32[]', space=smem, size = 0x4, offset = 0x4, fixed_abs, tag = 'smem constant byte address 0x4 - core index']
  #allocation1 [shape = 'u32[72,128]{1,0:T(1,128)}', space=vmem, size = 0x9000, scoped, tag = 'internal scratch']
  %s0 = inlined_call_operand.vmem [shape: f32[16,32], index: 0, kind: input, shape index: {}]
  %s1 = inlined_call_operand.vmem [shape: bf16[32,64], index: 1, kind: input, shape index: {}]
  %s2 = inlined_call_operand.vmem [shape: f32[1,64], index: 2, kind: input, shape index: {}]
  %s3 = inlined_call_operand.vmem [shape: bf16[16,32], index: 3, kind: output, shape index: {0}]
  %s4 = inlined_call_operand.vmem [shape: bf16[16,32], index: 4, kind: output, shape index: {1}]
  %5 = xla_tuple %s3, %s4
  %s6 = sld [smem:[#allocation0]]
  $region30: #{transformer_forward.37} parent=0
    _
  %s8 = ssub.s32 1, %s6
  %s9 = scalar_select 0, %s8, %s6
  // Predicated region
  $region2: #{transformer_forward.37} parent=0 // pred_check
    _
  $region3: #{transformer_forward.37} parent=0 // pred_check_branch
    %11 = sbr.rel (0) target = $region5
  $region4: #{transformer_forward.37} parent=0 // pred_region
    _
  $region5: #{transformer_forward.37} parent=0 // pred_fallthru
    _
  // Predicated region
  $region6: #{transformer_forward.37} parent=0 // pred_check
    _
  $region7: #{transformer_forward.37} parent=0 // pred_check_branch
    %13 = sbr.rel (0) target = $region9
  $region8: #{transformer_forward.37} parent=0 // pred_region
    _
  $region9: #{transformer_forward.37} parent=0 // pred_fallthru
    _
  // Predicated region
  $region10: #{transformer_forward.37} parent=0 // pred_check
    _
  $region11: #{transformer_forward.37} parent=0 // pred_check_branch
    %15 = sbr.rel (0) target = $region13
  $region12: #{transformer_forward.37} parent=0 // pred_region
    _
  $region13: #{transformer_forward.37} parent=0 // pred_fallthru
    _
  %v17 = vld [vmem:[%s0] sm:$0xff]
  %v18 = vld [vmem:[%s0 + $0x8] sm:$0xff]
  %v19 = vpack.c.bf16 %v18, %v17
  %v20 = vld [vmem:[%s1] sm:$0xf]
  %v21 = vld [vmem:[%s1 + $0x4] sm:$0xf]
  %v22 = vld [vmem:[%s1 + $0x8] sm:$0xf]
  %v23 = vld [vmem:[%s1 + $0xc] sm:$0xf]
  %v24 = vld [vmem:[%s2] sm:$0x1]
  %v26 = vperm.slane %v24, 0
  %v32 = vunpack.c.l.b16 %v20
  %v33 = vunpack.c.l.b16 %v21
  %v34 = vunpack.c.l.b16 %v22
  %v35 = vunpack.c.l.b16 %v23
  %v36 = vpack.c.b16 %v33, %v32
  %v37 = vpack.c.b16 %v35, %v34
  %vm40 = vcmask 261120
  %v42 = vsel %vm40, %v19, 0
  %44 = vmatpush.bf16.msra.mxu0 0
  %45 = vmatpush.bf16.msra.mxu0 0
  %46 = vmatpush.bf16.msra.mxu0 0
  %47 = vmatpush.bf16.msra.mxu0 0
  %48 = vmatpush.bf16.msra.mxu0 0
  %49 = vmatpush.bf16.msra.mxu0 0
  %50 = vmatpush.bf16.msra.mxu0 %v37
  %51 = vmatpush.bf16.msra.mxu0 %v36
  %52 = vmatmul.bf16.gmra.mxu0 %v42
  %v53 = vpop.f32.mrf.mxu0
  %v54 = vadd.f32 %v26, %v53
  %v55 = vpop.f32.mrf.mxu0
  %v56 = vadd.f32 %v26, %v55
  %57 = vdwg.mxu0
  %v58 = vpack.c.bf16 %v54, %v54
  %v59 = vpack.c.bf16 %v56, %v56
  %vm60 = vcmask 257024
  %61 = vst.msk [vmem:[%s3] sm:$0xf] %vm60, %v58
  %62 = vst.msk [vmem:[%s3 + $0x4] sm:$0xf] %vm60, %v59
  %65 = vrot.lane.b32.xlu0 %v58, 96
  %v66 = vpop.permute.xlu0 %65
  %67 = vrot.lane.b32.xlu0 %v59, 96
  %v68 = vpop.permute.xlu0 %67
  %71 = vst.msk [vmem:[%s4] sm:$0xf] %vm60, %v66
  %72 = vst.msk [vmem:[%s4 + $0x4] sm:$0xf] %vm60, %v68
  // Predicated region
  $region14: #{transformer_forward.37} parent=0 // pred_check
    _
  $region15: #{transformer_forward.37} parent=0 // pred_check_branch
    %74 = sbr.rel (0) target = $region17
  $region16: #{transformer_forward.37} parent=0 // pred_region
    _
  $region17: #{transformer_forward.37} parent=0 // pred_fallthru
    _
  // Predicated region
  $region18: #{transformer_forward.37} parent=0 // pred_check
    _
  $region19: #{transformer_forward.37} parent=0 // pred_check_branch
    %76 = sbr.rel (0) target = $region21
  $region20: #{transformer_forward.37} parent=0 // pred_region
    _
  $region21: #{transformer_forward.37} parent=0 // pred_fallthru
    _
  // Predicated region
  $region22: #{transformer_forward.37} parent=0 // pred_check
    _
  $region23: #{transformer_forward.37} parent=0 // pred_check_branch
    %78 = sbr.rel (0) target = $region25
  $region24: #{transformer_forward.37} parent=0 // pred_region
    _
  $region25: #{transformer_forward.37} parent=0 // pred_fallthru
    _
  // Predicated region
  $region26: #{transformer_forward.37} parent=0 // pred_check
    _
  $region27: #{transformer_forward.37} parent=0 // pred_check_branch
    %80 = sbr.rel (0) target = $region29
  $region28: #{transformer_forward.37} parent=0 // pred_region
    _
  $region29: #{transformer_forward.37} parent=0 // pred_fallthru
    _

// kernel: transformer_forward.36
$region0: #{transformer_forward.36}
  #allocation0 [shape = 'u32[]', space=smem, size = 0x4, offset = 0x4, fixed_abs, tag = 'smem constant byte address 0x4 - core index']
  #allocation1 [shape = 'u32[72,128]{1,0:T(1,128)}', space=vmem, size = 0x9000, scoped, tag = 'internal scratch']
  %s0 = inlined_call_operand.vmem [shape: f32[16,32], index: 0, kind: input, shape index: {}]
  %s1 = inlined_call_operand.vmem [shape: f32[1,32], index: 1, kind: input, shape index: {}]
  %s2 = inlined_call_operand.hbm [shape: f32[1,32], index: 2, kind: input, shape index: {}]
  %s3 = inlined_call_operand.vmem [shape: bf16[32,32], index: 3, kind: input, shape index: {}]
  %s4 = inlined_call_operand.hbm [shape: f32[1,32], index: 4, kind: input, shape index: {}]
  %s5 = inlined_call_operand.vmem [shape: bf16[16,32], index: 5, kind: output, shape index: {}]
  %s6 = sld [smem:[#allocation0]]
  $region38: #{transformer_forward.36} parent=0
    _
  %s8 = ssub.s32 1, %s6
  %s9 = scalar_select 0, %s8, %s6
  $region1: #{transformer_forward.36} parent=0
    #allocation2 [shape = 'u8[512]{0}', space=vmem, size = 0x400, scoped, tag = 'input window, operand 2, single buffered']
    #allocation3 [shape = 's32[1]{0}', space=sflag, size = 0x4, scoped, tag = 'scoped memory for transformer_forward.36']
    #allocation4 [shape = 'u8[512]{0}', space=vmem, size = 0x400, scoped, tag = 'input window, operand 4, single buffered']
    #allocation5 [shape = 's32[1]{0}', space=sflag, size = 0x4, scoped, tag = 'scoped memory for transformer_forward.36']
    %10 = vsyncpa [#allocation3], 0
    %11 = vsyncpa [#allocation5], 0
    // Predicated region
    $region2: #{transformer_forward.36} parent=1 // pred_check
      _
    $region3: #{transformer_forward.36} parent=1 // pred_check_branch
      %13 = sbr.rel (0) target = $region5
    $region4: #{transformer_forward.36} parent=1 // pred_region
      _
    $region5: #{transformer_forward.36} parent=1 // pred_fallthru
      _
    // Predicated region
    $region6: #{transformer_forward.36} parent=1 // pred_check
      _
    $region7: #{transformer_forward.36} parent=1 // pred_check_branch
      %15 = sbr.rel (0) target = $region9
    $region8: #{transformer_forward.36} parent=1 // pred_region
      _
    $region9: #{transformer_forward.36} parent=1 // pred_fallthru
      _
    // Predicated region
    $region10: #{transformer_forward.36} parent=1 // pred_check
      _
    $region11: #{transformer_forward.36} parent=1 // pred_check_branch
      %17 = sbr.rel (0) target = $region13
    $region12: #{transformer_forward.36} parent=1 // pred_region
      %19 = vsyncadd [#allocation3], 0
      %s21 = sshll.u32 %s2, 4
      %s22 = int_to_ptr.hbm [resolvable:$true] %s21
      %s23 = sshll.u32 [#allocation2], 4
      %s24 = int_to_ptr.vmem [resolvable:$true] %s23
      %26 = dma.hbm_to_vmem [thread:$0]  %s22, 16, %s24, [#allocation3]
    $region13: #{transformer_forward.36} parent=1 // pred_fallthru
      _
    // Predicated region
    $region14: #{transformer_forward.36} parent=1 // pred_check
      _
    $region15: #{transformer_forward.36} parent=1 // pred_check_branch
      %28 = sbr.rel (0) target = $region17
    $region16: #{transformer_forward.36} parent=1 // pred_region
      _
    $region17: #{transformer_forward.36} parent=1 // pred_fallthru
      _
    // Predicated region
    $region18: #{transformer_forward.36} parent=1 // pred_check
      _
    $region19: #{transformer_forward.36} parent=1 // pred_check_branch
      %30 = sbr.rel (0) target = $region21
    $region20: #{transformer_forward.36} parent=1 // pred_region
      %32 = vsyncadd [#allocation5], 0
      %s34 = sshll.u32 %s4, 4
      %s35 = int_to_ptr.hbm [resolvable:$true] %s34
      %s36 = sshll.u32 [#allocation4], 4
      %s37 = int_to_ptr.vmem [resolvable:$true] %s36
      %39 = dma.hbm_to_vmem [thread:$0]  %s35, 16, %s37, [#allocation5]
    $region21: #{transformer_forward.36} parent=1 // pred_fallthru
      _
    // Predicated region
    $region22: #{transformer_forward.36} parent=1 // pred_check
      _
    $region23: #{transformer_forward.36} parent=1 // pred_check_branch
      %41 = sbr.rel (0) target = $region25
    $region24: #{transformer_forward.36} parent=1 // pred_region
      %43 = dma.done [#allocation3], 16
    $region25: #{transformer_forward.36} parent=1 // pred_fallthru
      _
    // Predicated region
    $region26: #{transformer_forward.36} parent=1 // pred_check
      _
    $region27: #{transformer_forward.36} parent=1 // pred_check_branch
      %45 = sbr.rel (0) target = $region29
    $region28: #{transformer_forward.36} parent=1 // pred_region
      %47 = dma.done [#allocation5], 16
    $region29: #{transformer_forward.36} parent=1 // pred_fallthru
      _
    %v49 = vld [vmem:[%s0] sm:$0xff]
    %v50 = vld [vmem:[%s0 + $0x8] sm:$0xff]
    %vm51 = vcmask 261120
    %v52 = vsel %vm51, %v49, 0.0
    %53 = vadd.xlane.f32.xlu0 %v52
    %v54 = vpop.xlane.xlu0 %53
    %v55 = vsel %vm51, %v50, 0.0
    %56 = vadd.xlane.f32.xlu0 %v55
    %v57 = vpop.xlane.xlu0 %56
    %v58 = vrcp.pop 32.0
    %v59 = vmul.f32 32.0, %v58
    %v60 = vsub.f32 1.0, %v59
    %v61 = vmul.f32 %v58, %v60
    %v62 = vadd.f32 %v58, %v61
    %vm63 = vweird.f32 %v58
    %v64 = vsel %vm63, %v58, %v62
    %v65 = vmul.f32 %v54, %v64
    %v66 = vmul.f32 %v57, %v64
    %v67 = vsub.f32 %v49, %v65
    %v68 = vsub.f32 %v50, %v66
    %v69 = vmul.f32 %v67, %v67
    %v70 = vmul.f32 %v68, %v68
    %v71 = vsel %vm51, %v69, 0.0
    %72 = vadd.xlane.f32.xlu0 %v71
    %v73 = vpop.xlane.xlu0 %72
    %v74 = vsel %vm51, %v70, 0.0
    %75 = vadd.xlane.f32.xlu0 %v74
    %v76 = vpop.xlane.xlu0 %75
    %v77 = vmul.f32 %v73, %v64
    %v78 = vmul.f32 %v76, %v64
    %v79 = vadd.f32 %v77, 1e-05
    %v80 = vadd.f32 %v78, 1e-05
    %v81 = vrsqrt.pop %v79
    %v82 = vmul.f32 %v81, %v79
    %v83 = vmul.f32 %v82, %v81
    %v84 = vmul.f32 0.5, %v83
    %v85 = vsub.f32 1.5, %v84
    %v86 = vmul.f32 %v81, %v85
    %vm87 = vweird.f32 %v79
    %vm88 = vweird.f32 %v81
    %vm89 = vmor %vm87, %vm88
    %v90 = vsel %vm89, %v81, %v86
    %v91 = vrsqrt.pop %v80
    %v92 = vmul.f32 %v91, %v80
    %v93 = vmul.f32 %v92, %v91
    %v94 = vmul.f32 0.5, %v93
    %v95 = vsub.f32 1.5, %v94
    %v96 = vmul.f32 %v91, %v95
    %vm97 = vweird.f32 %v80
    %vm98 = vweird.f32 %v91
    %vm99 = vmor %vm97, %vm98
    %v100 = vsel %vm99, %v91, %v96
    %v101 = vmul.f32 %v67, %v90
    %v102 = vmul.f32 %v68, %v100
    %v103 = vld [vmem:[%s1] sm:$0x1]
    %v105 = vperm.slane %v103, 0
    %v107 = vmul.f32 %v101, %v105
    %v108 = vmul.f32 %v102, %v105
    %v109 = vld [vmem:[#allocation2] sm:$0x1]
    %v111 = vperm.slane %v109, 0
    %v113 = vadd.f32 %v107, %v111
    %v114 = vadd.f32 %v108, %v111
    %v115 = vpack.c.bf16 %v114, %v113
    %v116 = vld [vmem:[%s3] sm:$0xf]
    %v117 = vld [vmem:[%s3 + $0x4] sm:$0xf]
    %v118 = vld [vmem:[%s3 + $0x8] sm:$0xf]
    %v119 = vld [vmem:[%s3 + $0xc] sm:$0xf]
    %v120 = vld [vmem:[#allocation4] sm:$0x1]
    %v122 = vperm.slane %v120, 0
    %v128 = vunpack.c.l.b16 %v116
    %v129 = vunpack.c.l.b16 %v117
    %v130 = vunpack.c.l.b16 %v118
    %v131 = vunpack.c.l.b16 %v119
    %v132 = vpack.c.b16 %v129, %v128
    %v133 = vpack.c.b16 %v131, %v130
    %v137 = vsel %vm51, %v115, 0
    %139 = vmatpush.bf16.msra.mxu0 0
    %140 = vmatpush.bf16.msra.mxu0 0
    %141 = vmatpush.bf16.msra.mxu0 0
    %142 = vmatpush.bf16.msra.mxu0 0
    %143 = vmatpush.bf16.msra.mxu0 0
    %144 = vmatpush.bf16.msra.mxu0 0
    %145 = vmatpush.bf16.msra.mxu0 %v133
    %146 = vmatpush.bf16.msra.mxu0 %v132
    %147 = vmatmul.bf16.gmra.mxu0 %v137
    %v148 = vpop.f32.mrf.mxu0
    %v149 = vadd.f32 %v122, %v148
    %v150 = vpop.f32.mrf.mxu0
    %v151 = vadd.f32 %v122, %v150
    %152 = vdwg.mxu0
    %v153 = vpack.c.bf16 %v149, %v149
    %v154 = vpack.c.bf16 %v151, %v151
    %vm155 = vcmask 257024
    %156 = vst.msk [vmem:[%s5] sm:$0xf] %vm155, %v153
    %157 = vst.msk [vmem:[%s5 + $0x4] sm:$0xf] %vm155, %v154
    // Predicated region
    $region30: #{transformer_forward.36} parent=1 // pred_check
      _
    $region31: #{transformer_forward.36} parent=1 // pred_check_branch
      %159 = sbr.rel (0) target = $region33
    $region32: #{transformer_forward.36} parent=1 // pred_region
      _
    $region33: #{transformer_forward.36} parent=1 // pred_fallthru
      _
    // Predicated region
    $region34: #{transformer_forward.36} parent=1 // pred_check
      _
    $region35: #{transformer_forward.36} parent=1 // pred_check_branch
      %161 = sbr.rel (0) target = $region37
    $region36: #{transformer_forward.36} parent=1 // pred_region
      _
    $region37: #{transformer_forward.36} parent=1 // pred_fallthru
      _
    %162 = vsyncpa [#allocation3], 1
    %163 = vsyncpa [#allocation5], 1

// kernel: transformer_forward.39
$region0: #{transformer_forward.39}
  #allocation0 [shape = 'u32[]', space=smem, size = 0x4, offset = 0x4, fixed_abs, tag = 'smem constant byte address 0x4 - core index']
  #allocation1 [shape = 'u32[72,128]{1,0:T(1,128)}', space=vmem, size = 0x9000, scoped, tag = 'internal scratch']
  %s0 = inlined_call_operand.vmem [shape: bf16[16,32], index: 0, kind: input, shape index: {}]
  %s1 = inlined_call_operand.vmem [shape: f32[16,32], index: 1, kind: input, shape index: {}]
  %s2 = inlined_call_operand.vmem [shape: bf16[32,32], index: 2, kind: input, shape index: {}]
  %s3 = inlined_call_operand.hbm [shape: f32[1,32], index: 3, kind: input, shape index: {}]
  %s4 = inlined_call_operand.vmem [shape: f32[16,32], index: 4, kind: output, shape index: {}]
  %s5 = sld [smem:[#allocation0]]
  $region30: #{transformer_forward.39} parent=0
    _
  %s7 = ssub.s32 1, %s5
  %s8 = scalar_select 0, %s7, %s5
  $region1: #{transformer_forward.39} parent=0
    #allocation2 [shape = 'u8[512]{0}', space=vmem, size = 0x400, scoped, tag = 'input window, operand 3, single buffered']
    #allocation3 [shape = 's32[1]{0}', space=sflag, size = 0x4, scoped, tag = 'scoped memory for transformer_forward.39']
    %9 = vsyncpa [#allocation3], 0
    // Predicated region
    $region2: #{transformer_forward.39} parent=1 // pred_check
      _
    $region3: #{transformer_forward.39} parent=1 // pred_check_branch
      %11 = sbr.rel (0) target = $region5
    $region4: #{transformer_forward.39} parent=1 // pred_region
      _
    $region5: #{transformer_forward.39} parent=1 // pred_fallthru
      _
    // Predicated region
    $region6: #{transformer_forward.39} parent=1 // pred_check
      _
    $region7: #{transformer_forward.39} parent=1 // pred_check_branch
      %13 = sbr.rel (0) target = $region9
    $region8: #{transformer_forward.39} parent=1 // pred_region
      _
    $region9: #{transformer_forward.39} parent=1 // pred_fallthru
      _
    // Predicated region
    $region10: #{transformer_forward.39} parent=1 // pred_check
      _
    $region11: #{transformer_forward.39} parent=1 // pred_check_branch
      %15 = sbr.rel (0) target = $region13
    $region12: #{transformer_forward.39} parent=1 // pred_region
      _
    $region13: #{transformer_forward.39} parent=1 // pred_fallthru
      _
    // Predicated region
    $region14: #{transformer_forward.39} parent=1 // pred_check
      _
    $region15: #{transformer_forward.39} parent=1 // pred_check_branch
      %17 = sbr.rel (0) target = $region17
    $region16: #{transformer_forward.39} parent=1 // pred_region
      %19 = vsyncadd [#allocation3], 0
      %s21 = sshll.u32 %s3, 4
      %s22 = int_to_ptr.hbm [resolvable:$true] %s21
      %s23 = sshll.u32 [#allocation2], 4
      %s24 = int_to_ptr.vmem [resolvable:$true] %s23
      %26 = dma.hbm_to_vmem [thread:$0]  %s22, 16, %s24, [#allocation3]
    $region17: #{transformer_forward.39} parent=1 // pred_fallthru
      _
    // Predicated region
    $region18: #{transformer_forward.39} parent=1 // pred_check
      _
    $region19: #{transformer_forward.39} parent=1 // pred_check_branch
      %28 = sbr.rel (0) target = $region21
    $region20: #{transformer_forward.39} parent=1 // pred_region
      %30 = dma.done [#allocation3], 16
    $region21: #{transformer_forward.39} parent=1 // pred_fallthru
      _
    %v32 = vld [vmem:[%s0] sm:$0xf]
    %v33 = vld [vmem:[%s0 + $0x4] sm:$0xf]
    %v34 = vld [vmem:[%s2] sm:$0xf]
    %v35 = vld [vmem:[%s2 + $0x4] sm:$0xf]
    %v36 = vld [vmem:[%s2 + $0x8] sm:$0xf]
    %v37 = vld [vmem:[%s2 + $0xc] sm:$0xf]
    %v38 = vld [vmem:[#allocation2] sm:$0x1]
    %v40 = vperm.slane %v38, 0
    %v44 = vunpack.c.l.b16 %v32
    %v45 = vunpack.c.l.b16 %v33
    %v46 = vpack.c.b16 %v45, %v44
    %v51 = vunpack.c.l.b16 %v34
    %v52 = vunpack.c.l.b16 %v35
    %v53 = vunpack.c.l.b16 %v36
    %v54 = vunpack.c.l.b16 %v37
    %v55 = vpack.c.b16 %v52, %v51
    %v56 = vpack.c.b16 %v54, %v53
    %vm59 = vcmask 261120
    %v61 = vsel %vm59, %v46, 0
    %63 = vmatpush.bf16.msra.mxu0 0
    %64 = vmatpush.bf16.msra.mxu0 0
    %65 = vmatpush.bf16.msra.mxu0 0
    %66 = vmatpush.bf16.msra.mxu0 0
    %67 = vmatpush.bf16.msra.mxu0 0
    %68 = vmatpush.bf16.msra.mxu0 0
    %69 = vmatpush.bf16.msra.mxu0 %v56
    %70 = vmatpush.bf16.msra.mxu0 %v55
    %71 = vmatmul.bf16.gmra.mxu0 %v61
    %v72 = vpop.f32.mrf.mxu0
    %v73 = vadd.f32 %v40, %v72
    %v74 = vpop.f32.mrf.mxu0
    %v75 = vadd.f32 %v40, %v74
    %76 = vdwg.mxu0
    %v77 = vld [vmem:[%s1] sm:$0xff]
    %v78 = vld [vmem:[%s1 + $0x8] sm:$0xff]
    %v79 = vadd.f32 %v77, %v73
    %v80 = vadd.f32 %v78, %v75
    %81 = vst.msk [vmem:[%s4] sm:$0xff] %vm59, %v79
    %82 = vst.msk [vmem:[%s4 + $0x8] sm:$0xff] %vm59, %v80
    // Predicated region
    $region22: #{transformer_forward.39} parent=1 // pred_check
      _
    $region23: #{transformer_forward.39} parent=1 // pred_check_branch
      %84 = sbr.rel (0) target = $region25
    $region24: #{transformer_forward.39} parent=1 // pred_region
      _
    $region25: #{transformer_forward.39} parent=1 // pred_fallthru
      _
    // Predicated region
    $region26: #{transformer_forward.39} parent=1 // pred_check
      _
    $region27: #{transformer_forward.39} parent=1 // pred_check_branch
      %86 = sbr.rel (0) target = $region29
    $region28: #{transformer_forward.39} parent=1 // pred_region
      _
    $region29: #{transformer_forward.39} parent=1 // pred_fallthru
      _
    %87 = vsyncpa [#allocation3], 1

// kernel: transformer_forward.34
$region0: #{transformer_forward.34}
  #allocation0 [shape = 'u32[]', space=smem, size = 0x4, offset = 0x4, fixed_abs, tag = 'smem constant byte address 0x4 - core index']
  #allocation1 [shape = 'u32[72,128]{1,0:T(1,128)}', space=vmem, size = 0x9000, scoped, tag = 'internal scratch']
  #allocation2 [shape = 'f32[4,8,1]{2,1,0:T(8,128)}', space=vmem, size = 0x4000, scoped, tag = 'scratch operand']
  #allocation3 [shape = 'f32[4,8,1]{2,1,0:T(8,128)}', space=vmem, size = 0x4000, scoped, tag = 'scratch operand']
  #allocation4 [shape = 'f32[4,8,8]{2,1,0:T(8,128)}', space=vmem, size = 0x4000, scoped, tag = 'scratch operand']
  %s0 = inlined_call_operand.vmem [shape: f32[2,1,8], index: 0, kind: input, shape index: {}]
  %s1 = inlined_call_operand.vmem [shape: bf16[2,8,32], index: 1, kind: input, shape index: {}]
  %s2 = inlined_call_operand.vmem [shape: bf16[2,8,32], index: 2, kind: input, shape index: {}]
  %s3 = inlined_call_operand.vmem [shape: bf16[2,8,32], index: 3, kind: input, shape index: {}]
  %s4 = inlined_call_operand.vmem [shape: bf16[2,8,32], index: 4, kind: output, shape index: {}]
  %s5 = sld [smem:[#allocation0]]
  $region57: #{transformer_forward.34} parent=0
    _
  %s7 = ssub.s32 1, %s5
  %s8 = scalar_select 0, %s7, %s5
  loop: start=0, step=1, limit=4
  $region2: #{transformer_forward.34} parent=0 // loop_pre_header
    _
  $region3: #{transformer_forward.34} parent=0 // loop_header
    %s10 = sphi 0, %s14
    %p11 = scmp.ge.s32.totalorder %s10, 4
    %s17 = sphi 0, %s36
    %s18 = sphi 0, %s32
    %s19 = sphi 0, %s28
    %s20 = sphi 0, %s17
    %s21 = sphi 0, %s18
    %s22 = sphi 0, %s19
    %s23 = sphi 0, %s20
    %s24 = sphi 0, %s21
    %s25 = sphi 0, %s22
    %s41 = sphi 0, %s43
    %s44 = sphi 0, %s41
    %s45 = sphi 0, %s44
    %s61 = sphi 0, %s45
    %s69 = sphi 0, %s71
    %s72 = sphi 0, %s69
    %s73 = sphi 0, %s72
    %s89 = sphi 0, %s73
    %s97 = sphi 0, %s99
    %s100 = sphi 0, %s97
    %s101 = sphi 0, %s100
    %s117 = sphi 0, %s101
    %s125 = sphi 0, %s127
    %s128 = sphi 0, %s125
    %s129 = sphi 0, %s128
    %s145 = sphi 0, %s129
    %s153 = sphi 0, %s155
    %s156 = sphi 0, %s153
    %s157 = sphi 0, %s156
    %s173 = sphi 0, %s157
  $region4: #{transformer_forward.34} parent=0 // loop_header_branch
    %13 = sbr.rel (%p11) target = $region8
  $region5: #{transformer_forward.34} parent=0 // loop_body
    %s15 = ssub.s32 %s10, 1
    %s16 = ssub.s32 %s10, 2
    %s26 = sadd.s32 1, %s19
    %p27 = scmp.ge.s32.totalorder %s26, 1
    %s28 = scalar_select %p27, 0, %s26
    %s29 = sadd.s32 1, %s18
    %s30 = scalar_select %p27, %s29, %s18
    %p31 = scmp.ge.s32.totalorder %s30, 1
    %s32 = scalar_select %p31, 0, %s30
    %s33 = sadd.s32 1, %s17
    %s34 = scalar_select %p31, %s33, %s17
    %p35 = scmp.ge.s32.totalorder %s34, 2
    %s36 = scalar_select %p35, 0, %s34
    %s37 = ssub.s32 %s17, %s36
    %s38 = ssub.s32 %s19, %s28
    %s39 = sor.u32 %s37, %s38
    %p40 = scmp.eq.s32.totalorder %s39, 0
    %s42 = sadd.s32 %s41, 1
    %s43 = scalar_select %p40, %s41, %s42
    %p46 = pneg %p40
    %p47 = scmp.eq.s32.totalorder %s10, 1
    %p48 = por %p46, %p47
    %p49 = scmp.ne.s32.totalorder %s41, %s44
    %p50 = scmp.eq.s32.totalorder %s10, 0
    %p51 = por %p49, %p50
    %p52 = scmp.ne.s32.totalorder %s41, %s44
    %p53 = scmp.eq.s32.totalorder %s15, 1
    %p54 = por %p52, %p53
    %p55 = scmp.ne.s32.totalorder %s44, %s45
    %p56 = scmp.eq.s32.totalorder %s15, 0
    %p57 = por %p55, %p56
    %p58 = scmp.ne.s32.totalorder %s44, %s45
    %p59 = scmp.eq.s32.totalorder %s16, 1
    %p60 = por %p58, %p59
    %p62 = scmp.ne.s32.totalorder %s45, %s61
    %p63 = scmp.eq.s32.totalorder %s16, 0
    %p64 = por %p62, %p63
    %s65 = ssub.s32 %s17, %s36
    %s66 = ssub.s32 %s18, %s32
    %s67 = sor.u32 %s65, %s66
    %p68 = scmp.eq.s32.totalorder %s67, 0
    %s70 = sadd.s32 %s69, 1
    %s71 = scalar_select %p68, %s69, %s70
    %p74 = pneg %p68
    %p75 = scmp.eq.s32.totalorder %s10, 1
    %p76 = por %p74, %p75
    %p77 = scmp.ne.s32.totalorder %s69, %s72
    %p78 = scmp.eq.s32.totalorder %s10, 0
    %p79 = por %p77, %p78
    %p80 = scmp.ne.s32.totalorder %s69, %s72
    %p81 = scmp.eq.s32.totalorder %s15, 1
    %p82 = por %p80, %p81
    %p83 = scmp.ne.s32.totalorder %s72, %s73
    %p84 = scmp.eq.s32.totalorder %s15, 0
    %p85 = por %p83, %p84
    %p86 = scmp.ne.s32.totalorder %s72, %s73
    %p87 = scmp.eq.s32.totalorder %s16, 1
    %p88 = por %p86, %p87
    %p90 = scmp.ne.s32.totalorder %s73, %s89
    %p91 = scmp.eq.s32.totalorder %s16, 0
    %p92 = por %p90, %p91
    %s93 = ssub.s32 %s17, %s36
    %s94 = ssub.s32 %s19, %s28
    %s95 = sor.u32 %s93, %s94
    %p96 = scmp.eq.s32.totalorder %s95, 0
    %s98 = sadd.s32 %s97, 1
    %s99 = scalar_select %p96, %s97, %s98
    %p102 = pneg %p96
    %p103 = scmp.eq.s32.totalorder %s10, 1
    %p104 = por %p102, %p103
    %p105 = scmp.ne.s32.totalorder %s97, %s100
    %p106 = scmp.eq.s32.totalorder %s10, 0
    %p107 = por %p105, %p106
    %p108 = scmp.ne.s32.totalorder %s97, %s100
    %p109 = scmp.eq.s32.totalorder %s15, 1
    %p110 = por %p108, %p109
    %p111 = scmp.ne.s32.totalorder %s100, %s101
    %p112 = scmp.eq.s32.totalorder %s15, 0
    %p113 = por %p111, %p112
    %p114 = scmp.ne.s32.totalorder %s100, %s101
    %p115 = scmp.eq.s32.totalorder %s16, 1
    %p116 = por %p114, %p115
    %p118 = scmp.ne.s32.totalorder %s101, %s117
    %p119 = scmp.eq.s32.totalorder %s16, 0
    %p120 = por %p118, %p119
    %s121 = ssub.s32 %s17, %s36
    %s122 = ssub.s32 %s19, %s28
    %s123 = sor.u32 %s121, %s122
    %p124 = scmp.eq.s32.totalorder %s123, 0
    %s126 = sadd.s32 %s125, 1
    %s127 = scalar_select %p124, %s125, %s126
    %p130 = pneg %p124
    %p131 = scmp.eq.s32.totalorder %s10, 1
    %p132 = por %p130, %p131
    %p133 = scmp.ne.s32.totalorder %s125, %s128
    %p134 = scmp.eq.s32.totalorder %s10, 0
    %p135 = por %p133, %p134
    %p136 = scmp.ne.s32.totalorder %s125, %s128
    %p137 = scmp.eq.s32.totalorder %s15, 1
    %p138 = por %p136, %p137
    %p139 = scmp.ne.s32.totalorder %s128, %s129
    %p140 = scmp.eq.s32.totalorder %s15, 0
    %p141 = por %p139, %p140
    %p142 = scmp.ne.s32.totalorder %s128, %s129
    %p143 = scmp.eq.s32.totalorder %s16, 1
    %p144 = por %p142, %p143
    %p146 = scmp.ne.s32.totalorder %s129, %s145
    %p147 = scmp.eq.s32.totalorder %s16, 0
    %p148 = por %p146, %p147
    %s149 = ssub.s32 %s17, %s36
    %s150 = ssub.s32 %s18, %s32
    %s151 = sor.u32 %s149, %s150
    %p152 = scmp.eq.s32.totalorder %s151, 0
    %s154 = sadd.s32 %s153, 1
    %s155 = scalar_select %p152, %s153, %s154
    %p158 = pneg %p152
    %p159 = scmp.eq.s32.totalorder %s10, 1
    %p160 = por %p158, %p159
    %p161 = scmp.ne.s32.totalorder %s153, %s156
    %p162 = scmp.eq.s32.totalorder %s10, 0
    %p163 = por %p161, %p162
    %p164 = scmp.ne.s32.totalorder %s153, %s156
    %p165 = scmp.eq.s32.totalorder %s15, 1
    %p166 = por %p164, %p165
    %p167 = scmp.ne.s32.totalorder %s156, %s157
    %p168 = scmp.eq.s32.totalorder %s15, 0
    %p169 = por %p167, %p168
    %p170 = scmp.ne.s32.totalorder %s156, %s157
    %p171 = scmp.eq.s32.totalorder %s16, 1
    %p172 = por %p170, %p171
    %p174 = scmp.ne.s32.totalorder %s157, %s173
    %p175 = scmp.eq.s32.totalorder %s16, 0
    %p176 = por %p174, %p175
    %p177 = scmp.le.s32.totalorder 1, %s10
    %p178 = scmp.lt.s32.totalorder %s10, 3
    %p179 = pnand %p177, %p178
    %p180 = pneg %p179
    // Predicated region
    $region9: #{transformer_forward.34} parent=5 // pred_check
      _
    $region10: #{transformer_forward.34} parent=5 // pred_check_branch
      %182 = sbr.rel (%p179) target = $region12
    $region11: #{transformer_forward.34} parent=5 // pred_region
      %s183 = ssub.s32 %s10, 1
    $region12: #{transformer_forward.34} parent=5 // pred_fallthru
      _
    %p184 = scmp.lt.s32.totalorder %s10, 2
    // Predicated region
    $region13: #{transformer_forward.34} parent=5 // pred_check
      %p185 = pneg %p184
    $region14: #{transformer_forward.34} parent=5 // pred_check_branch
      %187 = sbr.rel (%p185) target = $region16
    $region15: #{transformer_forward.34} parent=5 // pred_region
      // Predicated region
      $region17: #{transformer_forward.34} parent=15 // pred_check
        %p188 = pneg %p51
      $region18: #{transformer_forward.34} parent=15 // pred_check_branch
        %190 = sbr.rel (%p188) target = $region20
      $region19: #{transformer_forward.34} parent=15 // pred_region
        %p191 = scmp.lt.s32.totalorder %s17, 1
        %s192 = scalar_select %p191, %s17, 1
        %p193 = scmp.lt.s32.totalorder %s19, 0
        %s194 = scalar_select %p193, %s19, 0
        %s195 = sadd.s32 %s194, %s192
        %s196 = scalar_lea.vmem %s0, %s195
      $region20: #{transformer_forward.34} parent=15 // pred_fallthru
        _
      // Predicated region
      $region21: #{transformer_forward.34} parent=15 // pred_check
        %p197 = pneg %p79
      $region22: #{transformer_forward.34} parent=15 // pred_check_branch
        %199 = sbr.rel (%p197) target = $region24
      $region23: #{transformer_forward.34} parent=15 // pred_region
        %p200 = scmp.lt.s32.totalorder %s17, 1
        %s201 = scalar_select %p200, %s17, 1
        %p202 = scmp.lt.s32.totalorder %s18, 0
        %s203 = scalar_select %p202, %s18, 0
        %s204 = sadd.s32 %s203, %s201
        %s205 = smul.addr %s204, 4
        %s206 = scalar_lea.vmem %s1, %s205
      $region24: #{transformer_forward.34} parent=15 // pred_fallthru
        _
      // Predicated region
      $region25: #{transformer_forward.34} parent=15 // pred_check
        %p207 = pneg %p107
      $region26: #{transformer_forward.34} parent=15 // pred_check_branch
        %209 = sbr.rel (%p207) target = $region28
      $region27: #{transformer_forward.34} parent=15 // pred_region
        %p210 = scmp.lt.s32.totalorder %s17, 1
        %s211 = scalar_select %p210, %s17, 1
        %p212 = scmp.lt.s32.totalorder %s19, 0
        %s213 = scalar_select %p212, %s19, 0
        %s214 = sadd.s32 %s213, %s211
        %s215 = smul.addr %s214, 4
        %s216 = scalar_lea.vmem %s2, %s215
      $region28: #{transformer_forward.34} parent=15 // pred_fallthru
        _
      // Predicated region
      $region29: #{transformer_forward.34} parent=15 // pred_check
        %p217 = pneg %p135
      $region30: #{transformer_forward.34} parent=15 // pred_check_branch
        %219 = sbr.rel (%p217) target = $region32
      $region31: #{transformer_forward.34} parent=15 // pred_region
        %p220 = scmp.lt.s32.totalorder %s17, 1
        %s221 = scalar_select %p220, %s17, 1
        %p222 = scmp.lt.s32.totalorder %s19, 0
        %s223 = scalar_select %p222, %s19, 0
        %s224 = sadd.s32 %s223, %s221
        %s225 = smul.addr %s224, 4
        %s226 = scalar_lea.vmem %s3, %s225
      $region32: #{transformer_forward.34} parent=15 // pred_fallthru
        _
    $region16: #{transformer_forward.34} parent=5 // pred_fallthru
      _
    %p227 = scmp.le.s32.totalorder 1, %s10
    %p228 = scmp.lt.s32.totalorder %s10, 3
    %p229 = pnand %p227, %p228
    %p230 = pneg %p229
    // Predicated region
    $region33: #{transformer_forward.34} parent=5 // pred_check
      _
    $region34: #{transformer_forward.34} parent=5 // pred_check_branch
      %232 = sbr.rel (%p229) target = $region36
    $region35: #{transformer_forward.34} parent=5 // pred_region
      %s233 = ssub.s32 %s10, 1
      %p234 = scmp.lt.s32.totalorder %s20, 1
      %s235 = scalar_select %p234, %s20, 1
      %p236 = scmp.lt.s32.totalorder %s22, 0
      %s237 = scalar_select %p236, %s22, 0
      %s238 = sadd.s32 %s237, %s235
      %s239 = scalar_lea.vmem %s0, %s238
      %p240 = pneg %p57
      %p241 = pneg %p54
      %p242 = scmp.lt.s32.totalorder %s20, 1
      %s243 = scalar_select %p242, %s20, 1
      %p244 = scmp.lt.s32.totalorder %s21, 0
      %s245 = scalar_select %p244, %s21, 0
      %s246 = sadd.s32 %s245, %s243
      %s247 = smul.addr %s246, 4
      %s248 = scalar_lea.vmem %s1, %s247
      %p249 = pneg %p85
      %p250 = pneg %p82
      %p251 = scmp.lt.s32.totalorder %s20, 1
      %s252 = scalar_select %p251, %s20, 1
      %p253 = scmp.lt.s32.totalorder %s22, 0
      %s254 = scalar_select %p253, %s22, 0
      %s255 = sadd.s32 %s254, %s252
      %s256 = smul.addr %s255, 4
      %s257 = scalar_lea.vmem %s2, %s256
      %p258 = pneg %p113
      %p259 = pneg %p110
      %p260 = scmp.lt.s32.totalorder %s20, 1
      %s261 = scalar_select %p260, %s20, 1
      %p262 = scmp.lt.s32.totalorder %s22, 0
      %s263 = scalar_select %p262, %s22, 0
      %s264 = sadd.s32 %s263, %s261
      %s265 = smul.addr %s264, 4
      %s266 = scalar_lea.vmem %s3, %s265
      %p267 = pneg %p141
      %p268 = pneg %p138
      %p269 = pneg %p169
      %p270 = pneg %p166
      %p271 = scmp.lt.s32.totalorder %s20, 1
      %s272 = scalar_select %p271, %s20, 1
      %p273 = scmp.lt.s32.totalorder %s21, 0
      %s274 = scalar_select %p273, %s21, 0
      %s275 = sadd.s32 %s274, %s272
      %s276 = smul.addr %s275, 4
      %s277 = scalar_lea.vmem %s4, %s276
      %p278 = scmp.lt.s32.totalorder %s20, 1
      %s279 = scalar_select %p278, %s20, 1
      %p280 = scmp.lt.s32.totalorder %s22, 0
      %s281 = scalar_select %p280, %s22, 0
      %s282 = sadd.s32 %s281, %s279
      %s283 = scalar_lea.vmem %s0, %s282
      %p284 = scmp.lt.s32.totalorder %s20, 1
      %s285 = scalar_select %p284, %s20, 1
      %p286 = scmp.lt.s32.totalorder %s21, 0
      %s287 = scalar_select %p286, %s21, 0
      %s288 = sadd.s32 %s287, %s285
      %s289 = smul.addr %s288, 4
      %s290 = scalar_lea.vmem %s1, %s289
      %p291 = scmp.lt.s32.totalorder %s20, 1
      %s292 = scalar_select %p291, %s20, 1
      %p293 = scmp.lt.s32.totalorder %s22, 0
      %s294 = scalar_select %p293, %s22, 0
      %s295 = sadd.s32 %s294, %s292
      %s296 = smul.addr %s295, 4
      %s297 = scalar_lea.vmem %s2, %s296
      %p298 = scmp.lt.s32.totalorder %s20, 1
      %s299 = scalar_select %p298, %s20, 1
      %p300 = scmp.lt.s32.totalorder %s22, 0
      %s301 = scalar_select %p300, %s22, 0
      %s302 = sadd.s32 %s301, %s299
      %s303 = smul.addr %s302, 4
      %s304 = scalar_lea.vmem %s3, %s303
      %p305 = scmp.lt.s32.totalorder %s20, 1
      %s306 = scalar_select %p305, %s20, 1
      %p307 = scmp.lt.s32.totalorder %s21, 0
      %s308 = scalar_select %p307, %s21, 0
      %s309 = sadd.s32 %s308, %s306
      %s310 = smul.addr %s309, 4
      %s311 = scalar_lea.vmem %s4, %s310
      %p313 = scmp.eq.s32.totalorder %s22, 0
      // Predicated region
      $region37: #{transformer_forward.34} parent=35 // pred_check
        %p314 = pneg %p313
      $region38: #{transformer_forward.34} parent=35 // pred_check_branch
        %316 = sbr.rel (%p314) target = $region40
      $region39: #{transformer_forward.34} parent=35 // pred_region
        %vm317 = vcmask 7168
        %318 = vst.msk [vmem:[#allocation2] sm:$0xff] %vm317, -inf
        %319 = vst.msk [vmem:[#allocation2 + $0x8] sm:$0xff] %vm317, -inf
        %320 = vst.msk [vmem:[#allocation2 + $0x10] sm:$0xff] %vm317, -inf
        %321 = vst.msk [vmem:[#allocation2 + $0x18] sm:$0xff] %vm317, -inf
        %322 = vst.msk [vmem:[#allocation3] sm:$0xff] %vm317, 0.0
        %323 = vst.msk [vmem:[#allocation3 + $0x8] sm:$0xff] %vm317, 0.0
        %324 = vst.msk [vmem:[#allocation3 + $0x10] sm:$0xff] %vm317, 0.0
        %325 = vst.msk [vmem:[#allocation3 + $0x18] sm:$0xff] %vm317, 0.0
        %vm326 = vcmask 64512
        %327 = vst.msk [vmem:[#allocation4] sm:$0xff] %vm326, 0.0
        %328 = vst.msk [vmem:[#allocation4 + $0x8] sm:$0xff] %vm326, 0.0
        %329 = vst.msk [vmem:[#allocation4 + $0x10] sm:$0xff] %vm326, 0.0
        %330 = vst.msk [vmem:[#allocation4 + $0x18] sm:$0xff] %vm326, 0.0
      $region40: #{transformer_forward.34} parent=35 // pred_fallthru
        _
      %v331 = vld [vmem:[%s290] sm:$0xf]
      %v332 = vld [vmem:[%s297] sm:$0xf]
      %v333 = vld [vmem:[%s304] sm:$0xf]
      %v334 = vld [vmem:[%s283] sm:$0x1]
      %v335 = vlaneseq
      %v336 = vshrl.u32 %v335, 7
      %s337 = smul.u32 %s21, 8
      %v338 = vstv %s337
      %v339 = vadd.s32 %v336, %v338
      %v340 = vlaneseq
      %v341 = vand.u32 %v340, 127
      %s342 = smul.u32 %s22, 8
      %v343 = vstv %s342
      %v344 = vadd.s32 %v341, %v343
      %vm345 = vcmp.gt.s32.totalorder %v344, %v339
      %v346 = vsel %vm345, -1e+09, 0.0
      %v348 = vperm.slane %v334, 0
      %v350 = vadd.f32 %v348, %v346
      %vm351 = vcmask 64512
      %v353 = vsel %vm351, %v331, 0
      %v356 = vsel %vm351, %v332, 0
      %358 = vmatpush.bf16.xpose.msra.mxu0 0
      %359 = vmatpush.bf16.xpose.msra.mxu0 0
      %360 = vmatpush.bf16.xpose.msra.mxu0 0
      %361 = vmatpush.bf16.xpose.msra.mxu0 0
      %362 = vmatpush.bf16.xpose.msra.mxu0 0
      %363 = vmatpush.bf16.xpose.msra.mxu0 0
      %364 = vmatpush.bf16.xpose.msra.mxu0 0
      %365 = vmatpush.bf16.xpose.msra.mxu0 %v356
      %366 = vmatmul.bf16.gmra.mxu0 %v353
      %v367 = vpop.f32.mrf.mxu0
      %v368 = vadd.f32 %v350, %v367
      %v369 = vpop.f32.mrf.mxu0
      %370 = vdwg.mxu0
      %v371 = vld [vmem:[#allocation2] sm:$0xff]
      %v372 = vsel %vm351, %v368, -inf
      %373 = vmax.xlane.f32.xlu0 %v372
      %v374 = vpop.xlane.xlu0 %373
      %v375 = vmax.f32 %v371, %v374
      %v376 = vsub.f32 %v371, %v375
      %v377 = vmul.f32 %v376, 1.442695
      %v378 = vpow.pop %v377
      %380 = vset.pattern.permute.xlu0 0
      %381 = vperm.xlu0 %380, %v375
      %v382 = vpop.permute.xlu0 %381
      %v384 = vsub.f32 %v368, %v382
      %v385 = vmul.f32 %v384, 1.442695
      %v386 = vpow.pop %v385
      %v387 = vld [vmem:[#allocation3] sm:$0xff]
      %v388 = vmul.f32 %v378, %v387
      %v389 = vsel %vm351, %v386, 0.0
      %390 = vadd.xlane.f32.xlu0 %v389
      %v391 = vpop.xlane.xlu0 %390
      %v392 = vadd.f32 %v388, %v391
      %vm393 = vcmask 7168
      %394 = vst.msk [vmem:[#allocation3] sm:$0xff] %vm393, %v392
      %v395 = vld [vmem:[#allocation4] sm:$0xff]
      %397 = vset.pattern.permute.xlu0 0
      %398 = vperm.xlu0 %397, %v378
      %v399 = vpop.permute.xlu0 %398
      %v401 = vmul.f32 %v399, %v395
      %v402 = vpack.c.bf16 %v386, %v386
      %v404 = vsel %vm351, %v402, 0
      %vm406 = vcmask 1043456
      %v408 = vsel %vm406, %v333, 0
      %410 = vmatpush.bf16.msra.mxu0 0
      %411 = vmatpush.bf16.msra.mxu0 0
      %412 = vmatpush.bf16.msra.mxu0 0
      %413 = vmatpush.bf16.msra.mxu0 0
      %414 = vmatpush.bf16.msra.mxu0 0
      %415 = vmatpush.bf16.msra.mxu0 0
      %416 = vmatpush.bf16.msra.mxu0 0
      %417 = vmatpush.bf16.msra.mxu0 %v408
      %418 = vmatmul.bf16.gmra.mxu0 %v404
      %v419 = vpop.f32.mrf.mxu0
      %v420 = vadd.f32 0.0, %v419
      %v421 = vpop.f32.mrf.mxu0
      %422 = vdwg.mxu0
      %v423 = vadd.f32 %v401, %v420
      %424 = vst.msk [vmem:[#allocation4] sm:$0xff] %vm351, %v423
      %425 = vst.msk [vmem:[#allocation2] sm:$0xff] %vm393, %v375
      %v427 = vunpack.c.l.b16 %v331
      %v428 = vpack.c.b16 %v427, %v427
      %429 = vrot.lane.b32.xlu0 %v428, 120
      %v430 = vpop.permute.xlu0 %429
      %v432 = vunpack.c.l.b16 %v332
      %v433 = vpack.c.b16 %v432, %v432
      %434 = vrot.lane.b32.xlu0 %v433, 120
      %v435 = vpop.permute.xlu0 %434
      %v437 = vsel %vm351, %v430, 0
      %v440 = vsel %vm351, %v435, 0
      %442 = vmatpush.bf16.xpose.msra.mxu0 0
      %443 = vmatpush.bf16.xpose.msra.mxu0 0
      %444 = vmatpush.bf16.xpose.msra.mxu0 0
      %445 = vmatpush.bf16.xpose.msra.mxu0 0
      %446 = vmatpush.bf16.xpose.msra.mxu0 0
      %447 = vmatpush.bf16.xpose.msra.mxu0 0
      %448 = vmatpush.bf16.xpose.msra.mxu0 0
      %449 = vmatpush.bf16.xpose.msra.mxu0 %v440
      %450 = vmatmul.bf16.gmra.mxu0 %v437
      %v451 = vpop.f32.mrf.mxu0
      %v452 = vadd.f32 %v350, %v451
      %v453 = vpop.f32.mrf.mxu0
      %454 = vdwg.mxu0
      %s455 = scalar_lea.vmem [#allocation2], 8
      %v456 = vld [vmem:[%s455] sm:$0xff]
      %v457 = vsel %vm351, %v452, -inf
      %458 = vmax.xlane.f32.xlu0 %v457
      %v459 = vpop.xlane.xlu0 %458
      %v460 = vmax.f32 %v456, %v459
      %v461 = vsub.f32 %v456, %v460
      %v462 = vmul.f32 %v461, 1.442695
      %v463 = vpow.pop %v462
      %465 = vset.pattern.permute.xlu0 0
      %466 = vperm.xlu0 %465, %v460
      %v467 = vpop.permute.xlu0 %466
      %v469 = vsub.f32 %v452, %v467
      %v470 = vmul.f32 %v469, 1.442695
      %v471 = vpow.pop %v470
      %s472 = scalar_lea.vmem [#allocation3], 8
      %v473 = vld [vmem:[%s472] sm:$0xff]
      %v474 = vmul.f32 %v463, %v473
      %v475 = vsel %vm351, %v471, 0.0
      %476 = vadd.xlane.f32.xlu0 %v475
      %v477 = vpop.xlane.xlu0 %476
      %v478 = vadd.f32 %v474, %v477
      %479 = vst.msk [vmem:[%s472] sm:$0xff] %vm393, %v478
      %s480 = scalar_lea.vmem [#allocation4], 8
      %v481 = vld [vmem:[%s480] sm:$0xff]
      %483 = vset.pattern.permute.xlu0 0
      %484 = vperm.xlu0 %483, %v463
      %v485 = vpop.permute.xlu0 %484
      %v487 = vmul.f32 %v485, %v481
      %v488 = vpack.c.bf16 %v471, %v471
      %v490 = vunpack.c.l.b16 %v333
      %v491 = vpack.c.b16 %v490, %v490
      %492 = vrot.lane.b32.xlu0 %v491, 120
      %v493 = vpop.permute.xlu0 %492
      %v495 = vsel %vm351, %v488, 0
      %v498 = vsel %vm406, %v493, 0
      %500 = vmatpush.bf16.msra.mxu0 0
      %501 = vmatpush.bf16.msra.mxu0 0
      %502 = vmatpush.bf16.msra.mxu0 0
      %503 = vmatpush.bf16.msra.mxu0 0
      %504 = vmatpush.bf16.msra.mxu0 0
      %505 = vmatpush.bf16.msra.mxu0 0
      %506 = vmatpush.bf16.msra.mxu0 0
      %507 = vmatpush.bf16.msra.mxu0 %v498
      %508 = vmatmul.bf16.gmra.mxu0 %v495
      %v509 = vpop.f32.mrf.mxu0
      %v510 = vadd.f32 0.0, %v509
      %v511 = vpop.f32.mrf.mxu0
      %512 = vdwg.mxu0
      %v513 = vadd.f32 %v487, %v510
      %514 = vst.msk [vmem:[%s480] sm:$0xff] %vm351, %v513
      %515 = vst.msk [vmem:[%s455] sm:$0xff] %vm393, %v460
      %516 = vrot.lane.b32.xlu0 %v428, 112
      %v517 = vpop.permute.xlu0 %516
      %518 = vrot.lane.b32.xlu0 %v433, 112
      %v519 = vpop.permute.xlu0 %518
      %v521 = vsel %vm351, %v517, 0
      %v524 = vsel %vm351, %v519, 0
      %526 = vmatpush.bf16.xpose.msra.mxu0 0
      %527 = vmatpush.bf16.xpose.msra.mxu0 0
      %528 = vmatpush.bf16.xpose.msra.mxu0 0
      %529 = vmatpush.bf16.xpose.msra.mxu0 0
      %530 = vmatpush.bf16.xpose.msra.mxu0 0
      %531 = vmatpush.bf16.xpose.msra.mxu0 0
      %532 = vmatpush.bf16.xpose.msra.mxu0 0
      %533 = vmatpush.bf16.xpose.msra.mxu0 %v524
      %534 = vmatmul.bf16.gmra.mxu0 %v521
      %v535 = vpop.f32.mrf.mxu0
      %v536 = vadd.f32 %v350, %v535
      %v537 = vpop.f32.mrf.mxu0
      %538 = vdwg.mxu0
      %s539 = scalar_lea.vmem [#allocation2], 16
      %v540 = vld [vmem:[%s539] sm:$0xff]
      %v541 = vsel %vm351, %v536, -inf
      %542 = vmax.xlane.f32.xlu0 %v541
      %v543 = vpop.xlane.xlu0 %542
      %v544 = vmax.f32 %v540, %v543
      %v545 = vsub.f32 %v540, %v544
      %v546 = vmul.f32 %v545, 1.442695
      %v547 = vpow.pop %v546
      %549 = vset.pattern.permute.xlu0 0
      %550 = vperm.xlu0 %549, %v544
      %v551 = vpop.permute.xlu0 %550
      %v553 = vsub.f32 %v536, %v551
      %v554 = vmul.f32 %v553, 1.442695
      %v555 = vpow.pop %v554
      %s556 = scalar_lea.vmem [#allocation3], 16
      %v557 = vld [vmem:[%s556] sm:$0xff]
      %v558 = vmul.f32 %v547, %v557
      %v559 = vsel %vm351, %v555, 0.0
      %560 = vadd.xlane.f32.xlu0 %v559
      %v561 = vpop.xlane.xlu0 %560
      %v562 = vadd.f32 %v558, %v561
      %563 = vst.msk [vmem:[%s556] sm:$0xff] %vm393, %v562
      %s564 = scalar_lea.vmem [#allocation4], 16
      %v565 = vld [vmem:[%s564] sm:$0xff]
      %567 = vset.pattern.permute.xlu0 0
      %568 = vperm.xlu0 %567, %v547
      %v569 = vpop.permute.xlu0 %568
      %v571 = vmul.f32 %v569, %v565
      %v572 = vpack.c.bf16 %v555, %v555
      %573 = vrot.lane.b32.xlu0 %v491, 112
      %v574 = vpop.permute.xlu0 %573
      %v576 = vsel %vm351, %v572, 0
      %v579 = vsel %vm406, %v574, 0
      %581 = vmatpush.bf16.msra.mxu0 0
      %582 = vmatpush.bf16.msra.mxu0 0
      %583 = vmatpush.bf16.msra.mxu0 0
      %584 = vmatpush.bf16.msra.mxu0 0
      %585 = vmatpush.bf16.msra.mxu0 0
      %586 = vmatpush.bf16.msra.mxu0 0
      %587 = vmatpush.bf16.msra.mxu0 0
      %588 = vmatpush.bf16.msra.mxu0 %v579
      %589 = vmatmul.bf16.gmra.mxu0 %v576
      %v590 = vpop.f32.mrf.mxu0
      %v591 = vadd.f32 0.0, %v590
      %v592 = vpop.f32.mrf.mxu0
      %593 = vdwg.mxu0
      %v594 = vadd.f32 %v571, %v591
      %595 = vst.msk [vmem:[%s564] sm:$0xff] %vm351, %v594
      %596 = vst.msk [vmem:[%s539] sm:$0xff] %vm393, %v544
      %597 = vrot.lane.b32.xlu0 %v428, 104
      %v598 = vpop.permute.xlu0 %597
      %599 = vrot.lane.b32.xlu0 %v433, 104
      %v600 = vpop.permute.xlu0 %599
      %v602 = vsel %vm351, %v598, 0
      %v605 = vsel %vm351, %v600, 0
      %607 = vmatpush.bf16.xpose.msra.mxu0 0
      %608 = vmatpush.bf16.xpose.msra.mxu0 0
      %609 = vmatpush.bf16.xpose.msra.mxu0 0
      %610 = vmatpush.bf16.xpose.msra.mxu0 0
      %611 = vmatpush.bf16.xpose.msra.mxu0 0
      %612 = vmatpush.bf16.xpose.msra.mxu0 0
      %613 = vmatpush.bf16.xpose.msra.mxu0 0
      %614 = vmatpush.bf16.xpose.msra.mxu0 %v605
      %615 = vmatmul.bf16.gmra.mxu0 %v602
      %v616 = vpop.f32.mrf.mxu0
      %v617 = vadd.f32 %v350, %v616
      %v618 = vpop.f32.mrf.mxu0
      %619 = vdwg.mxu0
      %s620 = scalar_lea.vmem [#allocation2], 24
      %v621 = vld [vmem:[%s620] sm:$0xff]
      %v622 = vsel %vm351, %v617, -inf
      %623 = vmax.xlane.f32.xlu0 %v622
      %v624 = vpop.xlane.xlu0 %623
      %v625 = vmax.f32 %v621, %v624
      %v626 = vsub.f32 %v621, %v625
      %v627 = vmul.f32 %v626, 1.442695
      %v628 = vpow.pop %v627
      %630 = vset.pattern.permute.xlu0 0
      %631 = vperm.xlu0 %630, %v625
      %v632 = vpop.permute.xlu0 %631
      %v634 = vsub.f32 %v617, %v632
      %v635 = vmul.f32 %v634, 1.442695
      %v636 = vpow.pop %v635
      %s637 = scalar_lea.vmem [#allocation3], 24
      %v638 = vld [vmem:[%s637] sm:$0xff]
      %v639 = vmul.f32 %v628, %v638
      %v640 = vsel %vm351, %v636, 0.0
      %641 = vadd.xlane.f32.xlu0 %v640
      %v642 = vpop.xlane.xlu0 %641
      %v643 = vadd.f32 %v639, %v642
      %644 = vst.msk [vmem:[%s637] sm:$0xff] %vm393, %v643
      %s645 = scalar_lea.vmem [#allocation4], 24
      %v646 = vld [vmem:[%s645] sm:$0xff]
      %648 = vset.pattern.permute.xlu0 0
      %649 = vperm.xlu0 %648, %v628
      %v650 = vpop.permute.xlu0 %649
      %v652 = vmul.f32 %v650, %v646
      %v653 = vpack.c.bf16 %v636, %v636
      %654 = vrot.lane.b32.xlu0 %v491, 104
      %v655 = vpop.permute.xlu0 %654
      %v657 = vsel %vm351, %v653, 0
      %v660 = vsel %vm406, %v655, 0
      %662 = vmatpush.bf16.msra.mxu0 0
      %663 = vmatpush.bf16.msra.mxu0 0
      %664 = vmatpush.bf16.msra.mxu0 0
      %665 = vmatpush.bf16.msra.mxu0 0
      %666 = vmatpush.bf16.msra.mxu0 0
      %667 = vmatpush.bf16.msra.mxu0 0
      %668 = vmatpush.bf16.msra.mxu0 0
      %669 = vmatpush.bf16.msra.mxu0 %v660
      %670 = vmatmul.bf16.gmra.mxu0 %v657
      %v671 = vpop.f32.mrf.mxu0
      %v672 = vadd.f32 0.0, %v671
      %v673 = vpop.f32.mrf.mxu0
      %674 = vdwg.mxu0
      %v675 = vadd.f32 %v652, %v672
      %676 = vst.msk [vmem:[%s645] sm:$0xff] %vm351, %v675
      %677 = vst.msk [vmem:[%s620] sm:$0xff] %vm393, %v625
      // Predicated region
      $region41: #{transformer_forward.34} parent=35 // pred_check
        %p678 = pneg %p313
      $region42: #{transformer_forward.34} parent=35 // pred_check_branch
        %680 = sbr.rel (%p678) target = $region44
      $region43: #{transformer_forward.34} parent=35 // pred_region
        %v681 = vld [vmem:[#allocation4] sm:$0xff]
        %v682 = vld [vmem:[#allocation3] sm:$0xff]
        %v683 = vrcp.pop %v682
        %685 = vset.pattern.permute.xlu0 0
        %686 = vperm.xlu0 %685, %v683
        %v687 = vpop.permute.xlu0 %686
        %v689 = vmul.f32 %v681, %v687
        %v690 = vpack.c.bf16 %v689, %v689
        %vm691 = vcmask 60416
        %692 = vst.msk [vmem:[%s311] sm:$0xf] %vm691, %v690
        %v693 = vld [vmem:[%s480] sm:$0xff]
        %v694 = vld [vmem:[%s472] sm:$0xff]
        %v695 = vrcp.pop %v694
        %697 = vset.pattern.permute.xlu0 0
        %698 = vperm.xlu0 %697, %v695
        %v699 = vpop.permute.xlu0 %698
        %v701 = vmul.f32 %v693, %v699
        %v702 = vpack.c.bf16 %v701, %v701
        %704 = vrot.lane.b32.xlu0 %v702, 8
        %v705 = vpop.permute.xlu0 %704
        %vm707 = vcmask 126016
        %708 = vst.msk [vmem:[%s311] sm:$0xf] %vm707, %v705
        %v709 = vld [vmem:[%s564] sm:$0xff]
        %v710 = vld [vmem:[%s556] sm:$0xff]
        %v711 = vrcp.pop %v710
        %713 = vset.pattern.permute.xlu0 0
        %714 = vperm.xlu0 %713, %v711
        %v715 = vpop.permute.xlu0 %714
        %v717 = vmul.f32 %v709, %v715
        %v718 = vpack.c.bf16 %v717, %v717
        %720 = vrot.lane.b32.xlu0 %v718, 16
        %v721 = vpop.permute.xlu0 %720
        %vm723 = vcmask 191616
        %724 = vst.msk [vmem:[%s311] sm:$0xf] %vm723, %v721
        %v725 = vld [vmem:[%s645] sm:$0xff]
        %v726 = vld [vmem:[%s637] sm:$0xff]
        %v727 = vrcp.pop %v726
        %729 = vset.pattern.permute.xlu0 0
        %730 = vperm.xlu0 %729, %v727
        %v731 = vpop.permute.xlu0 %730
        %v733 = vmul.f32 %v725, %v731
        %v734 = vpack.c.bf16 %v733, %v733
        %736 = vrot.lane.b32.xlu0 %v734, 24
        %v737 = vpop.permute.xlu0 %736
        %vm739 = vcmask 257216
        %740 = vst.msk [vmem:[%s311] sm:$0xf] %vm739, %v737
      $region44: #{transformer_forward.34} parent=35 // pred_fallthru
        _
      %p741 = scmp.lt.s32.totalorder %s20, 1
      %s742 = scalar_select %p741, %s20, 1
      %p743 = scmp.lt.s32.totalorder %s21, 0
      %s744 = scalar_select %p743, %s21, 0
      %s745 = sadd.s32 %s744, %s742
      %s746 = smul.addr %s745, 4
      %s747 = scalar_lea.vmem %s4, %s746
      // Predicated region
      $region45: #{transformer_forward.34} parent=35 // pred_check
        %p748 = pneg %p166
      $region46: #{transformer_forward.34} parent=35 // pred_check_branch
        %750 = sbr.rel (%p748) target = $region48
      $region47: #{transformer_forward.34} parent=35 // pred_region
        _
      $region48: #{transformer_forward.34} parent=35 // pred_fallthru
        _
    $region36: #{transformer_forward.34} parent=5 // pred_fallthru
      _
    %p751 = scmp.le.s32.totalorder 2, %s10
    // Predicated region
    $region49: #{transformer_forward.34} parent=5 // pred_check
      %p752 = pneg %p751
    $region50: #{transformer_forward.34} parent=5 // pred_check_branch
      %754 = sbr.rel (%p752) target = $region52
    $region51: #{transformer_forward.34} parent=5 // pred_region
      %s755 = ssub.s32 %s10, 2
      // Predicated region
      $region53: #{transformer_forward.34} parent=51 // pred_check
        %p756 = pneg %p172
      $region54: #{transformer_forward.34} parent=51 // pred_check_branch
        %758 = sbr.rel (%p756) target = $region56
      $region55: #{transformer_forward.34} parent=51 // pred_region
        %p759 = scmp.lt.s32.totalorder %s23, 1
        %s760 = scalar_select %p759, %s23, 1
        %p761 = scmp.lt.s32.totalorder %s24, 0
        %s762 = scalar_select %p761, %s24, 0
        %s763 = sadd.s32 %s762, %s760
        %s764 = smul.addr %s763, 4
        %s765 = scalar_lea.vmem %s4, %s764
      $region56: #{transformer_forward.34} parent=51 // pred_fallthru
        _
    $region52: #{transformer_forward.34} parent=5 // pred_fallthru
      _
  $region6: #{transformer_forward.34} parent=0 // loop_footer
    %s14 = sadd.s32 1, %s10
  $region7: #{transformer_forward.34} parent=0 // loop_footer_branch
    %9 = sbr.rel target = $region3
  $region8: #{transformer_forward.34} parent=0 // loop_exit
    _

// kernel: transformer_forward.40
$region0: #{transformer_forward.40}
  #allocation0 [shape = 'u32[]', space=smem, size = 0x4, offset = 0x4, fixed_abs, tag = 'smem constant byte address 0x4 - core index']
  #allocation1 [shape = 'u32[72,128]{1,0:T(1,128)}', space=vmem, size = 0x9000, scoped, tag = 'internal scratch']
  %s0 = inlined_call_operand.vmem [shape: f32[16,32], index: 0, kind: input, shape index: {}]
  %s1 = inlined_call_operand.vmem [shape: f32[1,32], index: 1, kind: input, shape index: {}]
  %s2 = inlined_call_operand.hbm [shape: f32[1,32], index: 2, kind: input, shape index: {}]
  %s3 = inlined_call_operand.vmem [shape: bf16[32,64], index: 3, kind: input, shape index: {}]
  %s4 = inlined_call_operand.hbm [shape: f32[1,64], index: 4, kind: input, shape index: {}]
  %s5 = inlined_call_operand.vmem [shape: bf16[64,32], index: 5, kind: input, shape index: {}]
  %s6 = inlined_call_operand.hbm [shape: f32[1,32], index: 6, kind: input, shape index: {}]
  %s7 = inlined_call_operand.vmem [shape: f32[16,32], index: 7, kind: output, shape index: {}]
  %s8 = sld [smem:[#allocation0]]
  $region50: #{transformer_forward.40} parent=0
    _
  %s10 = ssub.s32 1, %s8
  %s11 = scalar_select 0, %s10, %s8
  $region1: #{transformer_forward.40} parent=0
    #allocation2 [shape = 'u8[512]{0}', space=vmem, size = 0x400, scoped, tag = 'input window, operand 2, single buffered']
    #allocation3 [shape = 's32[1]{0}', space=sflag, size = 0x4, scoped, tag = 'scoped memory for transformer_forward.40']
    #allocation4 [shape = 'u8[512]{0}', space=vmem, size = 0x400, scoped, tag = 'input window, operand 4, single buffered']
    #allocation5 [shape = 's32[1]{0}', space=sflag, size = 0x4, scoped, tag = 'scoped memory for transformer_forward.40']
    #allocation6 [shape = 'u8[512]{0}', space=vmem, size = 0x400, scoped, tag = 'input window, operand 6, single buffered']
    %12 = vsyncpa [#allocation3], 0
    %13 = vsyncpa [#allocation5], 0
    // Predicated region
    $region2: #{transformer_forward.40} parent=1 // pred_check
      _
    $region3: #{transformer_forward.40} parent=1 // pred_check_branch
      %15 = sbr.rel (0) target = $region5
    $region4: #{transformer_forward.40} parent=1 // pred_region
      _
    $region5: #{transformer_forward.40} parent=1 // pred_fallthru
      _
    // Predicated region
    $region6: #{transformer_forward.40} parent=1 // pred_check
      _
    $region7: #{transformer_forward.40} parent=1 // pred_check_branch
      %17 = sbr.rel (0) target = $region9
    $region8: #{transformer_forward.40} parent=1 // pred_region
      _
    $region9: #{transformer_forward.40} parent=1 // pred_fallthru
      _
    // Predicated region
    $region10: #{transformer_forward.40} parent=1 // pred_check
      _
    $region11: #{transformer_forward.40} parent=1 // pred_check_branch
      %19 = sbr.rel (0) target = $region13
    $region12: #{transformer_forward.40} parent=1 // pred_region
      %21 = vsyncadd [#allocation3], 0
      %s23 = sshll.u32 %s2, 4
      %s24 = int_to_ptr.hbm [resolvable:$true] %s23
      %s25 = sshll.u32 [#allocation2], 4
      %s26 = int_to_ptr.vmem [resolvable:$true] %s25
      %28 = dma.hbm_to_vmem [thread:$0]  %s24, 16, %s26, [#allocation3]
    $region13: #{transformer_forward.40} parent=1 // pred_fallthru
      _
    // Predicated region
    $region14: #{transformer_forward.40} parent=1 // pred_check
      _
    $region15: #{transformer_forward.40} parent=1 // pred_check_branch
      %30 = sbr.rel (0) target = $region17
    $region16: #{transformer_forward.40} parent=1 // pred_region
      _
    $region17: #{transformer_forward.40} parent=1 // pred_fallthru
      _
    // Predicated region
    $region18: #{transformer_forward.40} parent=1 // pred_check
      _
    $region19: #{transformer_forward.40} parent=1 // pred_check_branch
      %32 = sbr.rel (0) target = $region21
    $region20: #{transformer_forward.40} parent=1 // pred_region
      %34 = vsyncadd [#allocation5], 0
      %s36 = sshll.u32 %s4, 4
      %s37 = int_to_ptr.hbm [resolvable:$true] %s36
      %s38 = sshll.u32 [#allocation4], 4
      %s39 = int_to_ptr.vmem [resolvable:$true] %s38
      %41 = dma.hbm_to_vmem [thread:$0]  %s37, 16, %s39, [#allocation5]
    $region21: #{transformer_forward.40} parent=1 // pred_fallthru
      _
    // Predicated region
    $region22: #{transformer_forward.40} parent=1 // pred_check
      _
    $region23: #{transformer_forward.40} parent=1 // pred_check_branch
      %43 = sbr.rel (0) target = $region25
    $region24: #{transformer_forward.40} parent=1 // pred_region
      _
    $region25: #{transformer_forward.40} parent=1 // pred_fallthru
      _
    // Predicated region
    $region26: #{transformer_forward.40} parent=1 // pred_check
      _
    $region27: #{transformer_forward.40} parent=1 // pred_check_branch
      %45 = sbr.rel (0) target = $region29
    $region28: #{transformer_forward.40} parent=1 // pred_region
      %47 = vsyncadd [#allocation5], 0
      %s49 = sshll.u32 %s6, 4
      %s50 = int_to_ptr.hbm [resolvable:$true] %s49
      %s51 = sshll.u32 [#allocation6], 4
      %s52 = int_to_ptr.vmem [resolvable:$true] %s51
      %54 = dma.hbm_to_vmem [thread:$0]  %s50, 16, %s52, [#allocation5]
    $region29: #{transformer_forward.40} parent=1 // pred_fallthru
      _
    // Predicated region
    $region30: #{transformer_forward.40} parent=1 // pred_check
      _
    $region31: #{transformer_forward.40} parent=1 // pred_check_branch
      %56 = sbr.rel (0) target = $region33
    $region32: #{transformer_forward.40} parent=1 // pred_region
      %58 = dma.done [#allocation3], 16
    $region33: #{transformer_forward.40} parent=1 // pred_fallthru
      _
    // Predicated region
    $region34: #{transformer_forward.40} parent=1 // pred_check
      _
    $region35: #{transformer_forward.40} parent=1 // pred_check_branch
      %60 = sbr.rel (0) target = $region37
    $region36: #{transformer_forward.40} parent=1 // pred_region
      %62 = dma.done [#allocation5], 16
    $region37: #{transformer_forward.40} parent=1 // pred_fallthru
      _
    // Predicated region
    $region38: #{transformer_forward.40} parent=1 // pred_check
      _
    $region39: #{transformer_forward.40} parent=1 // pred_check_branch
      %64 = sbr.rel (0) target = $region41
    $region40: #{transformer_forward.40} parent=1 // pred_region
      %66 = dma.done [#allocation5], 16
    $region41: #{transformer_forward.40} parent=1 // pred_fallthru
      _
    %v68 = vld [vmem:[%s0] sm:$0xff]
    %v69 = vld [vmem:[%s0 + $0x8] sm:$0xff]
    %vm70 = vcmask 261120
    %v71 = vsel %vm70, %v68, 0.0
    %72 = vadd.xlane.f32.xlu0 %v71
    %v73 = vpop.xlane.xlu0 %72
    %v74 = vsel %vm70, %v69, 0.0
    %75 = vadd.xlane.f32.xlu0 %v74
    %v76 = vpop.xlane.xlu0 %75
    %v77 = vrcp.pop 32.0
    %v78 = vmul.f32 32.0, %v77
    %v79 = vsub.f32 1.0, %v78
    %v80 = vmul.f32 %v77, %v79
    %v81 = vadd.f32 %v77, %v80
    %vm82 = vweird.f32 %v77
    %v83 = vsel %vm82, %v77, %v81
    %v84 = vmul.f32 %v73, %v83
    %v85 = vmul.f32 %v76, %v83
    %v86 = vsub.f32 %v68, %v84
    %v87 = vsub.f32 %v69, %v85
    %v88 = vmul.f32 %v86, %v86
    %v89 = vmul.f32 %v87, %v87
    %v90 = vsel %vm70, %v88, 0.0
    %91 = vadd.xlane.f32.xlu0 %v90
    %v92 = vpop.xlane.xlu0 %91
    %v93 = vsel %vm70, %v89, 0.0
    %94 = vadd.xlane.f32.xlu0 %v93
    %v95 = vpop.xlane.xlu0 %94
    %v96 = vmul.f32 %v92, %v83
    %v97 = vmul.f32 %v95, %v83
    %v98 = vadd.f32 %v96, 1e-05
    %v99 = vadd.f32 %v97, 1e-05
    %v100 = vrsqrt.pop %v98
    %v101 = vmul.f32 %v100, %v98
    %v102 = vmul.f32 %v101, %v100
    %v103 = vmul.f32 0.5, %v102
    %v104 = vsub.f32 1.5, %v103
    %v105 = vmul.f32 %v100, %v104
    %vm106 = vweird.f32 %v98
    %vm107 = vweird.f32 %v100
    %vm108 = vmor %vm106, %vm107
    %v109 = vsel %vm108, %v100, %v105
    %v110 = vrsqrt.pop %v99
    %v111 = vmul.f32 %v110, %v99
    %v112 = vmul.f32 %v111, %v110
    %v113 = vmul.f32 0.5, %v112
    %v114 = vsub.f32 1.5, %v113
    %v115 = vmul.f32 %v110, %v114
    %vm116 = vweird.f32 %v99
    %vm117 = vweird.f32 %v110
    %vm118 = vmor %vm116, %vm117
    %v119 = vsel %vm118, %v110, %v115
    %v120 = vmul.f32 %v86, %v109
    %v121 = vmul.f32 %v87, %v119
    %v122 = vld [vmem:[%s1] sm:$0x1]
    %v124 = vperm.slane %v122, 0
    %v126 = vmul.f32 %v120, %v124
    %v127 = vmul.f32 %v121, %v124
    %v128 = vld [vmem:[#allocation2] sm:$0x1]
    %v130 = vperm.slane %v128, 0
    %v132 = vadd.f32 %v126, %v130
    %v133 = vadd.f32 %v127, %v130
    %v134 = vpack.c.bf16 %v133, %v132
    %v135 = vld [vmem:[%s3] sm:$0xf]
    %v136 = vld [vmem:[%s3 + $0x4] sm:$0xf]
    %v137 = vld [vmem:[%s3 + $0x8] sm:$0xf]
    %v138 = vld [vmem:[%s3 + $0xc] sm:$0xf]
    %v139 = vld [vmem:[#allocation4] sm:$0x1]
    %v141 = vperm.slane %v139, 0
    %v147 = vunpack.c.l.b16 %v135
    %v148 = vunpack.c.l.b16 %v136
    %v149 = vunpack.c.l.b16 %v137
    %v150 = vunpack.c.l.b16 %v138
    %v151 = vpack.c.b16 %v148, %v147
    %v152 = vpack.c.b16 %v150, %v149
    %v156 = vsel %vm70, %v134, 0
    %158 = vmatpush.bf16.msra.mxu0 0
    %159 = vmatpush.bf16.msra.mxu0 0
    %160 = vmatpush.bf16.msra.mxu0 0
    %161 = vmatpush.bf16.msra.mxu0 0
    %162 = vmatpush.bf16.msra.mxu0 0
    %163 = vmatpush.bf16.msra.mxu0 0
    %164 = vmatpush.bf16.msra.mxu0 %v152
    %165 = vmatpush.bf16.msra.mxu0 %v151
    %166 = vmatmul.bf16.gmra.mxu0 %v156
    %v167 = vpop.f32.mrf.mxu0
    %v168 = vadd.f32 %v141, %v167
    %v169 = vpop.f32.mrf.mxu0
    %v170 = vadd.f32 %v141, %v169
    %171 = vdwg.mxu0
    %v172 = vmax.f32 %v168, 0.0
    %v173 = vmax.f32 %v170, 0.0
    %v174 = vpack.c.bf16 %v173, %v172
    %v175 = vld [vmem:[%s5] sm:$0xf]
    %v176 = vld [vmem:[%s5 + $0x4] sm:$0xf]
    %v177 = vld [vmem:[%s5 + $0x8] sm:$0xf]
    %v178 = vld [vmem:[%s5 + $0xc] sm:$0xf]
    %v179 = vld [vmem:[%s5 + $0x10] sm:$0xf]
    %v180 = vld [vmem:[%s5 + $0x14] sm:$0xf]
    %v181 = vld [vmem:[%s5 + $0x18] sm:$0xf]
    %v182 = vld [vmem:[%s5 + $0x1c] sm:$0xf]
    %v183 = vld [vmem:[#allocation6] sm:$0x1]
    %v185 = vperm.slane %v183, 0
    %v195 = vunpack.c.l.b16 %v175
    %v196 = vunpack.c.l.b16 %v176
    %v197 = vunpack.c.l.b16 %v177
    %v198 = vunpack.c.l.b16 %v178
    %v199 = vunpack.c.l.b16 %v179
    %v200 = vunpack.c.l.b16 %v180
    %v201 = vunpack.c.l.b16 %v181
    %v202 = vunpack.c.l.b16 %v182
    %v203 = vpack.c.b16 %v196, %v195
    %v204 = vpack.c.b16 %v198, %v197
    %v205 = vpack.c.b16 %v200, %v199
    %v206 = vpack.c.b16 %v202, %v201
    %vm211 = vcmask 523264
    %v213 = vsel %vm211, %v174, 0
    %215 = vmatpush.bf16.msra.mxu0 0
    %216 = vmatpush.bf16.msra.mxu0 0
    %217 = vmatpush.bf16.msra.mxu0 0
    %218 = vmatpush.bf16.msra.mxu0 0
    %219 = vmatpush.bf16.msra.mxu0 %v206
    %220 = vmatpush.bf16.msra.mxu0 %v205
    %221 = vmatpush.bf16.msra.mxu0 %v204
    %222 = vmatpush.bf16.msra.mxu0 %v203
    %223 = vmatmul.bf16.gmra.mxu0 %v213
    %v224 = vpop.f32.mrf.mxu0
    %v225 = vadd.f32 %v185, %v224
    %v226 = vpop.f32.mrf.mxu0
    %v227 = vadd.f32 %v185, %v226
    %228 = vdwg.mxu0
    %v229 = vadd.f32 %v68, %v225
    %v230 = vadd.f32 %v69, %v227
    %231 = vst.msk [vmem:[%s7] sm:$0xff] %vm70, %v229
    %232 = vst.msk [vmem:[%s7 + $0x8] sm:$0xff] %vm70, %v230
    // Predicated region
    $region42: #{transformer_forward.40} parent=1 // pred_check
      _
    $region43: #{transformer_forward.40} parent=1 // pred_check_branch
      %234 = sbr.rel (0) target = $region45
    $region44: #{transformer_forward.40} parent=1 // pred_region
      _
    $region45: #{transformer_forward.40} parent=1 // pred_fallthru
      _
    // Predicated region
    $region46: #{transformer_forward.40} parent=1 // pred_check
      _
    $region47: #{transformer_forward.40} parent=1 // pred_check_branch
      %236 = sbr.rel (0) target = $region49
    $region48: #{transformer_forward.40} parent=1 // pred_region
      _
    $region49: #{transformer_forward.40} parent=1 // pred_fallthru
      _
    %237 = vsyncpa [#allocation3], 1
    %238 = vsyncpa [#allocation5], 1

// kernel: transformer_forward.44
$region0: #{transformer_forward.44}
  #allocation0 [shape = 'u32[]', space=smem, size = 0x4, offset = 0x4, fixed_abs, tag = 'smem constant byte address 0x4 - core index']
  #allocation1 [shape = 'u32[72,128]{1,0:T(1,128)}', space=vmem, size = 0x9000, scoped, tag = 'internal scratch']
  %s0 = inlined_call_operand.vmem [shape: f32[16,32], index: 0, kind: input, shape index: {}]
  %s1 = inlined_call_operand.hbm [shape: f32[1,32], index: 1, kind: input, shape index: {}]
  %s2 = inlined_call_operand.hbm [shape: f32[1,32], index: 2, kind: input, shape index: {}]
  %s3 = inlined_call_operand.vmem [shape: bf16[32,32], index: 3, kind: input, shape index: {}]
  %s4 = inlined_call_operand.hbm [shape: f32[1,32], index: 4, kind: input, shape index: {}]
  %s5 = inlined_call_operand.vmem [shape: bf16[16,32], index: 5, kind: output, shape index: {}]
  %s6 = sld [smem:[#allocation0]]
  $region42: #{transformer_forward.44} parent=0
    _
  %s8 = ssub.s32 1, %s6
  %s9 = scalar_select 0, %s8, %s6
  $region1: #{transformer_forward.44} parent=0
    #allocation2 [shape = 'u8[512]{0}', space=vmem, size = 0x400, scoped, tag = 'input window, operand 1, single buffered']
    #allocation3 [shape = 's32[1]{0}', space=sflag, size = 0x4, scoped, tag = 'scoped memory for transformer_forward.44']
    #allocation4 [shape = 'u8[512]{0}', space=vmem, size = 0x400, scoped, tag = 'input window, operand 2, single buffered']
    #allocation5 [shape = 's32[1]{0}', space=sflag, size = 0x4, scoped, tag = 'scoped memory for transformer_forward.44']
    #allocation6 [shape = 'u8[512]{0}', space=vmem, size = 0x400, scoped, tag = 'input window, operand 4, single buffered']
    %10 = vsyncpa [#allocation3], 0
    %11 = vsyncpa [#allocation5], 0
    // Predicated region
    $region2: #{transformer_forward.44} parent=1 // pred_check
      _
    $region3: #{transformer_forward.44} parent=1 // pred_check_branch
      %13 = sbr.rel (0) target = $region5
    $region4: #{transformer_forward.44} parent=1 // pred_region
      _
    $region5: #{transformer_forward.44} parent=1 // pred_fallthru
      _
    // Predicated region
    $region6: #{transformer_forward.44} parent=1 // pred_check
      _
    $region7: #{transformer_forward.44} parent=1 // pred_check_branch
      %15 = sbr.rel (0) target = $region9
    $region8: #{transformer_forward.44} parent=1 // pred_region
      %17 = vsyncadd [#allocation3], 0
      %s19 = sshll.u32 %s1, 4
      %s20 = int_to_ptr.hbm [resolvable:$true] %s19
      %s21 = sshll.u32 [#allocation2], 4
      %s22 = int_to_ptr.vmem [resolvable:$true] %s21
      %24 = dma.hbm_to_vmem [thread:$0]  %s20, 16, %s22, [#allocation3]
    $region9: #{transformer_forward.44} parent=1 // pred_fallthru
      _
    // Predicated region
    $region10: #{transformer_forward.44} parent=1 // pred_check
      _
    $region11: #{transformer_forward.44} parent=1 // pred_check_branch
      %26 = sbr.rel (0) target = $region13
    $region12: #{transformer_forward.44} parent=1 // pred_region
      %28 = vsyncadd [#allocation5], 0
      %s30 = sshll.u32 %s2, 4
      %s31 = int_to_ptr.hbm [resolvable:$true] %s30
      %s32 = sshll.u32 [#allocation4], 4
      %s33 = int_to_ptr.vmem [resolvable:$true] %s32
      %35 = dma.hbm_to_vmem [thread:$0]  %s31, 16, %s33, [#allocation5]
    $region13: #{transformer_forward.44} parent=1 // pred_fallthru
      _
    // Predicated region
    $region14: #{transformer_forward.44} parent=1 // pred_check
      _
    $region15: #{transformer_forward.44} parent=1 // pred_check_branch
      %37 = sbr.rel (0) target = $region17
    $region16: #{transformer_forward.44} parent=1 // pred_region
      _
    $region17: #{transformer_forward.44} parent=1 // pred_fallthru
      _
    // Predicated region
    $region18: #{transformer_forward.44} parent=1 // pred_check
      _
    $region19: #{transformer_forward.44} parent=1 // pred_check_branch
      %39 = sbr.rel (0) target = $region21
    $region20: #{transformer_forward.44} parent=1 // pred_region
      %41 = vsyncadd [#allocation5], 0
      %s43 = sshll.u32 %s4, 4
      %s44 = int_to_ptr.hbm [resolvable:$true] %s43
      %s45 = sshll.u32 [#allocation6], 4
      %s46 = int_to_ptr.vmem [resolvable:$true] %s45
      %48 = dma.hbm_to_vmem [thread:$0]  %s44, 16, %s46, [#allocation5]
    $region21: #{transformer_forward.44} parent=1 // pred_fallthru
      _
    // Predicated region
    $region22: #{transformer_forward.44} parent=1 // pred_check
      _
    $region23: #{transformer_forward.44} parent=1 // pred_check_branch
      %50 = sbr.rel (0) target = $region25
    $region24: #{transformer_forward.44} parent=1 // pred_region
      %52 = dma.done [#allocation3], 16
    $region25: #{transformer_forward.44} parent=1 // pred_fallthru
      _
    // Predicated region
    $region26: #{transformer_forward.44} parent=1 // pred_check
      _
    $region27: #{transformer_forward.44} parent=1 // pred_check_branch
      %54 = sbr.rel (0) target = $region29
    $region28: #{transformer_forward.44} parent=1 // pred_region
      %56 = dma.done [#allocation5], 16
    $region29: #{transformer_forward.44} parent=1 // pred_fallthru
      _
    // Predicated region
    $region30: #{transformer_forward.44} parent=1 // pred_check
      _
    $region31: #{transformer_forward.44} parent=1 // pred_check_branch
      %58 = sbr.rel (0) target = $region33
    $region32: #{transformer_forward.44} parent=1 // pred_region
      %60 = dma.done [#allocation5], 16
    $region33: #{transformer_forward.44} parent=1 // pred_fallthru
      _
    %v62 = vld [vmem:[%s0] sm:$0xff]
    %v63 = vld [vmem:[%s0 + $0x8] sm:$0xff]
    %vm64 = vcmask 261120
    %v65 = vsel %vm64, %v62, 0.0
    %66 = vadd.xlane.f32.xlu0 %v65
    %v67 = vpop.xlane.xlu0 %66
    %v68 = vsel %vm64, %v63, 0.0
    %69 = vadd.xlane.f32.xlu0 %v68
    %v70 = vpop.xlane.xlu0 %69
    %v71 = vrcp.pop 32.0
    %v72 = vmul.f32 32.0, %v71
    %v73 = vsub.f32 1.0, %v72
    %v74 = vmul.f32 %v71, %v73
    %v75 = vadd.f32 %v71, %v74
    %vm76 = vweird.f32 %v71
    %v77 = vsel %vm76, %v71, %v75
    %v78 = vmul.f32 %v67, %v77
    %v79 = vmul.f32 %v70, %v77
    %v80 = vsub.f32 %v62, %v78
    %v81 = vsub.f32 %v63, %v79
    %v82 = vmul.f32 %v80, %v80
    %v83 = vmul.f32 %v81, %v81
    %v84 = vsel %vm64, %v82, 0.0
    %85 = vadd.xlane.f32.xlu0 %v84
    %v86 = vpop.xlane.xlu0 %85
    %v87 = vsel %vm64, %v83, 0.0
    %88 = vadd.xlane.f32.xlu0 %v87
    %v89 = vpop.xlane.xlu0 %88
    %v90 = vmul.f32 %v86, %v77
    %v91 = vmul.f32 %v89, %v77
    %v92 = vadd.f32 %v90, 1e-05
    %v93 = vadd.f32 %v91, 1e-05
    %v94 = vrsqrt.pop %v92
    %v95 = vmul.f32 %v94, %v92
    %v96 = vmul.f32 %v95, %v94
    %v97 = vmul.f32 0.5, %v96
    %v98 = vsub.f32 1.5, %v97
    %v99 = vmul.f32 %v94, %v98
    %vm100 = vweird.f32 %v92
    %vm101 = vweird.f32 %v94
    %vm102 = vmor %vm100, %vm101
    %v103 = vsel %vm102, %v94, %v99
    %v104 = vrsqrt.pop %v93
    %v105 = vmul.f32 %v104, %v93
    %v106 = vmul.f32 %v105, %v104
    %v107 = vmul.f32 0.5, %v106
    %v108 = vsub.f32 1.5, %v107
    %v109 = vmul.f32 %v104, %v108
    %vm110 = vweird.f32 %v93
    %vm111 = vweird.f32 %v104
    %vm112 = vmor %vm110, %vm111
    %v113 = vsel %vm112, %v104, %v109
    %v114 = vmul.f32 %v80, %v103
    %v115 = vmul.f32 %v81, %v113
    %v116 = vld [vmem:[#allocation2] sm:$0x1]
    %v118 = vperm.slane %v116, 0
    %v120 = vmul.f32 %v114, %v118
    %v121 = vmul.f32 %v115, %v118
    %v122 = vld [vmem:[#allocation4] sm:$0x1]
    %v124 = vperm.slane %v122, 0
    %v126 = vadd.f32 %v120, %v124
    %v127 = vadd.f32 %v121, %v124
    %v128 = vpack.c.bf16 %v127, %v126
    %v129 = vld [vmem:[%s3] sm:$0xf]
    %v130 = vld [vmem:[%s3 + $0x4] sm:$0xf]
    %v131 = vld [vmem:[%s3 + $0x8] sm:$0xf]
    %v132 = vld [vmem:[%s3 + $0xc] sm:$0xf]
    %v133 = vld [vmem:[#allocation6] sm:$0x1]
    %v135 = vperm.slane %v133, 0
    %v141 = vunpack.c.l.b16 %v129
    %v142 = vunpack.c.l.b16 %v130
    %v143 = vunpack.c.l.b16 %v131
    %v144 = vunpack.c.l.b16 %v132
    %v145 = vpack.c.b16 %v142, %v141
    %v146 = vpack.c.b16 %v144, %v143
    %v150 = vsel %vm64, %v128, 0
    %152 = vmatpush.bf16.msra.mxu0 0
    %153 = vmatpush.bf16.msra.mxu0 0
    %154 = vmatpush.bf16.msra.mxu0 0
    %155 = vmatpush.bf16.msra.mxu0 0
    %156 = vmatpush.bf16.msra.mxu0 0
    %157 = vmatpush.bf16.msra.mxu0 0
    %158 = vmatpush.bf16.msra.mxu0 %v146
    %159 = vmatpush.bf16.msra.mxu0 %v145
    %160 = vmatmul.bf16.gmra.mxu0 %v150
    %v161 = vpop.f32.mrf.mxu0
    %v162 = vadd.f32 %v135, %v161
    %v163 = vpop.f32.mrf.mxu0
    %v164 = vadd.f32 %v135, %v163
    %165 = vdwg.mxu0
    %v166 = vpack.c.bf16 %v162, %v162
    %v167 = vpack.c.bf16 %v164, %v164
    %vm168 = vcmask 257024
    %169 = vst.msk [vmem:[%s5] sm:$0xf] %vm168, %v166
    %170 = vst.msk [vmem:[%s5 + $0x4] sm:$0xf] %vm168, %v167
    // Predicated region
    $region34: #{transformer_forward.44} parent=1 // pred_check
      _
    $region35: #{transformer_forward.44} parent=1 // pred_check_branch
      %172 = sbr.rel (0) target = $region37
    $region36: #{transformer_forward.44} parent=1 // pred_region
      _
    $region37: #{transformer_forward.44} parent=1 // pred_fallthru
      _
    // Predicated region
    $region38: #{transformer_forward.44} parent=1 // pred_check
      _
    $region39: #{transformer_forward.44} parent=1 // pred_check_branch
      %174 = sbr.rel (0) target = $region41
    $region40: #{transformer_forward.44} parent=1 // pred_region
      _
    $region41: #{transformer_forward.44} parent=1 // pred_fallthru
      _
    %175 = vsyncpa [#allocation3], 1
    %176 = vsyncpa [#allocation5], 1

// kernel: transformer_forward.41
$region0: #{transformer_forward.41}
  #allocation0 [shape = 'u32[]', space=smem, size = 0x4, offset = 0x4, fixed_abs, tag = 'smem constant byte address 0x4 - core index']
  #allocation1 [shape = 'u32[72,128]{1,0:T(1,128)}', space=vmem, size = 0x9000, scoped, tag = 'internal scratch']
  %s0 = inlined_call_operand.vmem [shape: f32[16,32], index: 0, kind: input, shape index: {}]
  %s1 = inlined_call_operand.hbm [shape: f32[1,32], index: 1, kind: input, shape index: {}]
  %s2 = inlined_call_operand.hbm [shape: f32[1,32], index: 2, kind: input, shape index: {}]
  %s3 = inlined_call_operand.vmem [shape: bf16[32,96], index: 3, kind: input, shape index: {}]
  %s4 = inlined_call_operand.hbm [shape: f32[1,96], index: 4, kind: input, shape index: {}]
  %s5 = inlined_call_operand.vmem [shape: bf16[16,32], index: 5, kind: output, shape index: {0}]
  %s6 = inlined_call_operand.vmem [shape: bf16[16,32], index: 6, kind: output, shape index: {1}]
  %s7 = inlined_call_operand.vmem [shape: bf16[16,32], index: 7, kind: output, shape index: {2}]
  %8 = xla_tuple %s5, %s6, %s7
  %s9 = sld [smem:[#allocation0]]
  $region58: #{transformer_forward.41} parent=0
    _
  %s11 = ssub.s32 1, %s9
  %s12 = scalar_select 0, %s11, %s9
  $region1: #{transformer_forward.41} parent=0
    #allocation2 [shape = 'u8[512]{0}', space=vmem, size = 0x400, scoped, tag = 'input window, operand 1, single buffered']
    #allocation3 [shape = 's32[1]{0}', space=sflag, size = 0x4, scoped, tag = 'scoped memory for transformer_forward.41']
    #allocation4 [shape = 'u8[512]{0}', space=vmem, size = 0x400, scoped, tag = 'input window, operand 2, single buffered']
    #allocation5 [shape = 's32[1]{0}', space=sflag, size = 0x4, scoped, tag = 'scoped memory for transformer_forward.41']
    #allocation6 [shape = 'u8[512]{0}', space=vmem, size = 0x400, scoped, tag = 'input window, operand 4, single buffered']
    %13 = vsyncpa [#allocation3], 0
    %14 = vsyncpa [#allocation5], 0
    // Predicated region
    $region2: #{transformer_forward.41} parent=1 // pred_check
      _
    $region3: #{transformer_forward.41} parent=1 // pred_check_branch
      %16 = sbr.rel (0) target = $region5
    $region4: #{transformer_forward.41} parent=1 // pred_region
      _
    $region5: #{transformer_forward.41} parent=1 // pred_fallthru
      _
    // Predicated region
    $region6: #{transformer_forward.41} parent=1 // pred_check
      _
    $region7: #{transformer_forward.41} parent=1 // pred_check_branch
      %18 = sbr.rel (0) target = $region9
    $region8: #{transformer_forward.41} parent=1 // pred_region
      %20 = vsyncadd [#allocation3], 0
      %s22 = sshll.u32 %s1, 4
      %s23 = int_to_ptr.hbm [resolvable:$true] %s22
      %s24 = sshll.u32 [#allocation2], 4
      %s25 = int_to_ptr.vmem [resolvable:$true] %s24
      %27 = dma.hbm_to_vmem [thread:$0]  %s23, 16, %s25, [#allocation3]
    $region9: #{transformer_forward.41} parent=1 // pred_fallthru
      _
    // Predicated region
    $region10: #{transformer_forward.41} parent=1 // pred_check
      _
    $region11: #{transformer_forward.41} parent=1 // pred_check_branch
      %29 = sbr.rel (0) target = $region13
    $region12: #{transformer_forward.41} parent=1 // pred_region
      %31 = vsyncadd [#allocation5], 0
      %s33 = sshll.u32 %s2, 4
      %s34 = int_to_ptr.hbm [resolvable:$true] %s33
      %s35 = sshll.u32 [#allocation4], 4
      %s36 = int_to_ptr.vmem [resolvable:$true] %s35
      %38 = dma.hbm_to_vmem [thread:$0]  %s34, 16, %s36, [#allocation5]
    $region13: #{transformer_forward.41} parent=1 // pred_fallthru
      _
    // Predicated region
    $region14: #{transformer_forward.41} parent=1 // pred_check
      _
    $region15: #{transformer_forward.41} parent=1 // pred_check_branch
      %40 = sbr.rel (0) target = $region17
    $region16: #{transformer_forward.41} parent=1 // pred_region
      _
    $region17: #{transformer_forward.41} parent=1 // pred_fallthru
      _
    // Predicated region
    $region18: #{transformer_forward.41} parent=1 // pred_check
      _
    $region19: #{transformer_forward.41} parent=1 // pred_check_branch
      %42 = sbr.rel (0) target = $region21
    $region20: #{transformer_forward.41} parent=1 // pred_region
      %44 = vsyncadd [#allocation5], 0
      %s46 = sshll.u32 %s4, 4
      %s47 = int_to_ptr.hbm [resolvable:$true] %s46
      %s48 = sshll.u32 [#allocation6], 4
      %s49 = int_to_ptr.vmem [resolvable:$true] %s48
      %51 = dma.hbm_to_vmem [thread:$0]  %s47, 16, %s49, [#allocation5]
    $region21: #{transformer_forward.41} parent=1 // pred_fallthru
      _
    // Predicated region
    $region22: #{transformer_forward.41} parent=1 // pred_check
      _
    $region23: #{transformer_forward.41} parent=1 // pred_check_branch
      %53 = sbr.rel (0) target = $region25
    $region24: #{transformer_forward.41} parent=1 // pred_region
      %55 = dma.done [#allocation3], 16
    $region25: #{transformer_forward.41} parent=1 // pred_fallthru
      _
    // Predicated region
    $region26: #{transformer_forward.41} parent=1 // pred_check
      _
    $region27: #{transformer_forward.41} parent=1 // pred_check_branch
      %57 = sbr.rel (0) target = $region29
    $region28: #{transformer_forward.41} parent=1 // pred_region
      %59 = dma.done [#allocation5], 16
    $region29: #{transformer_forward.41} parent=1 // pred_fallthru
      _
    // Predicated region
    $region30: #{transformer_forward.41} parent=1 // pred_check
      _
    $region31: #{transformer_forward.41} parent=1 // pred_check_branch
      %61 = sbr.rel (0) target = $region33
    $region32: #{transformer_forward.41} parent=1 // pred_region
      %63 = dma.done [#allocation5], 16
    $region33: #{transformer_forward.41} parent=1 // pred_fallthru
      _
    %v65 = vld [vmem:[%s0] sm:$0xff]
    %v66 = vld [vmem:[%s0 + $0x8] sm:$0xff]
    %vm67 = vcmask 261120
    %v68 = vsel %vm67, %v65, 0.0
    %69 = vadd.xlane.f32.xlu0 %v68
    %v70 = vpop.xlane.xlu0 %69
    %v71 = vsel %vm67, %v66, 0.0
    %72 = vadd.xlane.f32.xlu0 %v71
    %v73 = vpop.xlane.xlu0 %72
    %v74 = vrcp.pop 32.0
    %v75 = vmul.f32 32.0, %v74
    %v76 = vsub.f32 1.0, %v75
    %v77 = vmul.f32 %v74, %v76
    %v78 = vadd.f32 %v74, %v77
    %vm79 = vweird.f32 %v74
    %v80 = vsel %vm79, %v74, %v78
    %v81 = vmul.f32 %v70, %v80
    %v82 = vmul.f32 %v73, %v80
    %v83 = vsub.f32 %v65, %v81
    %v84 = vsub.f32 %v66, %v82
    %v85 = vmul.f32 %v83, %v83
    %v86 = vmul.f32 %v84, %v84
    %v87 = vsel %vm67, %v85, 0.0
    %88 = vadd.xlane.f32.xlu0 %v87
    %v89 = vpop.xlane.xlu0 %88
    %v90 = vsel %vm67, %v86, 0.0
    %91 = vadd.xlane.f32.xlu0 %v90
    %v92 = vpop.xlane.xlu0 %91
    %v93 = vmul.f32 %v89, %v80
    %v94 = vmul.f32 %v92, %v80
    %v95 = vadd.f32 %v93, 1e-05
    %v96 = vadd.f32 %v94, 1e-05
    %v97 = vrsqrt.pop %v95
    %v98 = vmul.f32 %v97, %v95
    %v99 = vmul.f32 %v98, %v97
    %v100 = vmul.f32 0.5, %v99
    %v101 = vsub.f32 1.5, %v100
    %v102 = vmul.f32 %v97, %v101
    %vm103 = vweird.f32 %v95
    %vm104 = vweird.f32 %v97
    %vm105 = vmor %vm103, %vm104
    %v106 = vsel %vm105, %v97, %v102
    %v107 = vrsqrt.pop %v96
    %v108 = vmul.f32 %v107, %v96
    %v109 = vmul.f32 %v108, %v107
    %v110 = vmul.f32 0.5, %v109
    %v111 = vsub.f32 1.5, %v110
    %v112 = vmul.f32 %v107, %v111
    %vm113 = vweird.f32 %v96
    %vm114 = vweird.f32 %v107
    %vm115 = vmor %vm113, %vm114
    %v116 = vsel %vm115, %v107, %v112
    %v117 = vmul.f32 %v83, %v106
    %v118 = vmul.f32 %v84, %v116
    %v119 = vld [vmem:[#allocation2] sm:$0x1]
    %v121 = vperm.slane %v119, 0
    %v123 = vmul.f32 %v117, %v121
    %v124 = vmul.f32 %v118, %v121
    %v125 = vld [vmem:[#allocation4] sm:$0x1]
    %v127 = vperm.slane %v125, 0
    %v129 = vadd.f32 %v123, %v127
    %v130 = vadd.f32 %v124, %v127
    %v131 = vpack.c.bf16 %v130, %v129
    %v132 = vld [vmem:[%s3] sm:$0xf]
    %v133 = vld [vmem:[%s3 + $0x4] sm:$0xf]
    %v134 = vld [vmem:[%s3 + $0x8] sm:$0xf]
    %v135 = vld [vmem:[%s3 + $0xc] sm:$0xf]
    %v136 = vld [vmem:[#allocation6] sm:$0x1]
    %v138 = vperm.slane %v136, 0
    %v144 = vunpack.c.l.b16 %v132
    %v145 = vunpack.c.l.b16 %v133
    %v146 = vunpack.c.l.b16 %v134
    %v147 = vunpack.c.l.b16 %v135
    %v148 = vpack.c.b16 %v145, %v144
    %v149 = vpack.c.b16 %v147, %v146
    %v153 = vsel %vm67, %v131, 0
    %155 = vmatpush.bf16.msra.mxu0 0
    %156 = vmatpush.bf16.msra.mxu0 0
    %157 = vmatpush.bf16.msra.mxu0 0
    %158 = vmatpush.bf16.msra.mxu0 0
    %159 = vmatpush.bf16.msra.mxu0 0
    %160 = vmatpush.bf16.msra.mxu0 0
    %161 = vmatpush.bf16.msra.mxu0 %v149
    %162 = vmatpush.bf16.msra.mxu0 %v148
    %163 = vmatmul.bf16.gmra.mxu0 %v153
    %v164 = vpop.f32.mrf.mxu0
    %v165 = vadd.f32 %v138, %v164
    %v166 = vpop.f32.mrf.mxu0
    %v167 = vadd.f32 %v138, %v166
    %168 = vdwg.mxu0
    %v169 = vpack.c.bf16 %v165, %v165
    %v170 = vpack.c.bf16 %v167, %v167
    %vm171 = vcmask 257024
    %172 = vst.msk [vmem:[%s5] sm:$0xf] %vm171, %v169
    %173 = vst.msk [vmem:[%s5 + $0x4] sm:$0xf] %vm171, %v170
    %176 = vrot.lane.b32.xlu0 %v169, 96
    %v177 = vpop.permute.xlu0 %176
    %178 = vrot.lane.b32.xlu0 %v170, 96
    %v179 = vpop.permute.xlu0 %178
    %182 = vst.msk [vmem:[%s6] sm:$0xf] %vm171, %v177
    %183 = vst.msk [vmem:[%s6 + $0x4] sm:$0xf] %vm171, %v179
    %184 = vrot.lane.b32.xlu0 %v169, 64
    %v185 = vpop.permute.xlu0 %184
    %186 = vrot.lane.b32.xlu0 %v170, 64
    %v187 = vpop.permute.xlu0 %186
    %190 = vst.msk [vmem:[%s7] sm:$0xf] %vm171, %v185
    %191 = vst.msk [vmem:[%s7 + $0x4] sm:$0xf] %vm171, %v187
    // Predicated region
    $region34: #{transformer_forward.41} parent=1 // pred_check
      _
    $region35: #{transformer_forward.41} parent=1 // pred_check_branch
      %193 = sbr.rel (0) target = $region37
    $region36: #{transformer_forward.41} parent=1 // pred_region
      _
    $region37: #{transformer_forward.41} parent=1 // pred_fallthru
      _
    // Predicated region
    $region38: #{transformer_forward.41} parent=1 // pred_check
      _
    $region39: #{transformer_forward.41} parent=1 // pred_check_branch
      %195 = sbr.rel (0) target = $region41
    $region40: #{transformer_forward.41} parent=1 // pred_region
      _
    $region41: #{transformer_forward.41} parent=1 // pred_fallthru
      _
    // Predicated region
    $region42: #{transformer_forward.41} parent=1 // pred_check
      _
    $region43: #{transformer_forward.41} parent=1 // pred_check_branch
      %197 = sbr.rel (0) target = $region45
    $region44: #{transformer_forward.41} parent=1 // pred_region
      _
    $region45: #{transformer_forward.41} parent=1 // pred_fallthru
      _
    // Predicated region
    $region46: #{transformer_forward.41} parent=1 // pred_check
      _
    $region47: #{transformer_forward.41} parent=1 // pred_check_branch
      %199 = sbr.rel (0) target = $region49
    $region48: #{transformer_forward.41} parent=1 // pred_region
      _
    $region49: #{transformer_forward.41} parent=1 // pred_fallthru
      _
    // Predicated region
    $region50: #{transformer_forward.41} parent=1 // pred_check
      _
    $region51: #{transformer_forward.41} parent=1 // pred_check_branch
      %201 = sbr.rel (0) target = $region53
    $region52: #{transformer_forward.41} parent=1 // pred_region
      _
    $region53: #{transformer_forward.41} parent=1 // pred_fallthru
      _
    // Predicated region
    $region54: #{transformer_forward.41} parent=1 // pred_check
      _
    $region55: #{transformer_forward.41} parent=1 // pred_check_branch
      %203 = sbr.rel (0) target = $region57
    $region56: #{transformer_forward.41} parent=1 // pred_region
      _
    $region57: #{transformer_forward.41} parent=1 // pred_fallthru
      _
    %204 = vsyncpa [#allocation3], 1
    %205 = vsyncpa [#allocation5], 1

// kernel: transformer_forward.49
$region0: #{transformer_forward.49}
  #allocation0 [shape = 'u32[]', space=smem, size = 0x4, offset = 0x4, fixed_abs, tag = 'smem constant byte address 0x4 - core index']
  #allocation1 [shape = 'u32[72,128]{1,0:T(1,128)}', space=vmem, size = 0x9000, scoped, tag = 'internal scratch']
  %s0 = inlined_call_operand.vmem [shape: f32[16,32], index: 0, kind: input, shape index: {}]
  %s1 = inlined_call_operand.vmem [shape: bf16[32,48], index: 1, kind: input, shape index: {}]
  %s2 = inlined_call_operand.vmem [shape: f32[1,48], index: 2, kind: input, shape index: {}]
  %s3 = inlined_call_operand.hbm [shape: f32[16,48], index: 3, kind: output, shape index: {}]
  %s4 = sld [smem:[#allocation0]]
  $region22: #{transformer_forward.49} parent=0
    _
  %s6 = ssub.s32 1, %s4
  %s7 = scalar_select 0, %s6, %s4
  $region1: #{transformer_forward.49} parent=0
    #allocation2 [shape = 'u8[8192]{0}', space=vmem, size = 0x2000, scoped, tag = 'output window, operand 0, single buffered']
    #allocation3 [shape = 's32[1]{0}', space=sflag, size = 0x4, scoped, tag = 'scoped memory for transformer_forward.49']
    %8 = vsyncpa [#allocation3], 0
    // Predicated region
    $region2: #{transformer_forward.49} parent=1 // pred_check
      _
    $region3: #{transformer_forward.49} parent=1 // pred_check_branch
      %10 = sbr.rel (0) target = $region5
    $region4: #{transformer_forward.49} parent=1 // pred_region
      _
    $region5: #{transformer_forward.49} parent=1 // pred_fallthru
      _
    // Predicated region
    $region6: #{transformer_forward.49} parent=1 // pred_check
      _
    $region7: #{transformer_forward.49} parent=1 // pred_check_branch
      %12 = sbr.rel (0) target = $region9
    $region8: #{transformer_forward.49} parent=1 // pred_region
      _
    $region9: #{transformer_forward.49} parent=1 // pred_fallthru
      _
    // Predicated region
    $region10: #{transformer_forward.49} parent=1 // pred_check
      _
    $region11: #{transformer_forward.49} parent=1 // pred_check_branch
      %14 = sbr.rel (0) target = $region13
    $region12: #{transformer_forward.49} parent=1 // pred_region
      _
    $region13: #{transformer_forward.49} parent=1 // pred_fallthru
      _
    %v16 = vld [vmem:[%s0] sm:$0xff]
    %v17 = vld [vmem:[%s0 + $0x8] sm:$0xff]
    %v18 = vpack.c.bf16 %v17, %v16
    %v19 = vld [vmem:[%s1] sm:$0xf]
    %v20 = vld [vmem:[%s1 + $0x4] sm:$0xf]
    %v21 = vld [vmem:[%s1 + $0x8] sm:$0xf]
    %v22 = vld [vmem:[%s1 + $0xc] sm:$0xf]
    %v23 = vld [vmem:[%s2] sm:$0x1]
    %v25 = vperm.slane %v23, 0
    %v31 = vunpack.c.l.b16 %v19
    %v32 = vunpack.c.l.b16 %v20
    %v33 = vunpack.c.l.b16 %v21
    %v34 = vunpack.c.l.b16 %v22
    %v35 = vpack.c.b16 %v32, %v31
    %v36 = vpack.c.b16 %v34, %v33
    %vm39 = vcmask 261120
    %v41 = vsel %vm39, %v18, 0
    %43 = vmatpush.bf16.msra.mxu0 0
    %44 = vmatpush.bf16.msra.mxu0 0
    %45 = vmatpush.bf16.msra.mxu0 0
    %46 = vmatpush.bf16.msra.mxu0 0
    %47 = vmatpush.bf16.msra.mxu0 0
    %48 = vmatpush.bf16.msra.mxu0 0
    %49 = vmatpush.bf16.msra.mxu0 %v36
    %50 = vmatpush.bf16.msra.mxu0 %v35
    %51 = vmatmul.bf16.gmra.mxu0 %v41
    %v52 = vpop.f32.mrf.mxu0
    %v53 = vadd.f32 %v25, %v52
    %v54 = vpop.f32.mrf.mxu0
    %v55 = vadd.f32 %v25, %v54
    %56 = vdwg.mxu0
    %vm57 = vcmask 392192
    %58 = vst.msk [vmem:[#allocation2] sm:$0xff] %vm57, %v53
    %59 = vst.msk [vmem:[#allocation2 + $0x8] sm:$0xff] %vm57, %v55
    // Predicated region
    $region14: #{transformer_forward.49} parent=1 // pred_check
      _
    $region15: #{transformer_forward.49} parent=1 // pred_check_branch
      %61 = sbr.rel (0) target = $region17
    $region16: #{transformer_forward.49} parent=1 // pred_region
      %63 = vsyncadd [#allocation3], 0
      %s64 = sshll.u32 [#allocation2], 4
      %s65 = int_to_ptr.vmem [resolvable:$true] %s64
      %s66 = sshll.u32 %s3, 4
      %s67 = int_to_ptr.hbm [resolvable:$true] %s66
      %72 = dma.vmem_to_hbm [thread:$0]  %s65, 256, %s67, [#allocation3], 128, 128, 8
    $region17: #{transformer_forward.49} parent=1 // pred_fallthru
      _
    // Predicated region
    $region18: #{transformer_forward.49} parent=1 // pred_check
      _
    $region19: #{transformer_forward.49} parent=1 // pred_check_branch
      %74 = sbr.rel (0) target = $region21
    $region20: #{transformer_forward.49} parent=1 // pred_region
      %76 = dma.done [#allocation3], 256
    $region21: #{transformer_forward.49} parent=1 // pred_fallthru
      _
    %77 = vsyncpa [#allocation3], 1

// kernel: transformer_forward.45
$region0: #{transformer_forward.45}
  #allocation0 [shape = 'u32[]', space=smem, size = 0x4, offset = 0x4, fixed_abs, tag = 'smem constant byte address 0x4 - core index']
  #allocation1 [shape = 'u32[72,128]{1,0:T(1,128)}', space=vmem, size = 0x9000, scoped, tag = 'internal scratch']
  %s0 = inlined_call_operand.vmem [shape: f32[16,32], index: 0, kind: input, shape index: {}]
  %s1 = inlined_call_operand.vmem [shape: bf16[32,64], index: 1, kind: input, shape index: {}]
  %s2 = inlined_call_operand.hbm [shape: f32[1,64], index: 2, kind: input, shape index: {}]
  %s3 = inlined_call_operand.vmem [shape: bf16[16,32], index: 3, kind: output, shape index: {0}]
  %s4 = inlined_call_operand.vmem [shape: bf16[16,32], index: 4, kind: output, shape index: {1}]
  %5 = xla_tuple %s3, %s4
  %s6 = sld [smem:[#allocation0]]
  $region34: #{transformer_forward.45} parent=0
    _
  %s8 = ssub.s32 1, %s6
  %s9 = scalar_select 0, %s8, %s6
  $region1: #{transformer_forward.45} parent=0
    #allocation2 [shape = 'u8[512]{0}', space=vmem, size = 0x400, scoped, tag = 'input window, operand 2, single buffered']
    #allocation3 [shape = 's32[1]{0}', space=sflag, size = 0x4, scoped, tag = 'scoped memory for transformer_forward.45']
    %10 = vsyncpa [#allocation3], 0
    // Predicated region
    $region2: #{transformer_forward.45} parent=1 // pred_check
      _
    $region3: #{transformer_forward.45} parent=1 // pred_check_branch
      %12 = sbr.rel (0) target = $region5
    $region4: #{transformer_forward.45} parent=1 // pred_region
      _
    $region5: #{transformer_forward.45} parent=1 // pred_fallthru
      _
    // Predicated region
    $region6: #{transformer_forward.45} parent=1 // pred_check
      _
    $region7: #{transformer_forward.45} parent=1 // pred_check_branch
      %14 = sbr.rel (0) target = $region9
    $region8: #{transformer_forward.45} parent=1 // pred_region
      _
    $region9: #{transformer_forward.45} parent=1 // pred_fallthru
      _
    // Predicated region
    $region10: #{transformer_forward.45} parent=1 // pred_check
      _
    $region11: #{transformer_forward.45} parent=1 // pred_check_branch
      %16 = sbr.rel (0) target = $region13
    $region12: #{transformer_forward.45} parent=1 // pred_region
      %18 = vsyncadd [#allocation3], 0
      %s20 = sshll.u32 %s2, 4
      %s21 = int_to_ptr.hbm [resolvable:$true] %s20
      %s22 = sshll.u32 [#allocation2], 4
      %s23 = int_to_ptr.vmem [resolvable:$true] %s22
      %25 = dma.hbm_to_vmem [thread:$0]  %s21, 16, %s23, [#allocation3]
    $region13: #{transformer_forward.45} parent=1 // pred_fallthru
      _
    // Predicated region
    $region14: #{transformer_forward.45} parent=1 // pred_check
      _
    $region15: #{transformer_forward.45} parent=1 // pred_check_branch
      %27 = sbr.rel (0) target = $region17
    $region16: #{transformer_forward.45} parent=1 // pred_region
      %29 = dma.done [#allocation3], 16
    $region17: #{transformer_forward.45} parent=1 // pred_fallthru
      _
    %v31 = vld [vmem:[%s0] sm:$0xff]
    %v32 = vld [vmem:[%s0 + $0x8] sm:$0xff]
    %v33 = vpack.c.bf16 %v32, %v31
    %v34 = vld [vmem:[%s1] sm:$0xf]
    %v35 = vld [vmem:[%s1 + $0x4] sm:$0xf]
    %v36 = vld [vmem:[%s1 + $0x8] sm:$0xf]
    %v37 = vld [vmem:[%s1 + $0xc] sm:$0xf]
    %v38 = vld [vmem:[#allocation2] sm:$0x1]
    %v40 = vperm.slane %v38, 0
    %v46 = vunpack.c.l.b16 %v34
    %v47 = vunpack.c.l.b16 %v35
    %v48 = vunpack.c.l.b16 %v36
    %v49 = vunpack.c.l.b16 %v37
    %v50 = vpack.c.b16 %v47, %v46
    %v51 = vpack.c.b16 %v49, %v48
    %vm54 = vcmask 261120
    %v56 = vsel %vm54, %v33, 0
    %58 = vmatpush.bf16.msra.mxu0 0
    %59 = vmatpush.bf16.msra.mxu0 0
    %60 = vmatpush.bf16.msra.mxu0 0
    %61 = vmatpush.bf16.msra.mxu0 0
    %62 = vmatpush.bf16.msra.mxu0 0
    %63 = vmatpush.bf16.msra.mxu0 0
    %64 = vmatpush.bf16.msra.mxu0 %v51
    %65 = vmatpush.bf16.msra.mxu0 %v50
    %66 = vmatmul.bf16.gmra.mxu0 %v56
    %v67 = vpop.f32.mrf.mxu0
    %v68 = vadd.f32 %v40, %v67
    %v69 = vpop.f32.mrf.mxu0
    %v70 = vadd.f32 %v40, %v69
    %71 = vdwg.mxu0
    %v72 = vpack.c.bf16 %v68, %v68
    %v73 = vpack.c.bf16 %v70, %v70
    %vm74 = vcmask 257024
    %75 = vst.msk [vmem:[%s3] sm:$0xf] %vm74, %v72
    %76 = vst.msk [vmem:[%s3 + $0x4] sm:$0xf] %vm74, %v73
    %79 = vrot.lane.b32.xlu0 %v72, 96
    %v80 = vpop.permute.xlu0 %79
    %81 = vrot.lane.b32.xlu0 %v73, 96
    %v82 = vpop.permute.xlu0 %81
    %85 = vst.msk [vmem:[%s4] sm:$0xf] %vm74, %v80
    %86 = vst.msk [vmem:[%s4 + $0x4] sm:$0xf] %vm74, %v82
    // Predicated region
    $region18: #{transformer_forward.45} parent=1 // pred_check
      _
    $region19: #{transformer_forward.45} parent=1 // pred_check_branch
      %88 = sbr.rel (0) target = $region21
    $region20: #{transformer_forward.45} parent=1 // pred_region
      _
    $region21: #{transformer_forward.45} parent=1 // pred_fallthru
      _
    // Predicated region
    $region22: #{transformer_forward.45} parent=1 // pred_check
      _
    $region23: #{transformer_forward.45} parent=1 // pred_check_branch
      %90 = sbr.rel (0) target = $region25
    $region24: #{transformer_forward.45} parent=1 // pred_region
      _
    $region25: #{transformer_forward.45} parent=1 // pred_fallthru
      _
    // Predicated region
    $region26: #{transformer_forward.45} parent=1 // pred_check
      _
    $region27: #{transformer_forward.45} parent=1 // pred_check_branch
      %92 = sbr.rel (0) target = $region29
    $region28: #{transformer_forward.45} parent=1 // pred_region
      _
    $region29: #{transformer_forward.45} parent=1 // pred_fallthru
      _
    // Predicated region
    $region30: #{transformer_forward.45} parent=1 // pred_check
      _
    $region31: #{transformer_forward.45} parent=1 // pred_check_branch
      %94 = sbr.rel (0) target = $region33
    $region32: #{transformer_forward.45} parent=1 // pred_region
      _
    $region33: #{transformer_forward.45} parent=1 // pred_fallthru
      _
    %95 = vsyncpa [#allocation3], 1

</llo_original>
